<compile_context>
chip_gen: v7x
topology: tpu7x:2x2x1
jax: 0.10.0
libtpu: 0.0.40
codegen_flags: <defaults>
</compile_context>

<pallas_src>
import jax
import jax.numpy as jnp
from jax.experimental import pallas as pl
from jax.experimental.pallas import tpu as pltpu

KSIZE = 7
PAD = (KSIZE - 1) // 2


# ---------------------------------------------------------------------------
# Shared helpers
# ---------------------------------------------------------------------------
def _static_roll(x, shift, axis):
    """Static circular shift. Uses the XLU rotate when the rolled dim is
    tile-aligned; otherwise falls back to the (always-lowerable) slice+concat
    form of jnp.roll."""
    size = x.shape[axis]
    shift = shift % size
    if shift == 0:
        return x
    aligned = (axis == x.ndim - 1 and size % 128 == 0) or (
        axis == x.ndim - 2 and size % 8 == 0)
    if aligned:
        return pltpu.roll(x, shift, axis=axis)
    return jnp.roll(x, shift, axis=axis)


def _conv7x7_sigmoid(mx, sm, w_ref):
    """sigmoid(conv7x7_same(stack([max_map, sum_map]))) on (H, W) f32 maps.

    w_ref: SMEM (2*49,) f32 weights; the avg half is pre-scaled by 1/C in the
    wrapper, so `sm` is the plain channel sum."""
    H, W = mx.shape
    H2 = 2 * H
    stacked = jnp.concatenate([mx, sm], axis=0)                    # (2H, W)

    # Hoist all 98 scalar weight reads out of the tap loop.
    w_max = [w_ref[t] for t in range(KSIZE * KSIZE)]
    w_avg = [w_ref[KSIZE * KSIZE + t] for t in range(KSIZE * KSIZE)]

    # Shrunken zero-padding masks, computed in-kernel (no mask DMA at all).
    row = jax.lax.broadcasted_iota(jnp.int32, (H2, 1), 0)          # (2H, 1)
    row_in_map = jnp.where(row >= H, row - H, row)
    is_max_half = row < H
    col = jax.lax.broadcasted_iota(jnp.int32, (1, W), 1)           # (1, W)
    cmasks = [((col + (kw - PAD) >= 0) & (col + (kw - PAD) < W)).astype(jnp.float32)
              for kw in range(KSIZE)]

    # Two partial accumulators -> a bit of ILP in the 49-tap chain.
    acc0 = jnp.zeros((H2, W), jnp.float32)
    acc1 = jnp.zeros((H2, W), jnp.float32)
    for kh in range(KSIZE):
        dh = kh - PAD
        # One sublane shift per kh, shared by both stacked maps.  Rows whose
        # source row h+dh falls outside [0, H) (including rows that wrapped
        # across the max/avg map boundary) are zeroed here, hoisted out of kw.
        rmask = ((row_in_map + dh >= 0) & (row_in_map + dh < H)).astype(jnp.float32)
        base = _static_roll(stacked, -dh, axis=0) * rmask          # (2H, W)
        for kw in range(KSIZE):
            dw = kw - PAD
            t = kh * KSIZE + kw
            tap = _static_roll(base, -dw, axis=1) * cmasks[kw]     # (2H, W)
            wsel = jnp.where(is_max_half, w_max[t], w_avg[t])      # (2H, 1)
            if t % 2 == 0:
                acc0 = acc0 + wsel * tap
            else:
                acc1 = acc1 + wsel * tap
    acc = acc0 + acc1
    logit = acc[0:H, :] + acc[H:H2, :]                             # (H, W)
    return jax.nn.sigmoid(logit)


# ---------------------------------------------------------------------------
# Kernels
# ---------------------------------------------------------------------------
def _fused_kernel(w_ref, x_ref, o_ref, mx_ref, sm_ref):
    # w_ref:  SMEM (98,) f32; x_ref/o_ref: VMEM (1, C, H, W)
    # mx_ref, sm_ref: VMEM (H, W) f32 scratch accumulators.
    C = x_ref.shape[1]
    mx_ref[...] = jnp.full(mx_ref.shape, -jnp.inf, jnp.float32)
    sm_ref[...] = jnp.zeros(sm_ref.shape, jnp.float32)

    def body(i, carry):
        xi = x_ref[0, i].astype(jnp.float32)        # one (H, W) channel slab
        mx_ref[...] = jnp.maximum(mx_ref[...], xi)
        sm_ref[...] = sm_ref[...] + xi
        return carry

    jax.lax.fori_loop(0, C, body, 0)

    att = _conv7x7_sigmoid(mx_ref[...], sm_ref[...], w_ref)
    att = att.astype(o_ref.dtype)                   # cast the small map, not x
    o_ref[0] = (x_ref[0] * att).astype(o_ref.dtype)


def _reduce_conv_kernel(w_ref, x_ref, att_ref, mx_ref, sm_ref):
    # Accumulates channel max / sum across the C-tile grid axis in VMEM
    # scratch, then runs the 7x7 conv + sigmoid epilogue on the last C step.
    c = pl.program_id(1)
    ct = x_ref.shape[1]

    @pl.when(c == 0)
    def _():
        mx_ref[...] = jnp.full(mx_ref.shape, -jnp.inf, jnp.float32)
        sm_ref[...] = jnp.zeros(sm_ref.shape, jnp.float32)

    def body(i, carry):
        xi = x_ref[0, i].astype(jnp.float32)
        mx_ref[...] = jnp.maximum(mx_ref[...], xi)
        sm_ref[...] = sm_ref[...] + xi
        return carry

    jax.lax.fori_loop(0, ct, body, 0)

    @pl.when(c == pl.num_programs(1) - 1)
    def _():
        att = _conv7x7_sigmoid(mx_ref[...], sm_ref[...], w_ref)
        att_ref[0, 0] = att.astype(att_ref.dtype)


def _apply_kernel(att_ref, x_ref, o_ref):
    # att_ref: (1, 1, HW); x_ref / o_ref: (1, Ct, HW) -- lane-dense multiply.
    o_ref[...] = (x_ref[...] * att_ref[...]).astype(o_ref.dtype)


# ---------------------------------------------------------------------------
# Wrapper
# ---------------------------------------------------------------------------
def _vmem_capacity_bytes():
    try:
        info = pltpu.get_tpu_info()
        cap = getattr(info, "vmem_capacity_bytes", None)
        if cap:
            return int(cap)
    except Exception:
        pass
    return 64 * 1024 * 1024          # v7x-sized safe fallback


def _vmem_limit(bytes_needed):
    budget = _vmem_capacity_bytes() - (8 << 20)    # leave compiler headroom
    return int(max(16 << 20, min(budget, bytes_needed)))


def _pick_c_tile(C, bytes_per_channel, target_bytes=2 << 20):
    # Divisors of C that are multiples of 8 (so the lane-dense multiply block
    # keeps an (8,128)-friendly second-minor dim); fall back to the whole C.
    cands = [d for d in range(8, C, 8) if C % d == 0]
    if not cands:
        return C
    fitting = [d for d in cands if d * bytes_per_channel <= target_bytes]
    return max(fitting) if fitting else min(cands)


def spatial_attention(x, weight, *, force_path=None, c_tile=None):
    """SpatialAttention forward. x: (B, C, H, W); weight: (1, 2, 7, 7) OIHW."""
    B, C, H, W = x.shape
    HW = H * W
    itemsize = x.dtype.itemsize
    block_bytes = C * HW * itemsize

    # Flatten the conv weights; fold the 1/C of the channel mean into the
    # avg-branch weights so the kernels only need the channel *sum*.
    w2 = weight.astype(jnp.float32).reshape(2, KSIZE * KSIZE)
    w_flat = jnp.concatenate([w2[0], w2[1] / C])                   # (98,)

    conv_tmp_bytes = 16 * H * W * 4
    budget = _vmem_capacity_bytes() - (8 << 20)
    fuse_limit = min(8 << 20, budget // 6)

    use_fused = force_path != "split" and (force_path == "fused"
                                           or block_bytes <= fuse_limit)
    if use_fused:
        # Fused per-batch kernel: one HBM read of x, conv+sigmoid+multiply in
        # the same grid step.
        vmem = _vmem_limit(4 * block_bytes + conv_tmp_bytes + (4 << 20))
        return pl.pallas_call(
            _fused_kernel,
            out_shape=jax.ShapeDtypeStruct((B, C, H, W), x.dtype),
            grid=(B,),
            in_specs=[
                pl.BlockSpec(memory_space=pltpu.MemorySpace.SMEM),
                pl.BlockSpec((1, C, H, W), lambda b: (b, 0, 0, 0)),
            ],
            out_specs=pl.BlockSpec((1, C, H, W), lambda b: (b, 0, 0, 0)),
            scratch_shapes=[pltpu.VMEM((H, W), jnp.float32),
                            pltpu.VMEM((H, W), jnp.float32)],
            compiler_params=pltpu.CompilerParams(
                dimension_semantics=("parallel",),
                vmem_limit_bytes=vmem),
        )(w_flat, x)

    # --- split path: C-tiled reduction (+ conv epilogue), then lane-dense multiply
    if c_tile is None:
        c_tile = _pick_c_tile(C, HW * itemsize)
    assert C % c_tile == 0 and (c_tile % 8 == 0 or c_tile == C), (C, c_tile)
    nc = C // c_tile
    tile_bytes = c_tile * HW * itemsize

    vmem_a = _vmem_limit(4 * tile_bytes + 4 * HW * itemsize + 2 * HW * 4
                         + conv_tmp_bytes + (4 << 20))
    att = pl.pallas_call(
        _reduce_conv_kernel,
        out_shape=jax.ShapeDtypeStruct((B, 1, H, W), x.dtype),
        grid=(B, nc),
        in_specs=[
            pl.BlockSpec(memory_space=pltpu.MemorySpace.SMEM),
            pl.BlockSpec((1, c_tile, H, W), lambda b, c: (b, c, 0, 0)),
        ],
        out_specs=pl.BlockSpec((1, 1, H, W), lambda b, c: (b, 0, 0, 0)),
        scratch_shapes=[pltpu.VMEM((H, W), jnp.float32),
                        pltpu.VMEM((H, W), jnp.float32)],
        compiler_params=pltpu.CompilerParams(
            dimension_semantics=("parallel", "arbitrary"),
            vmem_limit_bytes=vmem_a),
    )(w_flat, x)

    # Elementwise multiply on a lane-dense (B, C, H*W) view of x (free HBM
    # reshape of the same buffer): the big output writeback uses full-lane,
    # unmasked stores, and both grid axes are 'parallel'.
    # TODO(synk): on v5e, if H*W % 128 != 0 consider padding HW to a multiple
    # of 128 here so the single store slot sees no masked partial stores.
    vmem_b = _vmem_limit(8 * tile_bytes + 2 * HW * itemsize + (4 << 20))
    out = pl.pallas_call(
        _apply_kernel,
        out_shape=jax.ShapeDtypeStruct((B, C, HW), x.dtype),
        grid=(B, nc),
        in_specs=[
            pl.BlockSpec((1, 1, HW), lambda b, c: (b, 0, 0)),
            pl.BlockSpec((1, c_tile, HW), lambda b, c: (b, c, 0)),
        ],
        out_specs=pl.BlockSpec((1, c_tile, HW), lambda b, c: (b, c, 0)),
        compiler_params=pltpu.CompilerParams(
            dimension_semantics=("parallel", "parallel"),
            vmem_limit_bytes=vmem_b),
    )(att.reshape(B, 1, HW), x.reshape(B, C, HW))
    return out.reshape(B, C, H, W)


# ---------------------------------------------------------------------------
# Pure-JAX reference (matches the PyTorch forward)
# ---------------------------------------------------------------------------
def reference(x, weight):
    max_pool = jnp.max(x, axis=1, keepdims=True)
    avg_pool = jnp.mean(x, axis=1, keepdims=True)
    combined = jnp.concatenate([max_pool, avg_pool], axis=1)
    att = jax.lax.conv_general_dilated(
        combined, weight.astype(combined.dtype), window_strides=(1, 1),
        padding="SAME", dimension_numbers=("NCHW", "OIHW", "NCHW"))
    return x * jax.nn.sigmoid(att)


if __name__ == "__main__":
    key = jax.random.PRNGKey(0)
    kx1, kx2, kx3, kw = jax.random.split(key, 4)

    # nn.Conv2d(2, 1, 7, bias=False) weight.
    weight = jax.random.normal(kw, (1, 2, KSIZE, KSIZE), dtype=jnp.float32) * 0.1

    # Case 1: small module-typical input (fused single-kernel path).
    x1 = jax.random.normal(kx1, (2, 4, 16, 16), dtype=jnp.float32)
    # Case 2: non-tile-aligned H/W, C divisible by 8 -> also exercises the
    # C-tiled reduction + lane-dense multiply path with two C steps per batch.
    x2 = jax.random.normal(kx2, (2, 16, 12, 20), dtype=jnp.float32)
    # Case 3: lane-aligned W exercises the native rotate path in the conv.
    x3 = jax.random.normal(kx3, (1, 8, 8, 128), dtype=jnp.float32)

    cases = [
        (x1, dict()),                                 # auto -> fused
        (x1, dict(force_path="split")),               # split, single C block
        (x2, dict(force_path="fused")),               # fused, unaligned H/W
        (x2, dict(force_path="split", c_tile=8)),     # split, 2 C blocks
        (x3, dict()),                                 # auto -> fused, W = 128
    ]
    for xi, kwargs in cases:
        out = jax.block_until_ready(spatial_attention(xi, weight, **kwargs))
        ref = reference(xi, weight)
        assert out.shape == xi.shape and out.dtype == xi.dtype
        max_err = float(jnp.max(jnp.abs(out - ref)))
        assert jnp.allclose(out, ref, atol=1e-5, rtol=1e-5), (kwargs, max_err)

    print("KERNEL_OK")
</pallas_src>

<mosaic_0001>
module attributes {stable_mosaic.version = 11 : i64} {
  func.func @_fused_kernel(%arg0: i32, %arg1: memref<98xf32, #tpu.memory_space<smem>>, %arg2: memref<1x4x16x16xf32, #tpu.memory_space<vmem>>, %arg3: memref<1x4x16x16xf32, #tpu.memory_space<vmem>>, %arg4: memref<16x16xf32, #tpu.memory_space<vmem>>, %arg5: memref<16x16xf32, #tpu.memory_space<vmem>>) attributes {dimension_semantics = [#tpu.dimension_semantics<parallel>], iteration_bounds = array<i64: 2>, scalar_prefetch = 0 : i64, scratch_operands = 2 : i64, tpu.core_type = #tpu.core_type<tc>, window_params = [{transform_indices = @transform_0, window_bounds = array<i64: 98>}, {transform_indices = @transform_1, window_bounds = array<i64: 1, 4, 16, 16>}, {transform_indices = @transform_2, window_bounds = array<i64: 1, 4, 16, 16>}]} {
    %cst = arith.constant 0xFF800000 : f32
    %0 = vector.broadcast %cst : f32 to vector<16x16xf32>
    %c0 = arith.constant 0 : index
    %c0_0 = arith.constant 0 : index
    %1 = vector.load %arg4[%c0, %c0_0] : memref<16x16xf32, #tpu.memory_space<vmem>>, vector<16x16xf32>
    tpu.vector_store %arg4[%c0, %c0_0], %0 {strides = array<i32>} : memref<16x16xf32, #tpu.memory_space<vmem>>, vector<16x16xf32>,
    %cst_1 = arith.constant 0.000000e+00 : f32
    %2 = vector.broadcast %cst_1 : f32 to vector<16x16xf32>
    %c0_2 = arith.constant 0 : index
    %c0_3 = arith.constant 0 : index
    %3 = vector.load %arg5[%c0_2, %c0_3] : memref<16x16xf32, #tpu.memory_space<vmem>>, vector<16x16xf32>
    tpu.vector_store %arg5[%c0_2, %c0_3], %2 {strides = array<i32>} : memref<16x16xf32, #tpu.memory_space<vmem>>, vector<16x16xf32>,
    %c0_i32 = arith.constant 0 : i32
    %c4_i32 = arith.constant 4 : i32
    %4 = arith.addi %c0_i32, %c4_i32 : i32
    %c1_i32 = arith.constant 1 : i32
    scf.for %arg6 = %c0_i32 to %4 step %c1_i32  : i32 {
      %c0_77 = arith.constant 0 : index
      %826 = arith.index_cast %arg6 : i32 to index
      %c0_78 = arith.constant 0 : index
      %c0_79 = arith.constant 0 : index
      %827 = vector.load %arg2[%c0_77, %826, %c0_78, %c0_79] : memref<1x4x16x16xf32, #tpu.memory_space<vmem>>, vector<1x1x16x16xf32>
      %828 = vector.shape_cast %827 : vector<1x1x16x16xf32> to vector<16x16xf32>
      %c0_80 = arith.constant 0 : index
      %c0_81 = arith.constant 0 : index
      %829 = vector.load %arg4[%c0_80, %c0_81] : memref<16x16xf32, #tpu.memory_space<vmem>>, vector<16x16xf32>
      %830 = arith.maximumf %829, %828 : vector<16x16xf32>
      %c0_82 = arith.constant 0 : index
      %c0_83 = arith.constant 0 : index
      %831 = vector.load %arg4[%c0_82, %c0_83] : memref<16x16xf32, #tpu.memory_space<vmem>>, vector<16x16xf32>
      tpu.vector_store %arg4[%c0_82, %c0_83], %830 {strides = array<i32>} : memref<16x16xf32, #tpu.memory_space<vmem>>, vector<16x16xf32>,
      %c0_84 = arith.constant 0 : index
      %c0_85 = arith.constant 0 : index
      %832 = vector.load %arg5[%c0_84, %c0_85] : memref<16x16xf32, #tpu.memory_space<vmem>>, vector<16x16xf32>
      %833 = arith.addf %832, %828 : vector<16x16xf32>
      %c0_86 = arith.constant 0 : index
      %c0_87 = arith.constant 0 : index
      %834 = vector.load %arg5[%c0_86, %c0_87] : memref<16x16xf32, #tpu.memory_space<vmem>>, vector<16x16xf32>
      tpu.vector_store %arg5[%c0_86, %c0_87], %833 {strides = array<i32>} : memref<16x16xf32, #tpu.memory_space<vmem>>, vector<16x16xf32>,
    }
    %c4_i32_4 = arith.constant 4 : i32
    %c0_5 = arith.constant 0 : index
    %c0_6 = arith.constant 0 : index
    %5 = vector.load %arg4[%c0_5, %c0_6] : memref<16x16xf32, #tpu.memory_space<vmem>>, vector<16x16xf32>
    %c0_7 = arith.constant 0 : index
    %c0_8 = arith.constant 0 : index
    %6 = vector.load %arg5[%c0_7, %c0_8] : memref<16x16xf32, #tpu.memory_space<vmem>>, vector<16x16xf32>
    %7 = tpu.concatenate %5, %6 in 0 : vector<16x16xf32>, vector<16x16xf32> -> vector<32x16xf32>
    %c0_9 = arith.constant 0 : index
    %8 = memref.load %arg1[%c0_9] : memref<98xf32, #tpu.memory_space<smem>>
    %c1 = arith.constant 1 : index
    %9 = memref.load %arg1[%c1] : memref<98xf32, #tpu.memory_space<smem>>
    %c2 = arith.constant 2 : index
    %10 = memref.load %arg1[%c2] : memref<98xf32, #tpu.memory_space<smem>>
    %c3 = arith.constant 3 : index
    %11 = memref.load %arg1[%c3] : memref<98xf32, #tpu.memory_space<smem>>
    %c4 = arith.constant 4 : index
    %12 = memref.load %arg1[%c4] : memref<98xf32, #tpu.memory_space<smem>>
    %c5 = arith.constant 5 : index
    %13 = memref.load %arg1[%c5] : memref<98xf32, #tpu.memory_space<smem>>
    %c6 = arith.constant 6 : index
    %14 = memref.load %arg1[%c6] : memref<98xf32, #tpu.memory_space<smem>>
    %c7 = arith.constant 7 : index
    %15 = memref.load %arg1[%c7] : memref<98xf32, #tpu.memory_space<smem>>
    %c8 = arith.constant 8 : index
    %16 = memref.load %arg1[%c8] : memref<98xf32, #tpu.memory_space<smem>>
    %c9 = arith.constant 9 : index
    %17 = memref.load %arg1[%c9] : memref<98xf32, #tpu.memory_space<smem>>
    %c10 = arith.constant 10 : index
    %18 = memref.load %arg1[%c10] : memref<98xf32, #tpu.memory_space<smem>>
    %c11 = arith.constant 11 : index
    %19 = memref.load %arg1[%c11] : memref<98xf32, #tpu.memory_space<smem>>
    %c12 = arith.constant 12 : index
    %20 = memref.load %arg1[%c12] : memref<98xf32, #tpu.memory_space<smem>>
    %c13 = arith.constant 13 : index
    %21 = memref.load %arg1[%c13] : memref<98xf32, #tpu.memory_space<smem>>
    %c14 = arith.constant 14 : index
    %22 = memref.load %arg1[%c14] : memref<98xf32, #tpu.memory_space<smem>>
    %c15 = arith.constant 15 : index
    %23 = memref.load %arg1[%c15] : memref<98xf32, #tpu.memory_space<smem>>
    %c16 = arith.constant 16 : index
    %24 = memref.load %arg1[%c16] : memref<98xf32, #tpu.memory_space<smem>>
    %c17 = arith.constant 17 : index
    %25 = memref.load %arg1[%c17] : memref<98xf32, #tpu.memory_space<smem>>
    %c18 = arith.constant 18 : index
    %26 = memref.load %arg1[%c18] : memref<98xf32, #tpu.memory_space<smem>>
    %c19 = arith.constant 19 : index
    %27 = memref.load %arg1[%c19] : memref<98xf32, #tpu.memory_space<smem>>
    %c20 = arith.constant 20 : index
    %28 = memref.load %arg1[%c20] : memref<98xf32, #tpu.memory_space<smem>>
    %c21 = arith.constant 21 : index
    %29 = memref.load %arg1[%c21] : memref<98xf32, #tpu.memory_space<smem>>
    %c22 = arith.constant 22 : index
    %30 = memref.load %arg1[%c22] : memref<98xf32, #tpu.memory_space<smem>>
    %c23 = arith.constant 23 : index
    %31 = memref.load %arg1[%c23] : memref<98xf32, #tpu.memory_space<smem>>
    %c24 = arith.constant 24 : index
    %32 = memref.load %arg1[%c24] : memref<98xf32, #tpu.memory_space<smem>>
    %c25 = arith.constant 25 : index
    %33 = memref.load %arg1[%c25] : memref<98xf32, #tpu.memory_space<smem>>
    %c26 = arith.constant 26 : index
    %34 = memref.load %arg1[%c26] : memref<98xf32, #tpu.memory_space<smem>>
    %c27 = arith.constant 27 : index
    %35 = memref.load %arg1[%c27] : memref<98xf32, #tpu.memory_space<smem>>
    %c28 = arith.constant 28 : index
    %36 = memref.load %arg1[%c28] : memref<98xf32, #tpu.memory_space<smem>>
    %c29 = arith.constant 29 : index
    %37 = memref.load %arg1[%c29] : memref<98xf32, #tpu.memory_space<smem>>
    %c30 = arith.constant 30 : index
    %38 = memref.load %arg1[%c30] : memref<98xf32, #tpu.memory_space<smem>>
    %c31 = arith.constant 31 : index
    %39 = memref.load %arg1[%c31] : memref<98xf32, #tpu.memory_space<smem>>
    %c32 = arith.constant 32 : index
    %40 = memref.load %arg1[%c32] : memref<98xf32, #tpu.memory_space<smem>>
    %c33 = arith.constant 33 : index
    %41 = memref.load %arg1[%c33] : memref<98xf32, #tpu.memory_space<smem>>
    %c34 = arith.constant 34 : index
    %42 = memref.load %arg1[%c34] : memref<98xf32, #tpu.memory_space<smem>>
    %c35 = arith.constant 35 : index
    %43 = memref.load %arg1[%c35] : memref<98xf32, #tpu.memory_space<smem>>
    %c36 = arith.constant 36 : index
    %44 = memref.load %arg1[%c36] : memref<98xf32, #tpu.memory_space<smem>>
    %c37 = arith.constant 37 : index
    %45 = memref.load %arg1[%c37] : memref<98xf32, #tpu.memory_space<smem>>
    %c38 = arith.constant 38 : index
    %46 = memref.load %arg1[%c38] : memref<98xf32, #tpu.memory_space<smem>>
    %c39 = arith.constant 39 : index
    %47 = memref.load %arg1[%c39] : memref<98xf32, #tpu.memory_space<smem>>
    %c40 = arith.constant 40 : index
    %48 = memref.load %arg1[%c40] : memref<98xf32, #tpu.memory_space<smem>>
    %c41 = arith.constant 41 : index
    %49 = memref.load %arg1[%c41] : memref<98xf32, #tpu.memory_space<smem>>
    %c42 = arith.constant 42 : index
    %50 = memref.load %arg1[%c42] : memref<98xf32, #tpu.memory_space<smem>>
    %c43 = arith.constant 43 : index
    %51 = memref.load %arg1[%c43] : memref<98xf32, #tpu.memory_space<smem>>
    %c44 = arith.constant 44 : index
    %52 = memref.load %arg1[%c44] : memref<98xf32, #tpu.memory_space<smem>>
    %c45 = arith.constant 45 : index
    %53 = memref.load %arg1[%c45] : memref<98xf32, #tpu.memory_space<smem>>
    %c46 = arith.constant 46 : index
    %54 = memref.load %arg1[%c46] : memref<98xf32, #tpu.memory_space<smem>>
    %c47 = arith.constant 47 : index
    %55 = memref.load %arg1[%c47] : memref<98xf32, #tpu.memory_space<smem>>
    %c48 = arith.constant 48 : index
    %56 = memref.load %arg1[%c48] : memref<98xf32, #tpu.memory_space<smem>>
    %c49 = arith.constant 49 : index
    %57 = memref.load %arg1[%c49] : memref<98xf32, #tpu.memory_space<smem>>
    %c50 = arith.constant 50 : index
    %58 = memref.load %arg1[%c50] : memref<98xf32, #tpu.memory_space<smem>>
    %c51 = arith.constant 51 : index
    %59 = memref.load %arg1[%c51] : memref<98xf32, #tpu.memory_space<smem>>
    %c52 = arith.constant 52 : index
    %60 = memref.load %arg1[%c52] : memref<98xf32, #tpu.memory_space<smem>>
    %c53 = arith.constant 53 : index
    %61 = memref.load %arg1[%c53] : memref<98xf32, #tpu.memory_space<smem>>
    %c54 = arith.constant 54 : index
    %62 = memref.load %arg1[%c54] : memref<98xf32, #tpu.memory_space<smem>>
    %c55 = arith.constant 55 : index
    %63 = memref.load %arg1[%c55] : memref<98xf32, #tpu.memory_space<smem>>
    %c56 = arith.constant 56 : index
    %64 = memref.load %arg1[%c56] : memref<98xf32, #tpu.memory_space<smem>>
    %c57 = arith.constant 57 : index
    %65 = memref.load %arg1[%c57] : memref<98xf32, #tpu.memory_space<smem>>
    %c58 = arith.constant 58 : index
    %66 = memref.load %arg1[%c58] : memref<98xf32, #tpu.memory_space<smem>>
    %c59 = arith.constant 59 : index
    %67 = memref.load %arg1[%c59] : memref<98xf32, #tpu.memory_space<smem>>
    %c60 = arith.constant 60 : index
    %68 = memref.load %arg1[%c60] : memref<98xf32, #tpu.memory_space<smem>>
    %c61 = arith.constant 61 : index
    %69 = memref.load %arg1[%c61] : memref<98xf32, #tpu.memory_space<smem>>
    %c62 = arith.constant 62 : index
    %70 = memref.load %arg1[%c62] : memref<98xf32, #tpu.memory_space<smem>>
    %c63 = arith.constant 63 : index
    %71 = memref.load %arg1[%c63] : memref<98xf32, #tpu.memory_space<smem>>
    %c64 = arith.constant 64 : index
    %72 = memref.load %arg1[%c64] : memref<98xf32, #tpu.memory_space<smem>>
    %c65 = arith.constant 65 : index
    %73 = memref.load %arg1[%c65] : memref<98xf32, #tpu.memory_space<smem>>
    %c66 = arith.constant 66 : index
    %74 = memref.load %arg1[%c66] : memref<98xf32, #tpu.memory_space<smem>>
    %c67 = arith.constant 67 : index
    %75 = memref.load %arg1[%c67] : memref<98xf32, #tpu.memory_space<smem>>
    %c68 = arith.constant 68 : index
    %76 = memref.load %arg1[%c68] : memref<98xf32, #tpu.memory_space<smem>>
    %c69 = arith.constant 69 : index
    %77 = memref.load %arg1[%c69] : memref<98xf32, #tpu.memory_space<smem>>
    %c70 = arith.constant 70 : index
    %78 = memref.load %arg1[%c70] : memref<98xf32, #tpu.memory_space<smem>>
    %c71 = arith.constant 71 : index
    %79 = memref.load %arg1[%c71] : memref<98xf32, #tpu.memory_space<smem>>
    %c72 = arith.constant 72 : index
    %80 = memref.load %arg1[%c72] : memref<98xf32, #tpu.memory_space<smem>>
    %c73 = arith.constant 73 : index
    %81 = memref.load %arg1[%c73] : memref<98xf32, #tpu.memory_space<smem>>
    %c74 = arith.constant 74 : index
    %82 = memref.load %arg1[%c74] : memref<98xf32, #tpu.memory_space<smem>>
    %c75 = arith.constant 75 : index
    %83 = memref.load %arg1[%c75] : memref<98xf32, #tpu.memory_space<smem>>
    %c76 = arith.constant 76 : index
    %84 = memref.load %arg1[%c76] : memref<98xf32, #tpu.memory_space<smem>>
    %c77 = arith.constant 77 : index
    %85 = memref.load %arg1[%c77] : memref<98xf32, #tpu.memory_space<smem>>
    %c78 = arith.constant 78 : index
    %86 = memref.load %arg1[%c78] : memref<98xf32, #tpu.memory_space<smem>>
    %c79 = arith.constant 79 : index
    %87 = memref.load %arg1[%c79] : memref<98xf32, #tpu.memory_space<smem>>
    %c80 = arith.constant 80 : index
    %88 = memref.load %arg1[%c80] : memref<98xf32, #tpu.memory_space<smem>>
    %c81 = arith.constant 81 : index
    %89 = memref.load %arg1[%c81] : memref<98xf32, #tpu.memory_space<smem>>
    %c82 = arith.constant 82 : index
    %90 = memref.load %arg1[%c82] : memref<98xf32, #tpu.memory_space<smem>>
    %c83 = arith.constant 83 : index
    %91 = memref.load %arg1[%c83] : memref<98xf32, #tpu.memory_space<smem>>
    %c84 = arith.constant 84 : index
    %92 = memref.load %arg1[%c84] : memref<98xf32, #tpu.memory_space<smem>>
    %c85 = arith.constant 85 : index
    %93 = memref.load %arg1[%c85] : memref<98xf32, #tpu.memory_space<smem>>
    %c86 = arith.constant 86 : index
    %94 = memref.load %arg1[%c86] : memref<98xf32, #tpu.memory_space<smem>>
    %c87 = arith.constant 87 : index
    %95 = memref.load %arg1[%c87] : memref<98xf32, #tpu.memory_space<smem>>
    %c88 = arith.constant 88 : index
    %96 = memref.load %arg1[%c88] : memref<98xf32, #tpu.memory_space<smem>>
    %c89 = arith.constant 89 : index
    %97 = memref.load %arg1[%c89] : memref<98xf32, #tpu.memory_space<smem>>
    %c90 = arith.constant 90 : index
    %98 = memref.load %arg1[%c90] : memref<98xf32, #tpu.memory_space<smem>>
    %c91 = arith.constant 91 : index
    %99 = memref.load %arg1[%c91] : memref<98xf32, #tpu.memory_space<smem>>
    %c92 = arith.constant 92 : index
    %100 = memref.load %arg1[%c92] : memref<98xf32, #tpu.memory_space<smem>>
    %c93 = arith.constant 93 : index
    %101 = memref.load %arg1[%c93] : memref<98xf32, #tpu.memory_space<smem>>
    %c94 = arith.constant 94 : index
    %102 = memref.load %arg1[%c94] : memref<98xf32, #tpu.memory_space<smem>>
    %c95 = arith.constant 95 : index
    %103 = memref.load %arg1[%c95] : memref<98xf32, #tpu.memory_space<smem>>
    %c96 = arith.constant 96 : index
    %104 = memref.load %arg1[%c96] : memref<98xf32, #tpu.memory_space<smem>>
    %c97 = arith.constant 97 : index
    %105 = memref.load %arg1[%c97] : memref<98xf32, #tpu.memory_space<smem>>
    %106 = tpu.iota {dimensions = array<i32: 0>} : vector<32x1xi32>
    %c16_i32 = arith.constant 16 : i32
    %107 = vector.broadcast %c16_i32 : i32 to vector<32x1xi32>
    %108 = arith.cmpi sge, %106, %107 : vector<32x1xi32>
    %c16_i32_10 = arith.constant 16 : i32
    %109 = vector.broadcast %c16_i32_10 : i32 to vector<32x1xi32>
    %110 = arith.subi %106, %109 : vector<32x1xi32>
    %111 = arith.select %108, %110, %106 : vector<32x1xi1>, vector<32x1xi32>
    %c16_i32_11 = arith.constant 16 : i32
    %112 = vector.broadcast %c16_i32_11 : i32 to vector<32x1xi32>
    %113 = arith.cmpi slt, %106, %112 : vector<32x1xi32>
    %114 = tpu.iota {dimensions = array<i32: 1>} : vector<1x16xi32>
    %c-3_i32 = arith.constant -3 : i32
    %115 = vector.broadcast %c-3_i32 : i32 to vector<1x16xi32>
    %116 = arith.addi %114, %115 : vector<1x16xi32>
    %c0_i32_12 = arith.constant 0 : i32
    %117 = vector.broadcast %c0_i32_12 : i32 to vector<1x16xi32>
    %118 = arith.cmpi sge, %116, %117 : vector<1x16xi32>
    %c-3_i32_13 = arith.constant -3 : i32
    %119 = vector.broadcast %c-3_i32_13 : i32 to vector<1x16xi32>
    %120 = arith.addi %114, %119 : vector<1x16xi32>
    %c16_i32_14 = arith.constant 16 : i32
    %121 = vector.broadcast %c16_i32_14 : i32 to vector<1x16xi32>
    %122 = arith.cmpi slt, %120, %121 : vector<1x16xi32>
    %123 = arith.andi %118, %122 : vector<1x16xi1>
    %124 = arith.extui %123 : vector<1x16xi1> to vector<1x16xi32>
    %125 = arith.sitofp %124 : vector<1x16xi32> to vector<1x16xf32>
    %c-2_i32 = arith.constant -2 : i32
    %126 = vector.broadcast %c-2_i32 : i32 to vector<1x16xi32>
    %127 = arith.addi %114, %126 : vector<1x16xi32>
    %c0_i32_15 = arith.constant 0 : i32
    %128 = vector.broadcast %c0_i32_15 : i32 to vector<1x16xi32>
    %129 = arith.cmpi sge, %127, %128 : vector<1x16xi32>
    %c-2_i32_16 = arith.constant -2 : i32
    %130 = vector.broadcast %c-2_i32_16 : i32 to vector<1x16xi32>
    %131 = arith.addi %114, %130 : vector<1x16xi32>
    %c16_i32_17 = arith.constant 16 : i32
    %132 = vector.broadcast %c16_i32_17 : i32 to vector<1x16xi32>
    %133 = arith.cmpi slt, %131, %132 : vector<1x16xi32>
    %134 = arith.andi %129, %133 : vector<1x16xi1>
    %135 = arith.extui %134 : vector<1x16xi1> to vector<1x16xi32>
    %136 = arith.sitofp %135 : vector<1x16xi32> to vector<1x16xf32>
    %c-1_i32 = arith.constant -1 : i32
    %137 = vector.broadcast %c-1_i32 : i32 to vector<1x16xi32>
    %138 = arith.addi %114, %137 : vector<1x16xi32>
    %c0_i32_18 = arith.constant 0 : i32
    %139 = vector.broadcast %c0_i32_18 : i32 to vector<1x16xi32>
    %140 = arith.cmpi sge, %138, %139 : vector<1x16xi32>
    %c-1_i32_19 = arith.constant -1 : i32
    %141 = vector.broadcast %c-1_i32_19 : i32 to vector<1x16xi32>
    %142 = arith.addi %114, %141 : vector<1x16xi32>
    %c16_i32_20 = arith.constant 16 : i32
    %143 = vector.broadcast %c16_i32_20 : i32 to vector<1x16xi32>
    %144 = arith.cmpi slt, %142, %143 : vector<1x16xi32>
    %145 = arith.andi %140, %144 : vector<1x16xi1>
    %146 = arith.extui %145 : vector<1x16xi1> to vector<1x16xi32>
    %147 = arith.sitofp %146 : vector<1x16xi32> to vector<1x16xf32>
    %c0_i32_21 = arith.constant 0 : i32
    %148 = vector.broadcast %c0_i32_21 : i32 to vector<1x16xi32>
    %149 = arith.addi %114, %148 : vector<1x16xi32>
    %c0_i32_22 = arith.constant 0 : i32
    %150 = vector.broadcast %c0_i32_22 : i32 to vector<1x16xi32>
    %151 = arith.cmpi sge, %149, %150 : vector<1x16xi32>
    %c0_i32_23 = arith.constant 0 : i32
    %152 = vector.broadcast %c0_i32_23 : i32 to vector<1x16xi32>
    %153 = arith.addi %114, %152 : vector<1x16xi32>
    %c16_i32_24 = arith.constant 16 : i32
    %154 = vector.broadcast %c16_i32_24 : i32 to vector<1x16xi32>
    %155 = arith.cmpi slt, %153, %154 : vector<1x16xi32>
    %156 = arith.andi %151, %155 : vector<1x16xi1>
    %157 = arith.extui %156 : vector<1x16xi1> to vector<1x16xi32>
    %158 = arith.sitofp %157 : vector<1x16xi32> to vector<1x16xf32>
    %c1_i32_25 = arith.constant 1 : i32
    %159 = vector.broadcast %c1_i32_25 : i32 to vector<1x16xi32>
    %160 = arith.addi %114, %159 : vector<1x16xi32>
    %c0_i32_26 = arith.constant 0 : i32
    %161 = vector.broadcast %c0_i32_26 : i32 to vector<1x16xi32>
    %162 = arith.cmpi sge, %160, %161 : vector<1x16xi32>
    %c1_i32_27 = arith.constant 1 : i32
    %163 = vector.broadcast %c1_i32_27 : i32 to vector<1x16xi32>
    %164 = arith.addi %114, %163 : vector<1x16xi32>
    %c16_i32_28 = arith.constant 16 : i32
    %165 = vector.broadcast %c16_i32_28 : i32 to vector<1x16xi32>
    %166 = arith.cmpi slt, %164, %165 : vector<1x16xi32>
    %167 = arith.andi %162, %166 : vector<1x16xi1>
    %168 = arith.extui %167 : vector<1x16xi1> to vector<1x16xi32>
    %169 = arith.sitofp %168 : vector<1x16xi32> to vector<1x16xf32>
    %c2_i32 = arith.constant 2 : i32
    %170 = vector.broadcast %c2_i32 : i32 to vector<1x16xi32>
    %171 = arith.addi %114, %170 : vector<1x16xi32>
    %c0_i32_29 = arith.constant 0 : i32
    %172 = vector.broadcast %c0_i32_29 : i32 to vector<1x16xi32>
    %173 = arith.cmpi sge, %171, %172 : vector<1x16xi32>
    %c2_i32_30 = arith.constant 2 : i32
    %174 = vector.broadcast %c2_i32_30 : i32 to vector<1x16xi32>
    %175 = arith.addi %114, %174 : vector<1x16xi32>
    %c16_i32_31 = arith.constant 16 : i32
    %176 = vector.broadcast %c16_i32_31 : i32 to vector<1x16xi32>
    %177 = arith.cmpi slt, %175, %176 : vector<1x16xi32>
    %178 = arith.andi %173, %177 : vector<1x16xi1>
    %179 = arith.extui %178 : vector<1x16xi1> to vector<1x16xi32>
    %180 = arith.sitofp %179 : vector<1x16xi32> to vector<1x16xf32>
    %c3_i32 = arith.constant 3 : i32
    %181 = vector.broadcast %c3_i32 : i32 to vector<1x16xi32>
    %182 = arith.addi %114, %181 : vector<1x16xi32>
    %c0_i32_32 = arith.constant 0 : i32
    %183 = vector.broadcast %c0_i32_32 : i32 to vector<1x16xi32>
    %184 = arith.cmpi sge, %182, %183 : vector<1x16xi32>
    %c3_i32_33 = arith.constant 3 : i32
    %185 = vector.broadcast %c3_i32_33 : i32 to vector<1x16xi32>
    %186 = arith.addi %114, %185 : vector<1x16xi32>
    %c16_i32_34 = arith.constant 16 : i32
    %187 = vector.broadcast %c16_i32_34 : i32 to vector<1x16xi32>
    %188 = arith.cmpi slt, %186, %187 : vector<1x16xi32>
    %189 = arith.andi %184, %188 : vector<1x16xi1>
    %190 = arith.extui %189 : vector<1x16xi1> to vector<1x16xi32>
    %191 = arith.sitofp %190 : vector<1x16xi32> to vector<1x16xf32>
    %cst_35 = arith.constant 0.000000e+00 : f32
    %192 = vector.broadcast %cst_35 : f32 to vector<32x16xf32>
    %cst_36 = arith.constant 0.000000e+00 : f32
    %193 = vector.broadcast %cst_36 : f32 to vector<32x16xf32>
    %c-3_i32_37 = arith.constant -3 : i32
    %194 = vector.broadcast %c-3_i32_37 : i32 to vector<32x1xi32>
    %195 = arith.addi %111, %194 : vector<32x1xi32>
    %c0_i32_38 = arith.constant 0 : i32
    %196 = vector.broadcast %c0_i32_38 : i32 to vector<32x1xi32>
    %197 = arith.cmpi sge, %195, %196 : vector<32x1xi32>
    %c-3_i32_39 = arith.constant -3 : i32
    %198 = vector.broadcast %c-3_i32_39 : i32 to vector<32x1xi32>
    %199 = arith.addi %111, %198 : vector<32x1xi32>
    %c16_i32_40 = arith.constant 16 : i32
    %200 = vector.broadcast %c16_i32_40 : i32 to vector<32x1xi32>
    %201 = arith.cmpi slt, %199, %200 : vector<32x1xi32>
    %202 = arith.andi %197, %201 : vector<32x1xi1>
    %203 = arith.extui %202 : vector<32x1xi1> to vector<32x1xi32>
    %204 = arith.sitofp %203 : vector<32x1xi32> to vector<32x1xf32>
    %c3_i32_41 = arith.constant 3 : i32
    %205 = tpu.dynamic_rotate %7 by %c3_i32_41 dim 0 : vector<32x16xf32>, i32 -> vector<32x16xf32>
    %206 = vector.broadcast %204 : vector<32x1xf32> to vector<32x16xf32>
    %207 = arith.mulf %205, %206 : vector<32x16xf32>
    %208 = vector.extract_strided_slice %207 {offsets = [0, 13], sizes = [32, 3], strides = [1, 1]} : vector<32x16xf32> to vector<32x3xf32>
    %209 = vector.extract_strided_slice %207 {offsets = [0, 0], sizes = [32, 13], strides = [1, 1]} : vector<32x16xf32> to vector<32x13xf32>
    %210 = tpu.concatenate %208, %209 in 1 : vector<32x3xf32>, vector<32x13xf32> -> vector<32x16xf32>
    %211 = vector.broadcast %125 : vector<1x16xf32> to vector<32x16xf32>
    %212 = arith.mulf %210, %211 : vector<32x16xf32>
    %213 = vector.broadcast %8 : f32 to vector<32x1xf32>
    %214 = vector.broadcast %57 : f32 to vector<32x1xf32>
    %215 = arith.select %113, %213, %214 : vector<32x1xi1>, vector<32x1xf32>
    %216 = vector.broadcast %215 : vector<32x1xf32> to vector<32x16xf32>
    %217 = arith.mulf %216, %212 : vector<32x16xf32>
    %218 = arith.addf %192, %217 : vector<32x16xf32>
    %219 = vector.extract_strided_slice %207 {offsets = [0, 14], sizes = [32, 2], strides = [1, 1]} : vector<32x16xf32> to vector<32x2xf32>
    %220 = vector.extract_strided_slice %207 {offsets = [0, 0], sizes = [32, 14], strides = [1, 1]} : vector<32x16xf32> to vector<32x14xf32>
    %221 = tpu.concatenate %219, %220 in 1 : vector<32x2xf32>, vector<32x14xf32> -> vector<32x16xf32>
    %222 = vector.broadcast %136 : vector<1x16xf32> to vector<32x16xf32>
    %223 = arith.mulf %221, %222 : vector<32x16xf32>
    %224 = vector.broadcast %9 : f32 to vector<32x1xf32>
    %225 = vector.broadcast %58 : f32 to vector<32x1xf32>
    %226 = arith.select %113, %224, %225 : vector<32x1xi1>, vector<32x1xf32>
    %227 = vector.broadcast %226 : vector<32x1xf32> to vector<32x16xf32>
    %228 = arith.mulf %227, %223 : vector<32x16xf32>
    %229 = arith.addf %193, %228 : vector<32x16xf32>
    %230 = vector.extract_strided_slice %207 {offsets = [0, 15], sizes = [32, 1], strides = [1, 1]} : vector<32x16xf32> to vector<32x1xf32>
    %231 = vector.extract_strided_slice %207 {offsets = [0, 0], sizes = [32, 15], strides = [1, 1]} : vector<32x16xf32> to vector<32x15xf32>
    %232 = tpu.concatenate %230, %231 in 1 : vector<32x1xf32>, vector<32x15xf32> -> vector<32x16xf32>
    %233 = vector.broadcast %147 : vector<1x16xf32> to vector<32x16xf32>
    %234 = arith.mulf %232, %233 : vector<32x16xf32>
    %235 = vector.broadcast %10 : f32 to vector<32x1xf32>
    %236 = vector.broadcast %59 : f32 to vector<32x1xf32>
    %237 = arith.select %113, %235, %236 : vector<32x1xi1>, vector<32x1xf32>
    %238 = vector.broadcast %237 : vector<32x1xf32> to vector<32x16xf32>
    %239 = arith.mulf %238, %234 : vector<32x16xf32>
    %240 = arith.addf %218, %239 : vector<32x16xf32>
    %241 = vector.broadcast %158 : vector<1x16xf32> to vector<32x16xf32>
    %242 = arith.mulf %207, %241 : vector<32x16xf32>
    %243 = vector.broadcast %11 : f32 to vector<32x1xf32>
    %244 = vector.broadcast %60 : f32 to vector<32x1xf32>
    %245 = arith.select %113, %243, %244 : vector<32x1xi1>, vector<32x1xf32>
    %246 = vector.broadcast %245 : vector<32x1xf32> to vector<32x16xf32>
    %247 = arith.mulf %246, %242 : vector<32x16xf32>
    %248 = arith.addf %229, %247 : vector<32x16xf32>
    %249 = vector.extract_strided_slice %207 {offsets = [0, 1], sizes = [32, 15], strides = [1, 1]} : vector<32x16xf32> to vector<32x15xf32>
    %250 = vector.extract_strided_slice %207 {offsets = [0, 0], sizes = [32, 1], strides = [1, 1]} : vector<32x16xf32> to vector<32x1xf32>
    %251 = tpu.concatenate %249, %250 in 1 : vector<32x15xf32>, vector<32x1xf32> -> vector<32x16xf32>
    %252 = vector.broadcast %169 : vector<1x16xf32> to vector<32x16xf32>
    %253 = arith.mulf %251, %252 : vector<32x16xf32>
    %254 = vector.broadcast %12 : f32 to vector<32x1xf32>
    %255 = vector.broadcast %61 : f32 to vector<32x1xf32>
    %256 = arith.select %113, %254, %255 : vector<32x1xi1>, vector<32x1xf32>
    %257 = vector.broadcast %256 : vector<32x1xf32> to vector<32x16xf32>
    %258 = arith.mulf %257, %253 : vector<32x16xf32>
    %259 = arith.addf %240, %258 : vector<32x16xf32>
    %260 = vector.extract_strided_slice %207 {offsets = [0, 2], sizes = [32, 14], strides = [1, 1]} : vector<32x16xf32> to vector<32x14xf32>
    %261 = vector.extract_strided_slice %207 {offsets = [0, 0], sizes = [32, 2], strides = [1, 1]} : vector<32x16xf32> to vector<32x2xf32>
    %262 = tpu.concatenate %260, %261 in 1 : vector<32x14xf32>, vector<32x2xf32> -> vector<32x16xf32>
    %263 = vector.broadcast %180 : vector<1x16xf32> to vector<32x16xf32>
    %264 = arith.mulf %262, %263 : vector<32x16xf32>
    %265 = vector.broadcast %13 : f32 to vector<32x1xf32>
    %266 = vector.broadcast %62 : f32 to vector<32x1xf32>
    %267 = arith.select %113, %265, %266 : vector<32x1xi1>, vector<32x1xf32>
    %268 = vector.broadcast %267 : vector<32x1xf32> to vector<32x16xf32>
    %269 = arith.mulf %268, %264 : vector<32x16xf32>
    %270 = arith.addf %248, %269 : vector<32x16xf32>
    %271 = vector.extract_strided_slice %207 {offsets = [0, 3], sizes = [32, 13], strides = [1, 1]} : vector<32x16xf32> to vector<32x13xf32>
    %272 = vector.extract_strided_slice %207 {offsets = [0, 0], sizes = [32, 3], strides = [1, 1]} : vector<32x16xf32> to vector<32x3xf32>
    %273 = tpu.concatenate %271, %272 in 1 : vector<32x13xf32>, vector<32x3xf32> -> vector<32x16xf32>
    %274 = vector.broadcast %191 : vector<1x16xf32> to vector<32x16xf32>
    %275 = arith.mulf %273, %274 : vector<32x16xf32>
    %276 = vector.broadcast %14 : f32 to vector<32x1xf32>
    %277 = vector.broadcast %63 : f32 to vector<32x1xf32>
    %278 = arith.select %113, %276, %277 : vector<32x1xi1>, vector<32x1xf32>
    %279 = vector.broadcast %278 : vector<32x1xf32> to vector<32x16xf32>
    %280 = arith.mulf %279, %275 : vector<32x16xf32>
    %281 = arith.addf %259, %280 : vector<32x16xf32>
    %c-2_i32_42 = arith.constant -2 : i32
    %282 = vector.broadcast %c-2_i32_42 : i32 to vector<32x1xi32>
    %283 = arith.addi %111, %282 : vector<32x1xi32>
    %c0_i32_43 = arith.constant 0 : i32
    %284 = vector.broadcast %c0_i32_43 : i32 to vector<32x1xi32>
    %285 = arith.cmpi sge, %283, %284 : vector<32x1xi32>
    %c-2_i32_44 = arith.constant -2 : i32
    %286 = vector.broadcast %c-2_i32_44 : i32 to vector<32x1xi32>
    %287 = arith.addi %111, %286 : vector<32x1xi32>
    %c16_i32_45 = arith.constant 16 : i32
    %288 = vector.broadcast %c16_i32_45 : i32 to vector<32x1xi32>
    %289 = arith.cmpi slt, %287, %288 : vector<32x1xi32>
    %290 = arith.andi %285, %289 : vector<32x1xi1>
    %291 = arith.extui %290 : vector<32x1xi1> to vector<32x1xi32>
    %292 = arith.sitofp %291 : vector<32x1xi32> to vector<32x1xf32>
    %c2_i32_46 = arith.constant 2 : i32
    %293 = tpu.dynamic_rotate %7 by %c2_i32_46 dim 0 : vector<32x16xf32>, i32 -> vector<32x16xf32>
    %294 = vector.broadcast %292 : vector<32x1xf32> to vector<32x16xf32>
    %295 = arith.mulf %293, %294 : vector<32x16xf32>
    %296 = vector.extract_strided_slice %295 {offsets = [0, 13], sizes = [32, 3], strides = [1, 1]} : vector<32x16xf32> to vector<32x3xf32>
    %297 = vector.extract_strided_slice %295 {offsets = [0, 0], sizes = [32, 13], strides = [1, 1]} : vector<32x16xf32> to vector<32x13xf32>
    %298 = tpu.concatenate %296, %297 in 1 : vector<32x3xf32>, vector<32x13xf32> -> vector<32x16xf32>
    %299 = vector.broadcast %125 : vector<1x16xf32> to vector<32x16xf32>
    %300 = arith.mulf %298, %299 : vector<32x16xf32>
    %301 = vector.broadcast %15 : f32 to vector<32x1xf32>
    %302 = vector.broadcast %64 : f32 to vector<32x1xf32>
    %303 = arith.select %113, %301, %302 : vector<32x1xi1>, vector<32x1xf32>
    %304 = vector.broadcast %303 : vector<32x1xf32> to vector<32x16xf32>
    %305 = arith.mulf %304, %300 : vector<32x16xf32>
    %306 = arith.addf %270, %305 : vector<32x16xf32>
    %307 = vector.extract_strided_slice %295 {offsets = [0, 14], sizes = [32, 2], strides = [1, 1]} : vector<32x16xf32> to vector<32x2xf32>
    %308 = vector.extract_strided_slice %295 {offsets = [0, 0], sizes = [32, 14], strides = [1, 1]} : vector<32x16xf32> to vector<32x14xf32>
    %309 = tpu.concatenate %307, %308 in 1 : vector<32x2xf32>, vector<32x14xf32> -> vector<32x16xf32>
    %310 = vector.broadcast %136 : vector<1x16xf32> to vector<32x16xf32>
    %311 = arith.mulf %309, %310 : vector<32x16xf32>
    %312 = vector.broadcast %16 : f32 to vector<32x1xf32>
    %313 = vector.broadcast %65 : f32 to vector<32x1xf32>
    %314 = arith.select %113, %312, %313 : vector<32x1xi1>, vector<32x1xf32>
    %315 = vector.broadcast %314 : vector<32x1xf32> to vector<32x16xf32>
    %316 = arith.mulf %315, %311 : vector<32x16xf32>
    %317 = arith.addf %281, %316 : vector<32x16xf32>
    %318 = vector.extract_strided_slice %295 {offsets = [0, 15], sizes = [32, 1], strides = [1, 1]} : vector<32x16xf32> to vector<32x1xf32>
    %319 = vector.extract_strided_slice %295 {offsets = [0, 0], sizes = [32, 15], strides = [1, 1]} : vector<32x16xf32> to vector<32x15xf32>
    %320 = tpu.concatenate %318, %319 in 1 : vector<32x1xf32>, vector<32x15xf32> -> vector<32x16xf32>
    %321 = vector.broadcast %147 : vector<1x16xf32> to vector<32x16xf32>
    %322 = arith.mulf %320, %321 : vector<32x16xf32>
    %323 = vector.broadcast %17 : f32 to vector<32x1xf32>
    %324 = vector.broadcast %66 : f32 to vector<32x1xf32>
    %325 = arith.select %113, %323, %324 : vector<32x1xi1>, vector<32x1xf32>
    %326 = vector.broadcast %325 : vector<32x1xf32> to vector<32x16xf32>
    %327 = arith.mulf %326, %322 : vector<32x16xf32>
    %328 = arith.addf %306, %327 : vector<32x16xf32>
    %329 = vector.broadcast %158 : vector<1x16xf32> to vector<32x16xf32>
    %330 = arith.mulf %295, %329 : vector<32x16xf32>
    %331 = vector.broadcast %18 : f32 to vector<32x1xf32>
    %332 = vector.broadcast %67 : f32 to vector<32x1xf32>
    %333 = arith.select %113, %331, %332 : vector<32x1xi1>, vector<32x1xf32>
    %334 = vector.broadcast %333 : vector<32x1xf32> to vector<32x16xf32>
    %335 = arith.mulf %334, %330 : vector<32x16xf32>
    %336 = arith.addf %317, %335 : vector<32x16xf32>
    %337 = vector.extract_strided_slice %295 {offsets = [0, 1], sizes = [32, 15], strides = [1, 1]} : vector<32x16xf32> to vector<32x15xf32>
    %338 = vector.extract_strided_slice %295 {offsets = [0, 0], sizes = [32, 1], strides = [1, 1]} : vector<32x16xf32> to vector<32x1xf32>
    %339 = tpu.concatenate %337, %338 in 1 : vector<32x15xf32>, vector<32x1xf32> -> vector<32x16xf32>
    %340 = vector.broadcast %169 : vector<1x16xf32> to vector<32x16xf32>
    %341 = arith.mulf %339, %340 : vector<32x16xf32>
    %342 = vector.broadcast %19 : f32 to vector<32x1xf32>
    %343 = vector.broadcast %68 : f32 to vector<32x1xf32>
    %344 = arith.select %113, %342, %343 : vector<32x1xi1>, vector<32x1xf32>
    %345 = vector.broadcast %344 : vector<32x1xf32> to vector<32x16xf32>
    %346 = arith.mulf %345, %341 : vector<32x16xf32>
    %347 = arith.addf %328, %346 : vector<32x16xf32>
    %348 = vector.extract_strided_slice %295 {offsets = [0, 2], sizes = [32, 14], strides = [1, 1]} : vector<32x16xf32> to vector<32x14xf32>
    %349 = vector.extract_strided_slice %295 {offsets = [0, 0], sizes = [32, 2], strides = [1, 1]} : vector<32x16xf32> to vector<32x2xf32>
    %350 = tpu.concatenate %348, %349 in 1 : vector<32x14xf32>, vector<32x2xf32> -> vector<32x16xf32>
    %351 = vector.broadcast %180 : vector<1x16xf32> to vector<32x16xf32>
    %352 = arith.mulf %350, %351 : vector<32x16xf32>
    %353 = vector.broadcast %20 : f32 to vector<32x1xf32>
    %354 = vector.broadcast %69 : f32 to vector<32x1xf32>
    %355 = arith.select %113, %353, %354 : vector<32x1xi1>, vector<32x1xf32>
    %356 = vector.broadcast %355 : vector<32x1xf32> to vector<32x16xf32>
    %357 = arith.mulf %356, %352 : vector<32x16xf32>
    %358 = arith.addf %336, %357 : vector<32x16xf32>
    %359 = vector.extract_strided_slice %295 {offsets = [0, 3], sizes = [32, 13], strides = [1, 1]} : vector<32x16xf32> to vector<32x13xf32>
    %360 = vector.extract_strided_slice %295 {offsets = [0, 0], sizes = [32, 3], strides = [1, 1]} : vector<32x16xf32> to vector<32x3xf32>
    %361 = tpu.concatenate %359, %360 in 1 : vector<32x13xf32>, vector<32x3xf32> -> vector<32x16xf32>
    %362 = vector.broadcast %191 : vector<1x16xf32> to vector<32x16xf32>
    %363 = arith.mulf %361, %362 : vector<32x16xf32>
    %364 = vector.broadcast %21 : f32 to vector<32x1xf32>
    %365 = vector.broadcast %70 : f32 to vector<32x1xf32>
    %366 = arith.select %113, %364, %365 : vector<32x1xi1>, vector<32x1xf32>
    %367 = vector.broadcast %366 : vector<32x1xf32> to vector<32x16xf32>
    %368 = arith.mulf %367, %363 : vector<32x16xf32>
    %369 = arith.addf %347, %368 : vector<32x16xf32>
    %c-1_i32_47 = arith.constant -1 : i32
    %370 = vector.broadcast %c-1_i32_47 : i32 to vector<32x1xi32>
    %371 = arith.addi %111, %370 : vector<32x1xi32>
    %c0_i32_48 = arith.constant 0 : i32
    %372 = vector.broadcast %c0_i32_48 : i32 to vector<32x1xi32>
    %373 = arith.cmpi sge, %371, %372 : vector<32x1xi32>
    %c-1_i32_49 = arith.constant -1 : i32
    %374 = vector.broadcast %c-1_i32_49 : i32 to vector<32x1xi32>
    %375 = arith.addi %111, %374 : vector<32x1xi32>
    %c16_i32_50 = arith.constant 16 : i32
    %376 = vector.broadcast %c16_i32_50 : i32 to vector<32x1xi32>
    %377 = arith.cmpi slt, %375, %376 : vector<32x1xi32>
    %378 = arith.andi %373, %377 : vector<32x1xi1>
    %379 = arith.extui %378 : vector<32x1xi1> to vector<32x1xi32>
    %380 = arith.sitofp %379 : vector<32x1xi32> to vector<32x1xf32>
    %c1_i32_51 = arith.constant 1 : i32
    %381 = tpu.dynamic_rotate %7 by %c1_i32_51 dim 0 : vector<32x16xf32>, i32 -> vector<32x16xf32>
    %382 = vector.broadcast %380 : vector<32x1xf32> to vector<32x16xf32>
    %383 = arith.mulf %381, %382 : vector<32x16xf32>
    %384 = vector.extract_strided_slice %383 {offsets = [0, 13], sizes = [32, 3], strides = [1, 1]} : vector<32x16xf32> to vector<32x3xf32>
    %385 = vector.extract_strided_slice %383 {offsets = [0, 0], sizes = [32, 13], strides = [1, 1]} : vector<32x16xf32> to vector<32x13xf32>
    %386 = tpu.concatenate %384, %385 in 1 : vector<32x3xf32>, vector<32x13xf32> -> vector<32x16xf32>
    %387 = vector.broadcast %125 : vector<1x16xf32> to vector<32x16xf32>
    %388 = arith.mulf %386, %387 : vector<32x16xf32>
    %389 = vector.broadcast %22 : f32 to vector<32x1xf32>
    %390 = vector.broadcast %71 : f32 to vector<32x1xf32>
    %391 = arith.select %113, %389, %390 : vector<32x1xi1>, vector<32x1xf32>
    %392 = vector.broadcast %391 : vector<32x1xf32> to vector<32x16xf32>
    %393 = arith.mulf %392, %388 : vector<32x16xf32>
    %394 = arith.addf %358, %393 : vector<32x16xf32>
    %395 = vector.extract_strided_slice %383 {offsets = [0, 14], sizes = [32, 2], strides = [1, 1]} : vector<32x16xf32> to vector<32x2xf32>
    %396 = vector.extract_strided_slice %383 {offsets = [0, 0], sizes = [32, 14], strides = [1, 1]} : vector<32x16xf32> to vector<32x14xf32>
    %397 = tpu.concatenate %395, %396 in 1 : vector<32x2xf32>, vector<32x14xf32> -> vector<32x16xf32>
    %398 = vector.broadcast %136 : vector<1x16xf32> to vector<32x16xf32>
    %399 = arith.mulf %397, %398 : vector<32x16xf32>
    %400 = vector.broadcast %23 : f32 to vector<32x1xf32>
    %401 = vector.broadcast %72 : f32 to vector<32x1xf32>
    %402 = arith.select %113, %400, %401 : vector<32x1xi1>, vector<32x1xf32>
    %403 = vector.broadcast %402 : vector<32x1xf32> to vector<32x16xf32>
    %404 = arith.mulf %403, %399 : vector<32x16xf32>
    %405 = arith.addf %369, %404 : vector<32x16xf32>
    %406 = vector.extract_strided_slice %383 {offsets = [0, 15], sizes = [32, 1], strides = [1, 1]} : vector<32x16xf32> to vector<32x1xf32>
    %407 = vector.extract_strided_slice %383 {offsets = [0, 0], sizes = [32, 15], strides = [1, 1]} : vector<32x16xf32> to vector<32x15xf32>
    %408 = tpu.concatenate %406, %407 in 1 : vector<32x1xf32>, vector<32x15xf32> -> vector<32x16xf32>
    %409 = vector.broadcast %147 : vector<1x16xf32> to vector<32x16xf32>
    %410 = arith.mulf %408, %409 : vector<32x16xf32>
    %411 = vector.broadcast %24 : f32 to vector<32x1xf32>
    %412 = vector.broadcast %73 : f32 to vector<32x1xf32>
    %413 = arith.select %113, %411, %412 : vector<32x1xi1>, vector<32x1xf32>
    %414 = vector.broadcast %413 : vector<32x1xf32> to vector<32x16xf32>
    %415 = arith.mulf %414, %410 : vector<32x16xf32>
    %416 = arith.addf %394, %415 : vector<32x16xf32>
    %417 = vector.broadcast %158 : vector<1x16xf32> to vector<32x16xf32>
    %418 = arith.mulf %383, %417 : vector<32x16xf32>
    %419 = vector.broadcast %25 : f32 to vector<32x1xf32>
    %420 = vector.broadcast %74 : f32 to vector<32x1xf32>
    %421 = arith.select %113, %419, %420 : vector<32x1xi1>, vector<32x1xf32>
    %422 = vector.broadcast %421 : vector<32x1xf32> to vector<32x16xf32>
    %423 = arith.mulf %422, %418 : vector<32x16xf32>
    %424 = arith.addf %405, %423 : vector<32x16xf32>
    %425 = vector.extract_strided_slice %383 {offsets = [0, 1], sizes = [32, 15], strides = [1, 1]} : vector<32x16xf32> to vector<32x15xf32>
    %426 = vector.extract_strided_slice %383 {offsets = [0, 0], sizes = [32, 1], strides = [1, 1]} : vector<32x16xf32> to vector<32x1xf32>
    %427 = tpu.concatenate %425, %426 in 1 : vector<32x15xf32>, vector<32x1xf32> -> vector<32x16xf32>
    %428 = vector.broadcast %169 : vector<1x16xf32> to vector<32x16xf32>
    %429 = arith.mulf %427, %428 : vector<32x16xf32>
    %430 = vector.broadcast %26 : f32 to vector<32x1xf32>
    %431 = vector.broadcast %75 : f32 to vector<32x1xf32>
    %432 = arith.select %113, %430, %431 : vector<32x1xi1>, vector<32x1xf32>
    %433 = vector.broadcast %432 : vector<32x1xf32> to vector<32x16xf32>
    %434 = arith.mulf %433, %429 : vector<32x16xf32>
    %435 = arith.addf %416, %434 : vector<32x16xf32>
    %436 = vector.extract_strided_slice %383 {offsets = [0, 2], sizes = [32, 14], strides = [1, 1]} : vector<32x16xf32> to vector<32x14xf32>
    %437 = vector.extract_strided_slice %383 {offsets = [0, 0], sizes = [32, 2], strides = [1, 1]} : vector<32x16xf32> to vector<32x2xf32>
    %438 = tpu.concatenate %436, %437 in 1 : vector<32x14xf32>, vector<32x2xf32> -> vector<32x16xf32>
    %439 = vector.broadcast %180 : vector<1x16xf32> to vector<32x16xf32>
    %440 = arith.mulf %438, %439 : vector<32x16xf32>
    %441 = vector.broadcast %27 : f32 to vector<32x1xf32>
    %442 = vector.broadcast %76 : f32 to vector<32x1xf32>
    %443 = arith.select %113, %441, %442 : vector<32x1xi1>, vector<32x1xf32>
    %444 = vector.broadcast %443 : vector<32x1xf32> to vector<32x16xf32>
    %445 = arith.mulf %444, %440 : vector<32x16xf32>
    %446 = arith.addf %424, %445 : vector<32x16xf32>
    %447 = vector.extract_strided_slice %383 {offsets = [0, 3], sizes = [32, 13], strides = [1, 1]} : vector<32x16xf32> to vector<32x13xf32>
    %448 = vector.extract_strided_slice %383 {offsets = [0, 0], sizes = [32, 3], strides = [1, 1]} : vector<32x16xf32> to vector<32x3xf32>
    %449 = tpu.concatenate %447, %448 in 1 : vector<32x13xf32>, vector<32x3xf32> -> vector<32x16xf32>
    %450 = vector.broadcast %191 : vector<1x16xf32> to vector<32x16xf32>
    %451 = arith.mulf %449, %450 : vector<32x16xf32>
    %452 = vector.broadcast %28 : f32 to vector<32x1xf32>
    %453 = vector.broadcast %77 : f32 to vector<32x1xf32>
    %454 = arith.select %113, %452, %453 : vector<32x1xi1>, vector<32x1xf32>
    %455 = vector.broadcast %454 : vector<32x1xf32> to vector<32x16xf32>
    %456 = arith.mulf %455, %451 : vector<32x16xf32>
    %457 = arith.addf %435, %456 : vector<32x16xf32>
    %c0_i32_52 = arith.constant 0 : i32
    %458 = vector.broadcast %c0_i32_52 : i32 to vector<32x1xi32>
    %459 = arith.addi %111, %458 : vector<32x1xi32>
    %c0_i32_53 = arith.constant 0 : i32
    %460 = vector.broadcast %c0_i32_53 : i32 to vector<32x1xi32>
    %461 = arith.cmpi sge, %459, %460 : vector<32x1xi32>
    %c0_i32_54 = arith.constant 0 : i32
    %462 = vector.broadcast %c0_i32_54 : i32 to vector<32x1xi32>
    %463 = arith.addi %111, %462 : vector<32x1xi32>
    %c16_i32_55 = arith.constant 16 : i32
    %464 = vector.broadcast %c16_i32_55 : i32 to vector<32x1xi32>
    %465 = arith.cmpi slt, %463, %464 : vector<32x1xi32>
    %466 = arith.andi %461, %465 : vector<32x1xi1>
    %467 = arith.extui %466 : vector<32x1xi1> to vector<32x1xi32>
    %468 = arith.sitofp %467 : vector<32x1xi32> to vector<32x1xf32>
    %469 = vector.broadcast %468 : vector<32x1xf32> to vector<32x16xf32>
    %470 = arith.mulf %7, %469 : vector<32x16xf32>
    %471 = vector.extract_strided_slice %470 {offsets = [0, 13], sizes = [32, 3], strides = [1, 1]} : vector<32x16xf32> to vector<32x3xf32>
    %472 = vector.extract_strided_slice %470 {offsets = [0, 0], sizes = [32, 13], strides = [1, 1]} : vector<32x16xf32> to vector<32x13xf32>
    %473 = tpu.concatenate %471, %472 in 1 : vector<32x3xf32>, vector<32x13xf32> -> vector<32x16xf32>
    %474 = vector.broadcast %125 : vector<1x16xf32> to vector<32x16xf32>
    %475 = arith.mulf %473, %474 : vector<32x16xf32>
    %476 = vector.broadcast %29 : f32 to vector<32x1xf32>
    %477 = vector.broadcast %78 : f32 to vector<32x1xf32>
    %478 = arith.select %113, %476, %477 : vector<32x1xi1>, vector<32x1xf32>
    %479 = vector.broadcast %478 : vector<32x1xf32> to vector<32x16xf32>
    %480 = arith.mulf %479, %475 : vector<32x16xf32>
    %481 = arith.addf %446, %480 : vector<32x16xf32>
    %482 = vector.extract_strided_slice %470 {offsets = [0, 14], sizes = [32, 2], strides = [1, 1]} : vector<32x16xf32> to vector<32x2xf32>
    %483 = vector.extract_strided_slice %470 {offsets = [0, 0], sizes = [32, 14], strides = [1, 1]} : vector<32x16xf32> to vector<32x14xf32>
    %484 = tpu.concatenate %482, %483 in 1 : vector<32x2xf32>, vector<32x14xf32> -> vector<32x16xf32>
    %485 = vector.broadcast %136 : vector<1x16xf32> to vector<32x16xf32>
    %486 = arith.mulf %484, %485 : vector<32x16xf32>
    %487 = vector.broadcast %30 : f32 to vector<32x1xf32>
    %488 = vector.broadcast %79 : f32 to vector<32x1xf32>
    %489 = arith.select %113, %487, %488 : vector<32x1xi1>, vector<32x1xf32>
    %490 = vector.broadcast %489 : vector<32x1xf32> to vector<32x16xf32>
    %491 = arith.mulf %490, %486 : vector<32x16xf32>
    %492 = arith.addf %457, %491 : vector<32x16xf32>
    %493 = vector.extract_strided_slice %470 {offsets = [0, 15], sizes = [32, 1], strides = [1, 1]} : vector<32x16xf32> to vector<32x1xf32>
    %494 = vector.extract_strided_slice %470 {offsets = [0, 0], sizes = [32, 15], strides = [1, 1]} : vector<32x16xf32> to vector<32x15xf32>
    %495 = tpu.concatenate %493, %494 in 1 : vector<32x1xf32>, vector<32x15xf32> -> vector<32x16xf32>
    %496 = vector.broadcast %147 : vector<1x16xf32> to vector<32x16xf32>
    %497 = arith.mulf %495, %496 : vector<32x16xf32>
    %498 = vector.broadcast %31 : f32 to vector<32x1xf32>
    %499 = vector.broadcast %80 : f32 to vector<32x1xf32>
    %500 = arith.select %113, %498, %499 : vector<32x1xi1>, vector<32x1xf32>
    %501 = vector.broadcast %500 : vector<32x1xf32> to vector<32x16xf32>
    %502 = arith.mulf %501, %497 : vector<32x16xf32>
    %503 = arith.addf %481, %502 : vector<32x16xf32>
    %504 = vector.broadcast %158 : vector<1x16xf32> to vector<32x16xf32>
    %505 = arith.mulf %470, %504 : vector<32x16xf32>
    %506 = vector.broadcast %32 : f32 to vector<32x1xf32>
    %507 = vector.broadcast %81 : f32 to vector<32x1xf32>
    %508 = arith.select %113, %506, %507 : vector<32x1xi1>, vector<32x1xf32>
    %509 = vector.broadcast %508 : vector<32x1xf32> to vector<32x16xf32>
    %510 = arith.mulf %509, %505 : vector<32x16xf32>
    %511 = arith.addf %492, %510 : vector<32x16xf32>
    %512 = vector.extract_strided_slice %470 {offsets = [0, 1], sizes = [32, 15], strides = [1, 1]} : vector<32x16xf32> to vector<32x15xf32>
    %513 = vector.extract_strided_slice %470 {offsets = [0, 0], sizes = [32, 1], strides = [1, 1]} : vector<32x16xf32> to vector<32x1xf32>
    %514 = tpu.concatenate %512, %513 in 1 : vector<32x15xf32>, vector<32x1xf32> -> vector<32x16xf32>
    %515 = vector.broadcast %169 : vector<1x16xf32> to vector<32x16xf32>
    %516 = arith.mulf %514, %515 : vector<32x16xf32>
    %517 = vector.broadcast %33 : f32 to vector<32x1xf32>
    %518 = vector.broadcast %82 : f32 to vector<32x1xf32>
    %519 = arith.select %113, %517, %518 : vector<32x1xi1>, vector<32x1xf32>
    %520 = vector.broadcast %519 : vector<32x1xf32> to vector<32x16xf32>
    %521 = arith.mulf %520, %516 : vector<32x16xf32>
    %522 = arith.addf %503, %521 : vector<32x16xf32>
    %523 = vector.extract_strided_slice %470 {offsets = [0, 2], sizes = [32, 14], strides = [1, 1]} : vector<32x16xf32> to vector<32x14xf32>
    %524 = vector.extract_strided_slice %470 {offsets = [0, 0], sizes = [32, 2], strides = [1, 1]} : vector<32x16xf32> to vector<32x2xf32>
    %525 = tpu.concatenate %523, %524 in 1 : vector<32x14xf32>, vector<32x2xf32> -> vector<32x16xf32>
    %526 = vector.broadcast %180 : vector<1x16xf32> to vector<32x16xf32>
    %527 = arith.mulf %525, %526 : vector<32x16xf32>
    %528 = vector.broadcast %34 : f32 to vector<32x1xf32>
    %529 = vector.broadcast %83 : f32 to vector<32x1xf32>
    %530 = arith.select %113, %528, %529 : vector<32x1xi1>, vector<32x1xf32>
    %531 = vector.broadcast %530 : vector<32x1xf32> to vector<32x16xf32>
    %532 = arith.mulf %531, %527 : vector<32x16xf32>
    %533 = arith.addf %511, %532 : vector<32x16xf32>
    %534 = vector.extract_strided_slice %470 {offsets = [0, 3], sizes = [32, 13], strides = [1, 1]} : vector<32x16xf32> to vector<32x13xf32>
    %535 = vector.extract_strided_slice %470 {offsets = [0, 0], sizes = [32, 3], strides = [1, 1]} : vector<32x16xf32> to vector<32x3xf32>
    %536 = tpu.concatenate %534, %535 in 1 : vector<32x13xf32>, vector<32x3xf32> -> vector<32x16xf32>
    %537 = vector.broadcast %191 : vector<1x16xf32> to vector<32x16xf32>
    %538 = arith.mulf %536, %537 : vector<32x16xf32>
    %539 = vector.broadcast %35 : f32 to vector<32x1xf32>
    %540 = vector.broadcast %84 : f32 to vector<32x1xf32>
    %541 = arith.select %113, %539, %540 : vector<32x1xi1>, vector<32x1xf32>
    %542 = vector.broadcast %541 : vector<32x1xf32> to vector<32x16xf32>
    %543 = arith.mulf %542, %538 : vector<32x16xf32>
    %544 = arith.addf %522, %543 : vector<32x16xf32>
    %c1_i32_56 = arith.constant 1 : i32
    %545 = vector.broadcast %c1_i32_56 : i32 to vector<32x1xi32>
    %546 = arith.addi %111, %545 : vector<32x1xi32>
    %c0_i32_57 = arith.constant 0 : i32
    %547 = vector.broadcast %c0_i32_57 : i32 to vector<32x1xi32>
    %548 = arith.cmpi sge, %546, %547 : vector<32x1xi32>
    %c1_i32_58 = arith.constant 1 : i32
    %549 = vector.broadcast %c1_i32_58 : i32 to vector<32x1xi32>
    %550 = arith.addi %111, %549 : vector<32x1xi32>
    %c16_i32_59 = arith.constant 16 : i32
    %551 = vector.broadcast %c16_i32_59 : i32 to vector<32x1xi32>
    %552 = arith.cmpi slt, %550, %551 : vector<32x1xi32>
    %553 = arith.andi %548, %552 : vector<32x1xi1>
    %554 = arith.extui %553 : vector<32x1xi1> to vector<32x1xi32>
    %555 = arith.sitofp %554 : vector<32x1xi32> to vector<32x1xf32>
    %c31_i32 = arith.constant 31 : i32
    %556 = tpu.dynamic_rotate %7 by %c31_i32 dim 0 : vector<32x16xf32>, i32 -> vector<32x16xf32>
    %557 = vector.broadcast %555 : vector<32x1xf32> to vector<32x16xf32>
    %558 = arith.mulf %556, %557 : vector<32x16xf32>
    %559 = vector.extract_strided_slice %558 {offsets = [0, 13], sizes = [32, 3], strides = [1, 1]} : vector<32x16xf32> to vector<32x3xf32>
    %560 = vector.extract_strided_slice %558 {offsets = [0, 0], sizes = [32, 13], strides = [1, 1]} : vector<32x16xf32> to vector<32x13xf32>
    %561 = tpu.concatenate %559, %560 in 1 : vector<32x3xf32>, vector<32x13xf32> -> vector<32x16xf32>
    %562 = vector.broadcast %125 : vector<1x16xf32> to vector<32x16xf32>
    %563 = arith.mulf %561, %562 : vector<32x16xf32>
    %564 = vector.broadcast %36 : f32 to vector<32x1xf32>
    %565 = vector.broadcast %85 : f32 to vector<32x1xf32>
    %566 = arith.select %113, %564, %565 : vector<32x1xi1>, vector<32x1xf32>
    %567 = vector.broadcast %566 : vector<32x1xf32> to vector<32x16xf32>
    %568 = arith.mulf %567, %563 : vector<32x16xf32>
    %569 = arith.addf %533, %568 : vector<32x16xf32>
    %570 = vector.extract_strided_slice %558 {offsets = [0, 14], sizes = [32, 2], strides = [1, 1]} : vector<32x16xf32> to vector<32x2xf32>
    %571 = vector.extract_strided_slice %558 {offsets = [0, 0], sizes = [32, 14], strides = [1, 1]} : vector<32x16xf32> to vector<32x14xf32>
    %572 = tpu.concatenate %570, %571 in 1 : vector<32x2xf32>, vector<32x14xf32> -> vector<32x16xf32>
    %573 = vector.broadcast %136 : vector<1x16xf32> to vector<32x16xf32>
    %574 = arith.mulf %572, %573 : vector<32x16xf32>
    %575 = vector.broadcast %37 : f32 to vector<32x1xf32>
    %576 = vector.broadcast %86 : f32 to vector<32x1xf32>
    %577 = arith.select %113, %575, %576 : vector<32x1xi1>, vector<32x1xf32>
    %578 = vector.broadcast %577 : vector<32x1xf32> to vector<32x16xf32>
    %579 = arith.mulf %578, %574 : vector<32x16xf32>
    %580 = arith.addf %544, %579 : vector<32x16xf32>
    %581 = vector.extract_strided_slice %558 {offsets = [0, 15], sizes = [32, 1], strides = [1, 1]} : vector<32x16xf32> to vector<32x1xf32>
    %582 = vector.extract_strided_slice %558 {offsets = [0, 0], sizes = [32, 15], strides = [1, 1]} : vector<32x16xf32> to vector<32x15xf32>
    %583 = tpu.concatenate %581, %582 in 1 : vector<32x1xf32>, vector<32x15xf32> -> vector<32x16xf32>
    %584 = vector.broadcast %147 : vector<1x16xf32> to vector<32x16xf32>
    %585 = arith.mulf %583, %584 : vector<32x16xf32>
    %586 = vector.broadcast %38 : f32 to vector<32x1xf32>
    %587 = vector.broadcast %87 : f32 to vector<32x1xf32>
    %588 = arith.select %113, %586, %587 : vector<32x1xi1>, vector<32x1xf32>
    %589 = vector.broadcast %588 : vector<32x1xf32> to vector<32x16xf32>
    %590 = arith.mulf %589, %585 : vector<32x16xf32>
    %591 = arith.addf %569, %590 : vector<32x16xf32>
    %592 = vector.broadcast %158 : vector<1x16xf32> to vector<32x16xf32>
    %593 = arith.mulf %558, %592 : vector<32x16xf32>
    %594 = vector.broadcast %39 : f32 to vector<32x1xf32>
    %595 = vector.broadcast %88 : f32 to vector<32x1xf32>
    %596 = arith.select %113, %594, %595 : vector<32x1xi1>, vector<32x1xf32>
    %597 = vector.broadcast %596 : vector<32x1xf32> to vector<32x16xf32>
    %598 = arith.mulf %597, %593 : vector<32x16xf32>
    %599 = arith.addf %580, %598 : vector<32x16xf32>
    %600 = vector.extract_strided_slice %558 {offsets = [0, 1], sizes = [32, 15], strides = [1, 1]} : vector<32x16xf32> to vector<32x15xf32>
    %601 = vector.extract_strided_slice %558 {offsets = [0, 0], sizes = [32, 1], strides = [1, 1]} : vector<32x16xf32> to vector<32x1xf32>
    %602 = tpu.concatenate %600, %601 in 1 : vector<32x15xf32>, vector<32x1xf32> -> vector<32x16xf32>
    %603 = vector.broadcast %169 : vector<1x16xf32> to vector<32x16xf32>
    %604 = arith.mulf %602, %603 : vector<32x16xf32>
    %605 = vector.broadcast %40 : f32 to vector<32x1xf32>
    %606 = vector.broadcast %89 : f32 to vector<32x1xf32>
    %607 = arith.select %113, %605, %606 : vector<32x1xi1>, vector<32x1xf32>
    %608 = vector.broadcast %607 : vector<32x1xf32> to vector<32x16xf32>
    %609 = arith.mulf %608, %604 : vector<32x16xf32>
    %610 = arith.addf %591, %609 : vector<32x16xf32>
    %611 = vector.extract_strided_slice %558 {offsets = [0, 2], sizes = [32, 14], strides = [1, 1]} : vector<32x16xf32> to vector<32x14xf32>
    %612 = vector.extract_strided_slice %558 {offsets = [0, 0], sizes = [32, 2], strides = [1, 1]} : vector<32x16xf32> to vector<32x2xf32>
    %613 = tpu.concatenate %611, %612 in 1 : vector<32x14xf32>, vector<32x2xf32> -> vector<32x16xf32>
    %614 = vector.broadcast %180 : vector<1x16xf32> to vector<32x16xf32>
    %615 = arith.mulf %613, %614 : vector<32x16xf32>
    %616 = vector.broadcast %41 : f32 to vector<32x1xf32>
    %617 = vector.broadcast %90 : f32 to vector<32x1xf32>
    %618 = arith.select %113, %616, %617 : vector<32x1xi1>, vector<32x1xf32>
    %619 = vector.broadcast %618 : vector<32x1xf32> to vector<32x16xf32>
    %620 = arith.mulf %619, %615 : vector<32x16xf32>
    %621 = arith.addf %599, %620 : vector<32x16xf32>
    %622 = vector.extract_strided_slice %558 {offsets = [0, 3], sizes = [32, 13], strides = [1, 1]} : vector<32x16xf32> to vector<32x13xf32>
    %623 = vector.extract_strided_slice %558 {offsets = [0, 0], sizes = [32, 3], strides = [1, 1]} : vector<32x16xf32> to vector<32x3xf32>
    %624 = tpu.concatenate %622, %623 in 1 : vector<32x13xf32>, vector<32x3xf32> -> vector<32x16xf32>
    %625 = vector.broadcast %191 : vector<1x16xf32> to vector<32x16xf32>
    %626 = arith.mulf %624, %625 : vector<32x16xf32>
    %627 = vector.broadcast %42 : f32 to vector<32x1xf32>
    %628 = vector.broadcast %91 : f32 to vector<32x1xf32>
    %629 = arith.select %113, %627, %628 : vector<32x1xi1>, vector<32x1xf32>
    %630 = vector.broadcast %629 : vector<32x1xf32> to vector<32x16xf32>
    %631 = arith.mulf %630, %626 : vector<32x16xf32>
    %632 = arith.addf %610, %631 : vector<32x16xf32>
    %c2_i32_60 = arith.constant 2 : i32
    %633 = vector.broadcast %c2_i32_60 : i32 to vector<32x1xi32>
    %634 = arith.addi %111, %633 : vector<32x1xi32>
    %c0_i32_61 = arith.constant 0 : i32
    %635 = vector.broadcast %c0_i32_61 : i32 to vector<32x1xi32>
    %636 = arith.cmpi sge, %634, %635 : vector<32x1xi32>
    %c2_i32_62 = arith.constant 2 : i32
    %637 = vector.broadcast %c2_i32_62 : i32 to vector<32x1xi32>
    %638 = arith.addi %111, %637 : vector<32x1xi32>
    %c16_i32_63 = arith.constant 16 : i32
    %639 = vector.broadcast %c16_i32_63 : i32 to vector<32x1xi32>
    %640 = arith.cmpi slt, %638, %639 : vector<32x1xi32>
    %641 = arith.andi %636, %640 : vector<32x1xi1>
    %642 = arith.extui %641 : vector<32x1xi1> to vector<32x1xi32>
    %643 = arith.sitofp %642 : vector<32x1xi32> to vector<32x1xf32>
    %c30_i32 = arith.constant 30 : i32
    %644 = tpu.dynamic_rotate %7 by %c30_i32 dim 0 : vector<32x16xf32>, i32 -> vector<32x16xf32>
    %645 = vector.broadcast %643 : vector<32x1xf32> to vector<32x16xf32>
    %646 = arith.mulf %644, %645 : vector<32x16xf32>
    %647 = vector.extract_strided_slice %646 {offsets = [0, 13], sizes = [32, 3], strides = [1, 1]} : vector<32x16xf32> to vector<32x3xf32>
    %648 = vector.extract_strided_slice %646 {offsets = [0, 0], sizes = [32, 13], strides = [1, 1]} : vector<32x16xf32> to vector<32x13xf32>
    %649 = tpu.concatenate %647, %648 in 1 : vector<32x3xf32>, vector<32x13xf32> -> vector<32x16xf32>
    %650 = vector.broadcast %125 : vector<1x16xf32> to vector<32x16xf32>
    %651 = arith.mulf %649, %650 : vector<32x16xf32>
    %652 = vector.broadcast %43 : f32 to vector<32x1xf32>
    %653 = vector.broadcast %92 : f32 to vector<32x1xf32>
    %654 = arith.select %113, %652, %653 : vector<32x1xi1>, vector<32x1xf32>
    %655 = vector.broadcast %654 : vector<32x1xf32> to vector<32x16xf32>
    %656 = arith.mulf %655, %651 : vector<32x16xf32>
    %657 = arith.addf %621, %656 : vector<32x16xf32>
    %658 = vector.extract_strided_slice %646 {offsets = [0, 14], sizes = [32, 2], strides = [1, 1]} : vector<32x16xf32> to vector<32x2xf32>
    %659 = vector.extract_strided_slice %646 {offsets = [0, 0], sizes = [32, 14], strides = [1, 1]} : vector<32x16xf32> to vector<32x14xf32>
    %660 = tpu.concatenate %658, %659 in 1 : vector<32x2xf32>, vector<32x14xf32> -> vector<32x16xf32>
    %661 = vector.broadcast %136 : vector<1x16xf32> to vector<32x16xf32>
    %662 = arith.mulf %660, %661 : vector<32x16xf32>
    %663 = vector.broadcast %44 : f32 to vector<32x1xf32>
    %664 = vector.broadcast %93 : f32 to vector<32x1xf32>
    %665 = arith.select %113, %663, %664 : vector<32x1xi1>, vector<32x1xf32>
    %666 = vector.broadcast %665 : vector<32x1xf32> to vector<32x16xf32>
    %667 = arith.mulf %666, %662 : vector<32x16xf32>
    %668 = arith.addf %632, %667 : vector<32x16xf32>
    %669 = vector.extract_strided_slice %646 {offsets = [0, 15], sizes = [32, 1], strides = [1, 1]} : vector<32x16xf32> to vector<32x1xf32>
    %670 = vector.extract_strided_slice %646 {offsets = [0, 0], sizes = [32, 15], strides = [1, 1]} : vector<32x16xf32> to vector<32x15xf32>
    %671 = tpu.concatenate %669, %670 in 1 : vector<32x1xf32>, vector<32x15xf32> -> vector<32x16xf32>
    %672 = vector.broadcast %147 : vector<1x16xf32> to vector<32x16xf32>
    %673 = arith.mulf %671, %672 : vector<32x16xf32>
    %674 = vector.broadcast %45 : f32 to vector<32x1xf32>
    %675 = vector.broadcast %94 : f32 to vector<32x1xf32>
    %676 = arith.select %113, %674, %675 : vector<32x1xi1>, vector<32x1xf32>
    %677 = vector.broadcast %676 : vector<32x1xf32> to vector<32x16xf32>
    %678 = arith.mulf %677, %673 : vector<32x16xf32>
    %679 = arith.addf %657, %678 : vector<32x16xf32>
    %680 = vector.broadcast %158 : vector<1x16xf32> to vector<32x16xf32>
    %681 = arith.mulf %646, %680 : vector<32x16xf32>
    %682 = vector.broadcast %46 : f32 to vector<32x1xf32>
    %683 = vector.broadcast %95 : f32 to vector<32x1xf32>
    %684 = arith.select %113, %682, %683 : vector<32x1xi1>, vector<32x1xf32>
    %685 = vector.broadcast %684 : vector<32x1xf32> to vector<32x16xf32>
    %686 = arith.mulf %685, %681 : vector<32x16xf32>
    %687 = arith.addf %668, %686 : vector<32x16xf32>
    %688 = vector.extract_strided_slice %646 {offsets = [0, 1], sizes = [32, 15], strides = [1, 1]} : vector<32x16xf32> to vector<32x15xf32>
    %689 = vector.extract_strided_slice %646 {offsets = [0, 0], sizes = [32, 1], strides = [1, 1]} : vector<32x16xf32> to vector<32x1xf32>
    %690 = tpu.concatenate %688, %689 in 1 : vector<32x15xf32>, vector<32x1xf32> -> vector<32x16xf32>
    %691 = vector.broadcast %169 : vector<1x16xf32> to vector<32x16xf32>
    %692 = arith.mulf %690, %691 : vector<32x16xf32>
    %693 = vector.broadcast %47 : f32 to vector<32x1xf32>
    %694 = vector.broadcast %96 : f32 to vector<32x1xf32>
    %695 = arith.select %113, %693, %694 : vector<32x1xi1>, vector<32x1xf32>
    %696 = vector.broadcast %695 : vector<32x1xf32> to vector<32x16xf32>
    %697 = arith.mulf %696, %692 : vector<32x16xf32>
    %698 = arith.addf %679, %697 : vector<32x16xf32>
    %699 = vector.extract_strided_slice %646 {offsets = [0, 2], sizes = [32, 14], strides = [1, 1]} : vector<32x16xf32> to vector<32x14xf32>
    %700 = vector.extract_strided_slice %646 {offsets = [0, 0], sizes = [32, 2], strides = [1, 1]} : vector<32x16xf32> to vector<32x2xf32>
    %701 = tpu.concatenate %699, %700 in 1 : vector<32x14xf32>, vector<32x2xf32> -> vector<32x16xf32>
    %702 = vector.broadcast %180 : vector<1x16xf32> to vector<32x16xf32>
    %703 = arith.mulf %701, %702 : vector<32x16xf32>
    %704 = vector.broadcast %48 : f32 to vector<32x1xf32>
    %705 = vector.broadcast %97 : f32 to vector<32x1xf32>
    %706 = arith.select %113, %704, %705 : vector<32x1xi1>, vector<32x1xf32>
    %707 = vector.broadcast %706 : vector<32x1xf32> to vector<32x16xf32>
    %708 = arith.mulf %707, %703 : vector<32x16xf32>
    %709 = arith.addf %687, %708 : vector<32x16xf32>
    %710 = vector.extract_strided_slice %646 {offsets = [0, 3], sizes = [32, 13], strides = [1, 1]} : vector<32x16xf32> to vector<32x13xf32>
    %711 = vector.extract_strided_slice %646 {offsets = [0, 0], sizes = [32, 3], strides = [1, 1]} : vector<32x16xf32> to vector<32x3xf32>
    %712 = tpu.concatenate %710, %711 in 1 : vector<32x13xf32>, vector<32x3xf32> -> vector<32x16xf32>
    %713 = vector.broadcast %191 : vector<1x16xf32> to vector<32x16xf32>
    %714 = arith.mulf %712, %713 : vector<32x16xf32>
    %715 = vector.broadcast %49 : f32 to vector<32x1xf32>
    %716 = vector.broadcast %98 : f32 to vector<32x1xf32>
    %717 = arith.select %113, %715, %716 : vector<32x1xi1>, vector<32x1xf32>
    %718 = vector.broadcast %717 : vector<32x1xf32> to vector<32x16xf32>
    %719 = arith.mulf %718, %714 : vector<32x16xf32>
    %720 = arith.addf %698, %719 : vector<32x16xf32>
    %c3_i32_64 = arith.constant 3 : i32
    %721 = vector.broadcast %c3_i32_64 : i32 to vector<32x1xi32>
    %722 = arith.addi %111, %721 : vector<32x1xi32>
    %c0_i32_65 = arith.constant 0 : i32
    %723 = vector.broadcast %c0_i32_65 : i32 to vector<32x1xi32>
    %724 = arith.cmpi sge, %722, %723 : vector<32x1xi32>
    %c3_i32_66 = arith.constant 3 : i32
    %725 = vector.broadcast %c3_i32_66 : i32 to vector<32x1xi32>
    %726 = arith.addi %111, %725 : vector<32x1xi32>
    %c16_i32_67 = arith.constant 16 : i32
    %727 = vector.broadcast %c16_i32_67 : i32 to vector<32x1xi32>
    %728 = arith.cmpi slt, %726, %727 : vector<32x1xi32>
    %729 = arith.andi %724, %728 : vector<32x1xi1>
    %730 = arith.extui %729 : vector<32x1xi1> to vector<32x1xi32>
    %731 = arith.sitofp %730 : vector<32x1xi32> to vector<32x1xf32>
    %c29_i32 = arith.constant 29 : i32
    %732 = tpu.dynamic_rotate %7 by %c29_i32 dim 0 : vector<32x16xf32>, i32 -> vector<32x16xf32>
    %733 = vector.broadcast %731 : vector<32x1xf32> to vector<32x16xf32>
    %734 = arith.mulf %732, %733 : vector<32x16xf32>
    %735 = vector.extract_strided_slice %734 {offsets = [0, 13], sizes = [32, 3], strides = [1, 1]} : vector<32x16xf32> to vector<32x3xf32>
    %736 = vector.extract_strided_slice %734 {offsets = [0, 0], sizes = [32, 13], strides = [1, 1]} : vector<32x16xf32> to vector<32x13xf32>
    %737 = tpu.concatenate %735, %736 in 1 : vector<32x3xf32>, vector<32x13xf32> -> vector<32x16xf32>
    %738 = vector.broadcast %125 : vector<1x16xf32> to vector<32x16xf32>
    %739 = arith.mulf %737, %738 : vector<32x16xf32>
    %740 = vector.broadcast %50 : f32 to vector<32x1xf32>
    %741 = vector.broadcast %99 : f32 to vector<32x1xf32>
    %742 = arith.select %113, %740, %741 : vector<32x1xi1>, vector<32x1xf32>
    %743 = vector.broadcast %742 : vector<32x1xf32> to vector<32x16xf32>
    %744 = arith.mulf %743, %739 : vector<32x16xf32>
    %745 = arith.addf %709, %744 : vector<32x16xf32>
    %746 = vector.extract_strided_slice %734 {offsets = [0, 14], sizes = [32, 2], strides = [1, 1]} : vector<32x16xf32> to vector<32x2xf32>
    %747 = vector.extract_strided_slice %734 {offsets = [0, 0], sizes = [32, 14], strides = [1, 1]} : vector<32x16xf32> to vector<32x14xf32>
    %748 = tpu.concatenate %746, %747 in 1 : vector<32x2xf32>, vector<32x14xf32> -> vector<32x16xf32>
    %749 = vector.broadcast %136 : vector<1x16xf32> to vector<32x16xf32>
    %750 = arith.mulf %748, %749 : vector<32x16xf32>
    %751 = vector.broadcast %51 : f32 to vector<32x1xf32>
    %752 = vector.broadcast %100 : f32 to vector<32x1xf32>
    %753 = arith.select %113, %751, %752 : vector<32x1xi1>, vector<32x1xf32>
    %754 = vector.broadcast %753 : vector<32x1xf32> to vector<32x16xf32>
    %755 = arith.mulf %754, %750 : vector<32x16xf32>
    %756 = arith.addf %720, %755 : vector<32x16xf32>
    %757 = vector.extract_strided_slice %734 {offsets = [0, 15], sizes = [32, 1], strides = [1, 1]} : vector<32x16xf32> to vector<32x1xf32>
    %758 = vector.extract_strided_slice %734 {offsets = [0, 0], sizes = [32, 15], strides = [1, 1]} : vector<32x16xf32> to vector<32x15xf32>
    %759 = tpu.concatenate %757, %758 in 1 : vector<32x1xf32>, vector<32x15xf32> -> vector<32x16xf32>
    %760 = vector.broadcast %147 : vector<1x16xf32> to vector<32x16xf32>
    %761 = arith.mulf %759, %760 : vector<32x16xf32>
    %762 = vector.broadcast %52 : f32 to vector<32x1xf32>
    %763 = vector.broadcast %101 : f32 to vector<32x1xf32>
    %764 = arith.select %113, %762, %763 : vector<32x1xi1>, vector<32x1xf32>
    %765 = vector.broadcast %764 : vector<32x1xf32> to vector<32x16xf32>
    %766 = arith.mulf %765, %761 : vector<32x16xf32>
    %767 = arith.addf %745, %766 : vector<32x16xf32>
    %768 = vector.broadcast %158 : vector<1x16xf32> to vector<32x16xf32>
    %769 = arith.mulf %734, %768 : vector<32x16xf32>
    %770 = vector.broadcast %53 : f32 to vector<32x1xf32>
    %771 = vector.broadcast %102 : f32 to vector<32x1xf32>
    %772 = arith.select %113, %770, %771 : vector<32x1xi1>, vector<32x1xf32>
    %773 = vector.broadcast %772 : vector<32x1xf32> to vector<32x16xf32>
    %774 = arith.mulf %773, %769 : vector<32x16xf32>
    %775 = arith.addf %756, %774 : vector<32x16xf32>
    %776 = vector.extract_strided_slice %734 {offsets = [0, 1], sizes = [32, 15], strides = [1, 1]} : vector<32x16xf32> to vector<32x15xf32>
    %777 = vector.extract_strided_slice %734 {offsets = [0, 0], sizes = [32, 1], strides = [1, 1]} : vector<32x16xf32> to vector<32x1xf32>
    %778 = tpu.concatenate %776, %777 in 1 : vector<32x15xf32>, vector<32x1xf32> -> vector<32x16xf32>
    %779 = vector.broadcast %169 : vector<1x16xf32> to vector<32x16xf32>
    %780 = arith.mulf %778, %779 : vector<32x16xf32>
    %781 = vector.broadcast %54 : f32 to vector<32x1xf32>
    %782 = vector.broadcast %103 : f32 to vector<32x1xf32>
    %783 = arith.select %113, %781, %782 : vector<32x1xi1>, vector<32x1xf32>
    %784 = vector.broadcast %783 : vector<32x1xf32> to vector<32x16xf32>
    %785 = arith.mulf %784, %780 : vector<32x16xf32>
    %786 = arith.addf %767, %785 : vector<32x16xf32>
    %787 = vector.extract_strided_slice %734 {offsets = [0, 2], sizes = [32, 14], strides = [1, 1]} : vector<32x16xf32> to vector<32x14xf32>
    %788 = vector.extract_strided_slice %734 {offsets = [0, 0], sizes = [32, 2], strides = [1, 1]} : vector<32x16xf32> to vector<32x2xf32>
    %789 = tpu.concatenate %787, %788 in 1 : vector<32x14xf32>, vector<32x2xf32> -> vector<32x16xf32>
    %790 = vector.broadcast %180 : vector<1x16xf32> to vector<32x16xf32>
    %791 = arith.mulf %789, %790 : vector<32x16xf32>
    %792 = vector.broadcast %55 : f32 to vector<32x1xf32>
    %793 = vector.broadcast %104 : f32 to vector<32x1xf32>
    %794 = arith.select %113, %792, %793 : vector<32x1xi1>, vector<32x1xf32>
    %795 = vector.broadcast %794 : vector<32x1xf32> to vector<32x16xf32>
    %796 = arith.mulf %795, %791 : vector<32x16xf32>
    %797 = arith.addf %775, %796 : vector<32x16xf32>
    %798 = vector.extract_strided_slice %734 {offsets = [0, 3], sizes = [32, 13], strides = [1, 1]} : vector<32x16xf32> to vector<32x13xf32>
    %799 = vector.extract_strided_slice %734 {offsets = [0, 0], sizes = [32, 3], strides = [1, 1]} : vector<32x16xf32> to vector<32x3xf32>
    %800 = tpu.concatenate %798, %799 in 1 : vector<32x13xf32>, vector<32x3xf32> -> vector<32x16xf32>
    %801 = vector.broadcast %191 : vector<1x16xf32> to vector<32x16xf32>
    %802 = arith.mulf %800, %801 : vector<32x16xf32>
    %803 = vector.broadcast %56 : f32 to vector<32x1xf32>
    %804 = vector.broadcast %105 : f32 to vector<32x1xf32>
    %805 = arith.select %113, %803, %804 : vector<32x1xi1>, vector<32x1xf32>
    %806 = vector.broadcast %805 : vector<32x1xf32> to vector<32x16xf32>
    %807 = arith.mulf %806, %802 : vector<32x16xf32>
    %808 = arith.addf %786, %807 : vector<32x16xf32>
    %809 = arith.addf %808, %797 : vector<32x16xf32>
    %810 = vector.extract_strided_slice %809 {offsets = [0, 0], sizes = [16, 16], strides = [1, 1]} : vector<32x16xf32> to vector<16x16xf32>
    %811 = vector.extract_strided_slice %809 {offsets = [16, 0], sizes = [16, 16], strides = [1, 1]} : vector<32x16xf32> to vector<16x16xf32>
    %812 = arith.addf %810, %811 : vector<16x16xf32>
    %813 = arith.negf %812 : vector<16x16xf32>
    %814 = math.exp %813 : vector<16x16xf32>
    %cst_68 = arith.constant 1.000000e+00 : f32
    %815 = vector.broadcast %cst_68 : f32 to vector<16x16xf32>
    %816 = arith.addf %815, %814 : vector<16x16xf32>
    %817 = arith.divf %815, %816 : vector<16x16xf32>
    %c0_69 = arith.constant 0 : index
    %c0_70 = arith.constant 0 : index
    %c0_71 = arith.constant 0 : index
    %c0_72 = arith.constant 0 : index
    %818 = vector.load %arg2[%c0_69, %c0_70, %c0_71, %c0_72] : memref<1x4x16x16xf32, #tpu.memory_space<vmem>>, vector<1x4x16x16xf32>
    %819 = vector.shape_cast %818 : vector<1x4x16x16xf32> to vector<4x16x16xf32>
    %820 = vector.shape_cast %817 : vector<16x16xf32> to vector<1x16x16xf32>
    %821 = vector.broadcast %820 : vector<1x16x16xf32> to vector<4x16x16xf32>
    %822 = arith.mulf %819, %821 : vector<4x16x16xf32>
    %c0_73 = arith.constant 0 : index
    %c0_74 = arith.constant 0 : index
    %c0_75 = arith.constant 0 : index
    %c0_76 = arith.constant 0 : index
    %823 = vector.load %arg3[%c0_73, %c0_74, %c0_75, %c0_76] : memref<1x4x16x16xf32, #tpu.memory_space<vmem>>, vector<1x4x16x16xf32>
    %824 = vector.shape_cast %823 : vector<1x4x16x16xf32> to vector<4x16x16xf32>
    %825 = vector.shape_cast %822 : vector<4x16x16xf32> to vector<1x4x16x16xf32>
    tpu.vector_store %arg3[%c0_73, %c0_74, %c0_75, %c0_76], %825 {strides = array<i32>} : memref<1x4x16x16xf32, #tpu.memory_space<vmem>>, vector<1x4x16x16xf32>,
    return
  }
  func.func @transform_0(%arg0: i32) -> i32 {
    %c0_i32 = arith.constant 0 : i32
    %c0_i32_0 = arith.constant 0 : i32
    return %c0_i32 : i32
  }
  func.func @transform_1(%arg0: i32) -> (i32, i32, i32, i32) {
    %c0_i32 = arith.constant 0 : i32
    %c0_i32_0 = arith.constant 0 : i32
    %c0_i32_1 = arith.constant 0 : i32
    %c0_i32_2 = arith.constant 0 : i32
    return %arg0, %c0_i32, %c0_i32_0, %c0_i32_1 : i32, i32, i32, i32
  }
  func.func @transform_2(%arg0: i32) -> (i32, i32, i32, i32) {
    %c0_i32 = arith.constant 0 : i32
    %c0_i32_0 = arith.constant 0 : i32
    %c0_i32_1 = arith.constant 0 : i32
    %c0_i32_2 = arith.constant 0 : i32
    return %arg0, %c0_i32, %c0_i32_0, %c0_i32_1 : i32, i32, i32, i32
  }
}

</mosaic_0001>

<llo_original>
// kernel: tpu_custom_call.1
$region0: #{tpu_custom_call.1}
  #allocation0 [shape = 'u32[]', space=smem, size = 0x4, offset = 0x4, fixed_abs, tag = 'smem constant byte address 0x4 - core index']
  #allocation1 [shape = 'u32[144,128]{1,0:T(1,128)}', space=vmem, size = 0x12000, scoped, tag = 'internal scratch']
  #allocation2 [shape = 'f32[16,16]{1,0:T(8,128)}', space=vmem, size = 0x2000, scoped, tag = 'scratch operand']
  #allocation3 [shape = 'f32[16,16]{1,0:T(8,128)}', space=vmem, size = 0x2000, scoped, tag = 'scratch operand']
  %s0 = inlined_call_operand.hbm [shape: f32[98], index: 0, kind: input, shape index: {}]
  %s1 = inlined_call_operand.hbm [shape: f32[2,4,16,16], index: 1, kind: input, shape index: {}]
  %s2 = inlined_call_operand.hbm [shape: f32[2,4,16,16], index: 2, kind: output, shape index: {}]
  %s3 = sld [smem:[#allocation0]]
  $region56: #{tpu_custom_call.1} parent=0
    _
  %s5 = ssub.s32 1, %s3
  %s6 = scalar_select 0, %s5, %s3
  $region1: #{tpu_custom_call.1} parent=0
    #allocation4 [shape = 'u8[512]{0}', space=smem, size = 0x200, scoped, tag = 'input window, operand 0, single buffered']
    #allocation5 [shape = 's32[2]{0}', space=sflag, size = 0x8, scoped, tag = 'scoped memory for tpu_custom_call.1']
    #allocation6 [shape = 's32[2]{0}', space=sflag, size = 0x8, scoped, tag = 'scoped memory for tpu_custom_call.1']
    #allocation7 [shape = 's32[2]{0}', space=sflag, size = 0x8, scoped, tag = 'scoped memory for tpu_custom_call.1']
    #allocation8 [shape = 'u8[65536]{0}', space=vmem, size = 0x10000, scoped, tag = 'input window, operand 1']
    #allocation9 [shape = 'u8[65536]{0}', space=vmem, size = 0x10000, scoped, tag = 'output window, operand 0']
    %7 = vsyncpa [#allocation7], 0
    %8 = vsyncpa [#allocation5], 0
    %s9 = scalar_lea.sflag [#allocation5], 1
    %10 = vsyncpa %s9, 0
    %11 = vsyncpa [#allocation6], 0
    %s12 = scalar_lea.sflag [#allocation6], 1
    %13 = vsyncpa %s12, 0
    loop: start=0, step=1, limit=4
    $region2: #{tpu_custom_call.1} parent=1 // loop_pre_header
      _
    $region3: #{tpu_custom_call.1} parent=1 // loop_header
      %s15 = sphi 0, %s19
      %p16 = scmp.ge.s32.totalorder %s15, 4
      %s23 = sphi 0, %s23
      %s25 = sphi 0, %s23
      %s26 = sphi 0, %s25
      %s40 = sphi 0, %s26
      %s46 = sphi 0, %s48
      %s49 = sphi 0, %s46
      %s50 = sphi 0, %s49
      %s66 = sphi 0, %s50
      %s72 = sphi 0, %s74
      %s75 = sphi 0, %s72
      %s76 = sphi 0, %s75
      %s92 = sphi 0, %s76
    $region4: #{tpu_custom_call.1} parent=1 // loop_header_branch
      %18 = sbr.rel (%p16) target = $region8
    $region5: #{tpu_custom_call.1} parent=1 // loop_body
      %s20 = ssub.s32 %s15, 1
      %s21 = ssub.s32 %s15, 2
      %s22 = sadd.s32 %s15, 1
      %s24 = sadd.s32 %s23, 1
      %p27 = scmp.eq.s32.totalorder %s15, 1
      %p28 = scmp.ne.s32.totalorder %s23, %s25
      %p29 = scmp.eq.s32.totalorder %s15, 0
      %p30 = por %p28, %p29
      %p31 = scmp.ne.s32.totalorder %s23, %s25
      %p32 = scmp.eq.s32.totalorder %s20, 1
      %p33 = por %p31, %p32
      %p34 = scmp.ne.s32.totalorder %s25, %s26
      %p35 = scmp.eq.s32.totalorder %s20, 0
      %p36 = por %p34, %p35
      %p37 = scmp.ne.s32.totalorder %s25, %s26
      %p38 = scmp.eq.s32.totalorder %s21, 1
      %p39 = por %p37, %p38
      %p41 = scmp.ne.s32.totalorder %s26, %s40
      %p42 = scmp.eq.s32.totalorder %s21, 0
      %p43 = por %p41, %p42
      %s44 = ssub.s32 %s15, %s22
      %p45 = scmp.eq.s32.totalorder %s44, 0
      %s47 = sadd.s32 %s46, 1
      %s48 = scalar_select %p45, %s46, %s47
      %p51 = pneg %p45
      %p52 = scmp.eq.s32.totalorder %s15, 1
      %p53 = por %p51, %p52
      %p54 = scmp.ne.s32.totalorder %s46, %s49
      %p55 = scmp.eq.s32.totalorder %s15, 0
      %p56 = por %p54, %p55
      %p57 = scmp.ne.s32.totalorder %s46, %s49
      %p58 = scmp.eq.s32.totalorder %s20, 1
      %p59 = por %p57, %p58
      %p60 = scmp.ne.s32.totalorder %s49, %s50
      %p61 = scmp.eq.s32.totalorder %s20, 0
      %p62 = por %p60, %p61
      %p63 = scmp.ne.s32.totalorder %s49, %s50
      %p64 = scmp.eq.s32.totalorder %s21, 1
      %p65 = por %p63, %p64
      %p67 = scmp.ne.s32.totalorder %s50, %s66
      %p68 = scmp.eq.s32.totalorder %s21, 0
      %p69 = por %p67, %p68
      %s70 = ssub.s32 %s15, %s22
      %p71 = scmp.eq.s32.totalorder %s70, 0
      %s73 = sadd.s32 %s72, 1
      %s74 = scalar_select %p71, %s72, %s73
      %p77 = pneg %p71
      %p78 = scmp.eq.s32.totalorder %s15, 1
      %p79 = por %p77, %p78
      %p80 = scmp.ne.s32.totalorder %s72, %s75
      %p81 = scmp.eq.s32.totalorder %s15, 0
      %p82 = por %p80, %p81
      %p83 = scmp.ne.s32.totalorder %s72, %s75
      %p84 = scmp.eq.s32.totalorder %s20, 1
      %p85 = por %p83, %p84
      %p86 = scmp.ne.s32.totalorder %s75, %s76
      %p87 = scmp.eq.s32.totalorder %s20, 0
      %p88 = por %p86, %p87
      %p89 = scmp.ne.s32.totalorder %s75, %s76
      %p90 = scmp.eq.s32.totalorder %s21, 1
      %p91 = por %p89, %p90
      %p93 = scmp.ne.s32.totalorder %s76, %s92
      %p94 = scmp.eq.s32.totalorder %s21, 0
      %p95 = por %p93, %p94
      %p96 = scmp.le.s32.totalorder 1, %s15
      %p97 = scmp.lt.s32.totalorder %s15, 3
      %p98 = pnand %p96, %p97
      %p99 = pneg %p98
      // Predicated region
      $region9: #{tpu_custom_call.1} parent=5 // pred_check
        _
      $region10: #{tpu_custom_call.1} parent=5 // pred_check_branch
        %101 = sbr.rel (%p98) target = $region12
      $region11: #{tpu_custom_call.1} parent=5 // pred_region
        %s102 = ssub.s32 %s15, 1
        // Predicated region
        $region13: #{tpu_custom_call.1} parent=11 // pred_check
          %p103 = pneg %p36
        $region14: #{tpu_custom_call.1} parent=11 // pred_check_branch
          %105 = sbr.rel (%p103) target = $region16
        $region15: #{tpu_custom_call.1} parent=11 // pred_region
          %s107 = ssub.s32 16, 16
          %108 = vsyncadd [#allocation7], %s107
          %111 = dma.hbm_to_smem %s0, 16, [#allocation4], [#allocation7]
        $region16: #{tpu_custom_call.1} parent=11 // pred_fallthru
          _
      $region12: #{tpu_custom_call.1} parent=5 // pred_fallthru
        _
      %p112 = scmp.lt.s32.totalorder %s15, 2
      // Predicated region
      $region17: #{tpu_custom_call.1} parent=5 // pred_check
        %p113 = pneg %p112
      $region18: #{tpu_custom_call.1} parent=5 // pred_check_branch
        %115 = sbr.rel (%p113) target = $region20
      $region19: #{tpu_custom_call.1} parent=5 // pred_region
        // Predicated region
        $region21: #{tpu_custom_call.1} parent=19 // pred_check
          %p116 = pneg %p56
        $region22: #{tpu_custom_call.1} parent=19 // pred_check_branch
          %118 = sbr.rel (%p116) target = $region24
        $region23: #{tpu_custom_call.1} parent=19 // pred_region
          %s119 = sand.u32 %s46, 1
          %s120 = scalar_lea.sflag [#allocation5], %s119
          %s121 = sand.u32 %s46, 1
          %s122 = smul.addr %s121, 64
          %s123 = scalar_lea.vmem [#allocation8], %s122
          %s125 = ssub.s32 1024, 1024
          %126 = vsyncadd %s120, %s125
          %s127 = smul.addr %s15, 8
          %s128 = smul.addr %s127, 128
          %s129 = scalar_lea.hbm %s1, %s128
          %s130 = sshll.u32 %s123, 4
          %s131 = int_to_ptr.vmem [resolvable:$true] %s130
          %136 = dma.hbm_to_vmem [thread:$0]  %s129, 1024, %s131, %s120, 128, 128, 8
        $region24: #{tpu_custom_call.1} parent=19 // pred_fallthru
          _
      $region20: #{tpu_custom_call.1} parent=5 // pred_fallthru
        _
      %p137 = scmp.le.s32.totalorder 1, %s15
      %p138 = scmp.lt.s32.totalorder %s15, 3
      %p139 = pnand %p137, %p138
      %p140 = pneg %p139
      // Predicated region
      $region25: #{tpu_custom_call.1} parent=5 // pred_check
        _
      $region26: #{tpu_custom_call.1} parent=5 // pred_check_branch
        %142 = sbr.rel (%p139) target = $region28
      $region27: #{tpu_custom_call.1} parent=5 // pred_region
        %s143 = ssub.s32 %s15, 1
        // Predicated region
        $region29: #{tpu_custom_call.1} parent=27 // pred_check
          %p144 = pneg %p36
        $region30: #{tpu_custom_call.1} parent=27 // pred_check_branch
          %146 = sbr.rel (%p144) target = $region32
        $region31: #{tpu_custom_call.1} parent=27 // pred_region
          %147 = dma.done [#allocation7], 16
        $region32: #{tpu_custom_call.1} parent=27 // pred_fallthru
          _
        %s148 = sand.u32 %s49, 1
        %s149 = scalar_lea.sflag [#allocation5], %s148
        %s150 = sand.u32 %s49, 1
        %s151 = smul.addr %s150, 64
        %s152 = scalar_lea.vmem [#allocation8], %s151
        // Predicated region
        $region33: #{tpu_custom_call.1} parent=27 // pred_check
          %p153 = pneg %p62
        $region34: #{tpu_custom_call.1} parent=27 // pred_check_branch
          %155 = sbr.rel (%p153) target = $region36
        $region35: #{tpu_custom_call.1} parent=27 // pred_region
          %156 = dma.done %s149, 1024
        $region36: #{tpu_custom_call.1} parent=27 // pred_fallthru
          _
        %157 = sfence
        %p158 = pneg %p36
        %p159 = pneg %p33
        %s160 = sand.u32 %s49, 1
        %s161 = scalar_lea.sflag [#allocation5], %s160
        %s162 = sand.u32 %s49, 1
        %s163 = smul.addr %s162, 64
        %s164 = scalar_lea.vmem [#allocation8], %s163
        %p165 = pneg %p62
        %p166 = pneg %p59
        %p167 = pneg %p88
        %p168 = pneg %p85
        %s169 = sand.u32 %s75, 1
        %s170 = scalar_lea.sflag [#allocation6], %s169
        %s171 = sand.u32 %s75, 1
        %s172 = smul.addr %s171, 64
        %s173 = scalar_lea.vmem [#allocation9], %s172
        %vm174 = vcmask 130048
        %175 = vst.msk [vmem:[#allocation2] sm:$0xff] %vm174, -inf
        %176 = vst.msk [vmem:[#allocation2 + $0x8] sm:$0xff] %vm174, -inf
        %177 = vst.msk [vmem:[#allocation3] sm:$0xff] %vm174, 0.0
        %178 = vst.msk [vmem:[#allocation3 + $0x8] sm:$0xff] %vm174, 0.0
        loop: start=0, step=1, limit=4
        $region37: #{tpu_custom_call.1} parent=27 // loop_pre_header
          _
        $region38: #{tpu_custom_call.1} parent=27 // loop_header
          %s180 = sphi 0, %s184
          %p181 = scmp.ge.s32.totalorder %s180, 4
        $region39: #{tpu_custom_call.1} parent=27 // loop_header_branch
          %183 = sbr.rel (%p181) target = $region43
        $region40: #{tpu_custom_call.1} parent=27 // loop_body
          %s185 = smul.u32 %s180, 16
          %s186 = scalar_lea.vmem %s152, %s185 [#allocation8]
          %v187 = vld [vmem:[%s186] sm:$0xff]
          %v188 = vld [vmem:[%s186 + $0x8] sm:$0xff]
          %v189 = vld [vmem:[#allocation2] sm:$0xff]
          %v190 = vld [vmem:[#allocation2 + $0x8] sm:$0xff]
          %v191 = vmax.f32 %v189, %v187
          %v192 = vmax.f32 %v190, %v188
          %193 = vst.msk [vmem:[#allocation2] sm:$0xff] %vm174, %v191
          %194 = vst.msk [vmem:[#allocation2 + $0x8] sm:$0xff] %vm174, %v192
          %v195 = vld [vmem:[#allocation3] sm:$0xff]
          %v196 = vld [vmem:[#allocation3 + $0x8] sm:$0xff]
          %v197 = vadd.f32 %v195, %v187
          %v198 = vadd.f32 %v196, %v188
          %199 = vst.msk [vmem:[#allocation3] sm:$0xff] %vm174, %v197
          %200 = vst.msk [vmem:[#allocation3 + $0x8] sm:$0xff] %vm174, %v198
        $region41: #{tpu_custom_call.1} parent=27 // loop_footer
          %s184 = sadd.s32 1, %s180
        $region42: #{tpu_custom_call.1} parent=27 // loop_footer_branch
          %179 = sbr.rel target = $region38
        $region43: #{tpu_custom_call.1} parent=27 // loop_exit
          _
        %v201 = vld [vmem:[#allocation2] sm:$0xff]
        %v202 = vld [vmem:[#allocation2 + $0x8] sm:$0xff]
        %v203 = vld [vmem:[#allocation3] sm:$0xff]
        %v204 = vld [vmem:[#allocation3 + $0x8] sm:$0xff]
        %s205 = sld [smem:[#allocation4]]
        %s206 = sld [smem:[#allocation4 + $0x1]]
        %s207 = sld [smem:[#allocation4 + $0x2]]
        %s208 = sld [smem:[#allocation4 + $0x3]]
        %s209 = sld [smem:[#allocation4 + $0x4]]
        %s210 = sld [smem:[#allocation4 + $0x5]]
        %s211 = sld [smem:[#allocation4 + $0x6]]
        %s212 = sld [smem:[#allocation4 + $0x7]]
        %s213 = sld [smem:[#allocation4 + $0x8]]
        %s214 = sld [smem:[#allocation4 + $0x9]]
        %s215 = sld [smem:[#allocation4 + $0xa]]
        %s216 = sld [smem:[#allocation4 + $0xb]]
        %s217 = sld [smem:[#allocation4 + $0xc]]
        %s218 = sld [smem:[#allocation4 + $0xd]]
        %s219 = sld [smem:[#allocation4 + $0xe]]
        %s220 = sld [smem:[#allocation4 + $0xf]]
        %s221 = sld [smem:[#allocation4 + $0x10]]
        %s222 = sld [smem:[#allocation4 + $0x11]]
        %s223 = sld [smem:[#allocation4 + $0x12]]
        %s224 = sld [smem:[#allocation4 + $0x13]]
        %s225 = sld [smem:[#allocation4 + $0x14]]
        %s226 = sld [smem:[#allocation4 + $0x15]]
        %s227 = sld [smem:[#allocation4 + $0x16]]
        %s228 = sld [smem:[#allocation4 + $0x17]]
        %s229 = sld [smem:[#allocation4 + $0x18]]
        %s230 = sld [smem:[#allocation4 + $0x19]]
        %s231 = sld [smem:[#allocation4 + $0x1a]]
        %s232 = sld [smem:[#allocation4 + $0x1b]]
        %s233 = sld [smem:[#allocation4 + $0x1c]]
        %s234 = sld [smem:[#allocation4 + $0x1d]]
        %s235 = sld [smem:[#allocation4 + $0x1e]]
        %s236 = sld [smem:[#allocation4 + $0x1f]]
        %s237 = sld [smem:[#allocation4 + $0x20]]
        %s238 = sld [smem:[#allocation4 + $0x21]]
        %s239 = sld [smem:[#allocation4 + $0x22]]
        %s240 = sld [smem:[#allocation4 + $0x23]]
        %s241 = sld [smem:[#allocation4 + $0x24]]
        %s242 = sld [smem:[#allocation4 + $0x25]]
        %s243 = sld [smem:[#allocation4 + $0x26]]
        %s244 = sld [smem:[#allocation4 + $0x27]]
        %s245 = sld [smem:[#allocation4 + $0x28]]
        %s246 = sld [smem:[#allocation4 + $0x29]]
        %s247 = sld [smem:[#allocation4 + $0x2a]]
        %s248 = sld [smem:[#allocation4 + $0x2b]]
        %s249 = sld [smem:[#allocation4 + $0x2c]]
        %s250 = sld [smem:[#allocation4 + $0x2d]]
        %s251 = sld [smem:[#allocation4 + $0x2e]]
        %s252 = sld [smem:[#allocation4 + $0x2f]]
        %s253 = sld [smem:[#allocation4 + $0x30]]
        %s254 = sld [smem:[#allocation4 + $0x31]]
        %s255 = sld [smem:[#allocation4 + $0x32]]
        %s256 = sld [smem:[#allocation4 + $0x33]]
        %s257 = sld [smem:[#allocation4 + $0x34]]
        %s258 = sld [smem:[#allocation4 + $0x35]]
        %s259 = sld [smem:[#allocation4 + $0x36]]
        %s260 = sld [smem:[#allocation4 + $0x37]]
        %s261 = sld [smem:[#allocation4 + $0x38]]
        %s262 = sld [smem:[#allocation4 + $0x39]]
        %s263 = sld [smem:[#allocation4 + $0x3a]]
        %s264 = sld [smem:[#allocation4 + $0x3b]]
        %s265 = sld [smem:[#allocation4 + $0x3c]]
        %s266 = sld [smem:[#allocation4 + $0x3d]]
        %s267 = sld [smem:[#allocation4 + $0x3e]]
        %s268 = sld [smem:[#allocation4 + $0x3f]]
        %s269 = sld [smem:[#allocation4 + $0x40]]
        %s270 = sld [smem:[#allocation4 + $0x41]]
        %s271 = sld [smem:[#allocation4 + $0x42]]
        %s272 = sld [smem:[#allocation4 + $0x43]]
        %s273 = sld [smem:[#allocation4 + $0x44]]
        %s274 = sld [smem:[#allocation4 + $0x45]]
        %s275 = sld [smem:[#allocation4 + $0x46]]
        %s276 = sld [smem:[#allocation4 + $0x47]]
        %s277 = sld [smem:[#allocation4 + $0x48]]
        %s278 = sld [smem:[#allocation4 + $0x49]]
        %s279 = sld [smem:[#allocation4 + $0x4a]]
        %s280 = sld [smem:[#allocation4 + $0x4b]]
        %s281 = sld [smem:[#allocation4 + $0x4c]]
        %s282 = sld [smem:[#allocation4 + $0x4d]]
        %s283 = sld [smem:[#allocation4 + $0x4e]]
        %s284 = sld [smem:[#allocation4 + $0x4f]]
        %s285 = sld [smem:[#allocation4 + $0x50]]
        %s286 = sld [smem:[#allocation4 + $0x51]]
        %s287 = sld [smem:[#allocation4 + $0x52]]
        %s288 = sld [smem:[#allocation4 + $0x53]]
        %s289 = sld [smem:[#allocation4 + $0x54]]
        %s290 = sld [smem:[#allocation4 + $0x55]]
        %s291 = sld [smem:[#allocation4 + $0x56]]
        %s292 = sld [smem:[#allocation4 + $0x57]]
        %s293 = sld [smem:[#allocation4 + $0x58]]
        %s294 = sld [smem:[#allocation4 + $0x59]]
        %s295 = sld [smem:[#allocation4 + $0x5a]]
        %s296 = sld [smem:[#allocation4 + $0x5b]]
        %s297 = sld [smem:[#allocation4 + $0x5c]]
        %s298 = sld [smem:[#allocation4 + $0x5d]]
        %s299 = sld [smem:[#allocation4 + $0x5e]]
        %s300 = sld [smem:[#allocation4 + $0x5f]]
        %s301 = sld [smem:[#allocation4 + $0x60]]
        %s302 = sld [smem:[#allocation4 + $0x61]]
        %v303 = vlaneseq
        %v304 = vshrl.u32 %v303, 7
        %v305 = vadd.s32 %v304, 8
        %v306 = vadd.s32 %v304, 16
        %v307 = vadd.s32 %v304, 24
        %vm308 = vcmp.ge.s32.totalorder %v304, 16
        %vm309 = vcmp.ge.s32.totalorder %v305, 16
        %vm310 = vcmp.ge.s32.totalorder %v306, 16
        %vm311 = vcmp.ge.s32.totalorder %v307, 16
        %v312 = vsub.s32 %v304, 16
        %v313 = vsub.s32 %v305, 16
        %v314 = vsub.s32 %v307, 16
        %v315 = vsel %vm308, %v312, %v304
        %v316 = vsel %vm309, %v313, %v305
        %v317 = vsel %vm310, %v304, %v306
        %v318 = vsel %vm311, %v314, %v307
        %vm319 = vcmp.lt.s32.totalorder %v304, 16
        %vm320 = vcmp.lt.s32.totalorder %v305, 16
        %vm321 = vcmp.lt.s32.totalorder %v306, 16
        %vm322 = vcmp.lt.s32.totalorder %v307, 16
        %v323 = vlaneseq
        %v324 = vand.u32 %v323, 127
        %v325 = vadd.s32 %v324, 4294967293
        %vm326 = vcmp.ge.s32.totalorder %v325, 0
        %vm327 = vcmp.lt.s32.totalorder %v325, 16
        %vm328 = vmand %vm326, %vm327
        %v329 = vsel %vm328, 1, 0
        %v330 = vcvt.s32.f32 %v329
        %v331 = vadd.s32 %v324, 4294967294
        %vm332 = vcmp.ge.s32.totalorder %v331, 0
        %vm333 = vcmp.lt.s32.totalorder %v331, 16
        %vm334 = vmand %vm332, %vm333
        %v335 = vsel %vm334, 1, 0
        %v336 = vcvt.s32.f32 %v335
        %v337 = vadd.s32 %v324, 4294967295
        %vm338 = vcmp.ge.s32.totalorder %v337, 0
        %vm339 = vcmp.lt.s32.totalorder %v337, 16
        %vm340 = vmand %vm338, %vm339
        %v341 = vsel %vm340, 1, 0
        %v342 = vcvt.s32.f32 %v341
        %vm343 = vcmp.ge.s32.totalorder %v324, 0
        %vm344 = vcmp.lt.s32.totalorder %v324, 16
        %vm345 = vmand %vm343, %vm344
        %v346 = vsel %vm345, 1, 0
        %v347 = vcvt.s32.f32 %v346
        %v348 = vadd.s32 %v324, 1
        %vm349 = vcmp.ge.s32.totalorder %v348, 0
        %vm350 = vcmp.lt.s32.totalorder %v348, 16
        %vm351 = vmand %vm349, %vm350
        %v352 = vsel %vm351, 1, 0
        %v353 = vcvt.s32.f32 %v352
        %v354 = vadd.s32 %v324, 2
        %vm355 = vcmp.ge.s32.totalorder %v354, 0
        %vm356 = vcmp.lt.s32.totalorder %v354, 16
        %vm357 = vmand %vm355, %vm356
        %v358 = vsel %vm357, 1, 0
        %v359 = vcvt.s32.f32 %v358
        %v360 = vadd.s32 %v324, 3
        %vm361 = vcmp.ge.s32.totalorder %v360, 0
        %vm362 = vcmp.lt.s32.totalorder %v360, 16
        %vm363 = vmand %vm361, %vm362
        %v364 = vsel %vm363, 1, 0
        %v365 = vcvt.s32.f32 %v364
        %v366 = vadd.s32 %v315, 4294967293
        %v367 = vadd.s32 %v316, 4294967293
        %v368 = vadd.s32 %v317, 4294967293
        %v369 = vadd.s32 %v318, 4294967293
        %vm370 = vcmp.ge.s32.totalorder %v366, 0
        %vm371 = vcmp.ge.s32.totalorder %v367, 0
        %vm372 = vcmp.ge.s32.totalorder %v368, 0
        %vm373 = vcmp.ge.s32.totalorder %v369, 0
        %vm374 = vcmp.lt.s32.totalorder %v366, 16
        %vm375 = vcmp.lt.s32.totalorder %v367, 16
        %vm376 = vcmp.lt.s32.totalorder %v368, 16
        %vm377 = vcmp.lt.s32.totalorder %v369, 16
        %vm378 = vmand %vm370, %vm374
        %vm379 = vmand %vm371, %vm375
        %vm380 = vmand %vm372, %vm376
        %vm381 = vmand %vm373, %vm377
        %v382 = vsel %vm378, 1, 0
        %v383 = vsel %vm379, 1, 0
        %v384 = vsel %vm380, 1, 0
        %v385 = vsel %vm381, 1, 0
        %v386 = vcvt.s32.f32 %v382
        %v387 = vcvt.s32.f32 %v383
        %v388 = vcvt.s32.f32 %v384
        %v389 = vcvt.s32.f32 %v385
        %v390 = vrot.slane %v201, 5
        %v391 = vrot.slane %v202, 5
        %v392 = vrot.slane %v203, 5
        %v393 = vrot.slane %v204, 5
        %vm394 = vcmp.lt.s32.totalorder %v304, 3
        %v395 = vsel %vm394, %v392, %v393
        %v396 = vsel %vm394, %v391, %v392
        %v397 = vsel %vm394, %v390, %v391
        %v398 = vsel %vm394, %v393, %v390
        %v399 = vmul.f32 %v398, %v386
        %v400 = vmul.f32 %v397, %v387
        %v401 = vmul.f32 %v396, %v388
        %v402 = vmul.f32 %v395, %v389
        %407 = vrot.lane.b32.xlu0 %v399, 115
        %v408 = vpop.permute.xlu0 %407
        %409 = vrot.lane.b32.xlu0 %v400, 115
        %v410 = vpop.permute.xlu0 %409
        %411 = vrot.lane.b32.xlu0 %v401, 115
        %v412 = vpop.permute.xlu0 %411
        %413 = vrot.lane.b32.xlu0 %v402, 115
        %v414 = vpop.permute.xlu0 %413
        %419 = vrot.lane.b32.xlu0 %v399, 3
        %v420 = vpop.permute.xlu0 %419
        %421 = vrot.lane.b32.xlu0 %v400, 3
        %v422 = vpop.permute.xlu0 %421
        %423 = vrot.lane.b32.xlu0 %v401, 3
        %v424 = vpop.permute.xlu0 %423
        %425 = vrot.lane.b32.xlu0 %v402, 3
        %v426 = vpop.permute.xlu0 %425
        %vm431 = vcmask 23552
        %v432 = vsel %vm431, %v408, %v420
        %v433 = vsel %vm431, %v410, %v422
        %v434 = vsel %vm431, %v412, %v424
        %v435 = vsel %vm431, %v414, %v426
        %v436 = vmul.f32 %v432, %v330
        %v437 = vmul.f32 %v433, %v330
        %v438 = vmul.f32 %v434, %v330
        %v439 = vmul.f32 %v435, %v330
        %v440 = vstv %s205
        %v441 = vstv %s254
        %v442 = vsel %vm319, %v440, %v441
        %v443 = vsel %vm320, %v440, %v441
        %v444 = vsel %vm321, %v440, %v441
        %v445 = vsel %vm322, %v440, %v441
        %v446 = vmul.f32 %v442, %v436
        %v447 = vmul.f32 %v443, %v437
        %v448 = vmul.f32 %v444, %v438
        %v449 = vmul.f32 %v445, %v439
        %v450 = vadd.f32 %v446, 0.0
        %v451 = vadd.f32 %v447, 0.0
        %v452 = vadd.f32 %v448, 0.0
        %v453 = vadd.f32 %v449, 0.0
        %454 = vrot.lane.b32.xlu0 %v399, 114
        %v455 = vpop.permute.xlu0 %454
        %456 = vrot.lane.b32.xlu0 %v400, 114
        %v457 = vpop.permute.xlu0 %456
        %458 = vrot.lane.b32.xlu0 %v401, 114
        %v459 = vpop.permute.xlu0 %458
        %460 = vrot.lane.b32.xlu0 %v402, 114
        %v461 = vpop.permute.xlu0 %460
        %466 = vrot.lane.b32.xlu0 %v399, 2
        %v467 = vpop.permute.xlu0 %466
        %468 = vrot.lane.b32.xlu0 %v400, 2
        %v469 = vpop.permute.xlu0 %468
        %470 = vrot.lane.b32.xlu0 %v401, 2
        %v471 = vpop.permute.xlu0 %470
        %472 = vrot.lane.b32.xlu0 %v402, 2
        %v473 = vpop.permute.xlu0 %472
        %vm478 = vcmask 15360
        %v479 = vsel %vm478, %v455, %v467
        %v480 = vsel %vm478, %v457, %v469
        %v481 = vsel %vm478, %v459, %v471
        %v482 = vsel %vm478, %v461, %v473
        %v483 = vmul.f32 %v479, %v336
        %v484 = vmul.f32 %v480, %v336
        %v485 = vmul.f32 %v481, %v336
        %v486 = vmul.f32 %v482, %v336
        %v487 = vstv %s206
        %v488 = vstv %s255
        %v489 = vsel %vm319, %v487, %v488
        %v490 = vsel %vm320, %v487, %v488
        %v491 = vsel %vm321, %v487, %v488
        %v492 = vsel %vm322, %v487, %v488
        %v493 = vmul.f32 %v489, %v483
        %v494 = vmul.f32 %v490, %v484
        %v495 = vmul.f32 %v491, %v485
        %v496 = vmul.f32 %v492, %v486
        %v497 = vadd.f32 %v493, 0.0
        %v498 = vadd.f32 %v494, 0.0
        %v499 = vadd.f32 %v495, 0.0
        %v500 = vadd.f32 %v496, 0.0
        %501 = vrot.lane.b32.xlu0 %v399, 113
        %v502 = vpop.permute.xlu0 %501
        %503 = vrot.lane.b32.xlu0 %v400, 113
        %v504 = vpop.permute.xlu0 %503
        %505 = vrot.lane.b32.xlu0 %v401, 113
        %v506 = vpop.permute.xlu0 %505
        %507 = vrot.lane.b32.xlu0 %v402, 113
        %v508 = vpop.permute.xlu0 %507
        %513 = vrot.lane.b32.xlu0 %v399, 1
        %v514 = vpop.permute.xlu0 %513
        %515 = vrot.lane.b32.xlu0 %v400, 1
        %v516 = vpop.permute.xlu0 %515
        %517 = vrot.lane.b32.xlu0 %v401, 1
        %v518 = vpop.permute.xlu0 %517
        %519 = vrot.lane.b32.xlu0 %v402, 1
        %v520 = vpop.permute.xlu0 %519
        %vm525 = vcmask 7168
        %v526 = vsel %vm525, %v502, %v514
        %v527 = vsel %vm525, %v504, %v516
        %v528 = vsel %vm525, %v506, %v518
        %v529 = vsel %vm525, %v508, %v520
        %v530 = vmul.f32 %v526, %v342
        %v531 = vmul.f32 %v527, %v342
        %v532 = vmul.f32 %v528, %v342
        %v533 = vmul.f32 %v529, %v342
        %v534 = vstv %s207
        %v535 = vstv %s256
        %v536 = vsel %vm319, %v534, %v535
        %v537 = vsel %vm320, %v534, %v535
        %v538 = vsel %vm321, %v534, %v535
        %v539 = vsel %vm322, %v534, %v535
        %v540 = vmul.f32 %v536, %v530
        %v541 = vmul.f32 %v537, %v531
        %v542 = vmul.f32 %v538, %v532
        %v543 = vmul.f32 %v539, %v533
        %v544 = vadd.f32 %v450, %v540
        %v545 = vadd.f32 %v451, %v541
        %v546 = vadd.f32 %v452, %v542
        %v547 = vadd.f32 %v453, %v543
        %v548 = vmul.f32 %v399, %v347
        %v549 = vmul.f32 %v400, %v347
        %v550 = vmul.f32 %v401, %v347
        %v551 = vmul.f32 %v402, %v347
        %v552 = vstv %s208
        %v553 = vstv %s257
        %v554 = vsel %vm319, %v552, %v553
        %v555 = vsel %vm320, %v552, %v553
        %v556 = vsel %vm321, %v552, %v553
        %v557 = vsel %vm322, %v552, %v553
        %v558 = vmul.f32 %v554, %v548
        %v559 = vmul.f32 %v555, %v549
        %v560 = vmul.f32 %v556, %v550
        %v561 = vmul.f32 %v557, %v551
        %v562 = vadd.f32 %v497, %v558
        %v563 = vadd.f32 %v498, %v559
        %v564 = vadd.f32 %v499, %v560
        %v565 = vadd.f32 %v500, %v561
        %566 = vrot.lane.b32.xlu0 %v399, 127
        %v567 = vpop.permute.xlu0 %566
        %568 = vrot.lane.b32.xlu0 %v400, 127
        %v569 = vpop.permute.xlu0 %568
        %570 = vrot.lane.b32.xlu0 %v401, 127
        %v571 = vpop.permute.xlu0 %570
        %572 = vrot.lane.b32.xlu0 %v402, 127
        %v573 = vpop.permute.xlu0 %572
        %578 = vrot.lane.b32.xlu0 %v399, 15
        %v579 = vpop.permute.xlu0 %578
        %580 = vrot.lane.b32.xlu0 %v400, 15
        %v581 = vpop.permute.xlu0 %580
        %582 = vrot.lane.b32.xlu0 %v401, 15
        %v583 = vpop.permute.xlu0 %582
        %584 = vrot.lane.b32.xlu0 %v402, 15
        %v585 = vpop.permute.xlu0 %584
        %vm590 = vcmask 121856
        %v591 = vsel %vm590, %v567, %v579
        %v592 = vsel %vm590, %v569, %v581
        %v593 = vsel %vm590, %v571, %v583
        %v594 = vsel %vm590, %v573, %v585
        %v595 = vmul.f32 %v591, %v353
        %v596 = vmul.f32 %v592, %v353
        %v597 = vmul.f32 %v593, %v353
        %v598 = vmul.f32 %v594, %v353
        %v599 = vstv %s209
        %v600 = vstv %s258
        %v601 = vsel %vm319, %v599, %v600
        %v602 = vsel %vm320, %v599, %v600
        %v603 = vsel %vm321, %v599, %v600
        %v604 = vsel %vm322, %v599, %v600
        %v605 = vmul.f32 %v601, %v595
        %v606 = vmul.f32 %v602, %v596
        %v607 = vmul.f32 %v603, %v597
        %v608 = vmul.f32 %v604, %v598
        %v609 = vadd.f32 %v544, %v605
        %v610 = vadd.f32 %v545, %v606
        %v611 = vadd.f32 %v546, %v607
        %v612 = vadd.f32 %v547, %v608
        %613 = vrot.lane.b32.xlu0 %v399, 126
        %v614 = vpop.permute.xlu0 %613
        %615 = vrot.lane.b32.xlu0 %v400, 126
        %v616 = vpop.permute.xlu0 %615
        %617 = vrot.lane.b32.xlu0 %v401, 126
        %v618 = vpop.permute.xlu0 %617
        %619 = vrot.lane.b32.xlu0 %v402, 126
        %v620 = vpop.permute.xlu0 %619
        %625 = vrot.lane.b32.xlu0 %v399, 14
        %v626 = vpop.permute.xlu0 %625
        %627 = vrot.lane.b32.xlu0 %v400, 14
        %v628 = vpop.permute.xlu0 %627
        %629 = vrot.lane.b32.xlu0 %v401, 14
        %v630 = vpop.permute.xlu0 %629
        %631 = vrot.lane.b32.xlu0 %v402, 14
        %v632 = vpop.permute.xlu0 %631
        %vm637 = vcmask 113664
        %v638 = vsel %vm637, %v614, %v626
        %v639 = vsel %vm637, %v616, %v628
        %v640 = vsel %vm637, %v618, %v630
        %v641 = vsel %vm637, %v620, %v632
        %v642 = vmul.f32 %v638, %v359
        %v643 = vmul.f32 %v639, %v359
        %v644 = vmul.f32 %v640, %v359
        %v645 = vmul.f32 %v641, %v359
        %v646 = vstv %s210
        %v647 = vstv %s259
        %v648 = vsel %vm319, %v646, %v647
        %v649 = vsel %vm320, %v646, %v647
        %v650 = vsel %vm321, %v646, %v647
        %v651 = vsel %vm322, %v646, %v647
        %v652 = vmul.f32 %v648, %v642
        %v653 = vmul.f32 %v649, %v643
        %v654 = vmul.f32 %v650, %v644
        %v655 = vmul.f32 %v651, %v645
        %v656 = vadd.f32 %v562, %v652
        %v657 = vadd.f32 %v563, %v653
        %v658 = vadd.f32 %v564, %v654
        %v659 = vadd.f32 %v565, %v655
        %660 = vrot.lane.b32.xlu0 %v399, 125
        %v661 = vpop.permute.xlu0 %660
        %662 = vrot.lane.b32.xlu0 %v400, 125
        %v663 = vpop.permute.xlu0 %662
        %664 = vrot.lane.b32.xlu0 %v401, 125
        %v665 = vpop.permute.xlu0 %664
        %666 = vrot.lane.b32.xlu0 %v402, 125
        %v667 = vpop.permute.xlu0 %666
        %672 = vrot.lane.b32.xlu0 %v399, 13
        %v673 = vpop.permute.xlu0 %672
        %674 = vrot.lane.b32.xlu0 %v400, 13
        %v675 = vpop.permute.xlu0 %674
        %676 = vrot.lane.b32.xlu0 %v401, 13
        %v677 = vpop.permute.xlu0 %676
        %678 = vrot.lane.b32.xlu0 %v402, 13
        %v679 = vpop.permute.xlu0 %678
        %vm684 = vcmask 105472
        %v685 = vsel %vm684, %v661, %v673
        %v686 = vsel %vm684, %v663, %v675
        %v687 = vsel %vm684, %v665, %v677
        %v688 = vsel %vm684, %v667, %v679
        %v689 = vmul.f32 %v685, %v365
        %v690 = vmul.f32 %v686, %v365
        %v691 = vmul.f32 %v687, %v365
        %v692 = vmul.f32 %v688, %v365
        %v693 = vstv %s211
        %v694 = vstv %s260
        %v695 = vsel %vm319, %v693, %v694
        %v696 = vsel %vm320, %v693, %v694
        %v697 = vsel %vm321, %v693, %v694
        %v698 = vsel %vm322, %v693, %v694
        %v699 = vmul.f32 %v695, %v689
        %v700 = vmul.f32 %v696, %v690
        %v701 = vmul.f32 %v697, %v691
        %v702 = vmul.f32 %v698, %v692
        %v703 = vadd.f32 %v609, %v699
        %v704 = vadd.f32 %v610, %v700
        %v705 = vadd.f32 %v611, %v701
        %v706 = vadd.f32 %v612, %v702
        %v707 = vadd.s32 %v315, 4294967294
        %v708 = vadd.s32 %v316, 4294967294
        %v709 = vadd.s32 %v317, 4294967294
        %v710 = vadd.s32 %v318, 4294967294
        %vm711 = vcmp.ge.s32.totalorder %v707, 0
        %vm712 = vcmp.ge.s32.totalorder %v708, 0
        %vm713 = vcmp.ge.s32.totalorder %v709, 0
        %vm714 = vcmp.ge.s32.totalorder %v710, 0
        %vm715 = vcmp.lt.s32.totalorder %v707, 16
        %vm716 = vcmp.lt.s32.totalorder %v708, 16
        %vm717 = vcmp.lt.s32.totalorder %v709, 16
        %vm718 = vcmp.lt.s32.totalorder %v710, 16
        %vm719 = vmand %vm711, %vm715
        %vm720 = vmand %vm712, %vm716
        %vm721 = vmand %vm713, %vm717
        %vm722 = vmand %vm714, %vm718
        %v723 = vsel %vm719, 1, 0
        %v724 = vsel %vm720, 1, 0
        %v725 = vsel %vm721, 1, 0
        %v726 = vsel %vm722, 1, 0
        %v727 = vcvt.s32.f32 %v723
        %v728 = vcvt.s32.f32 %v724
        %v729 = vcvt.s32.f32 %v725
        %v730 = vcvt.s32.f32 %v726
        %v731 = vrot.slane %v201, 6
        %v732 = vrot.slane %v202, 6
        %v733 = vrot.slane %v203, 6
        %v734 = vrot.slane %v204, 6
        %vm735 = vcmp.lt.s32.totalorder %v304, 2
        %v736 = vsel %vm735, %v733, %v734
        %v737 = vsel %vm735, %v732, %v733
        %v738 = vsel %vm735, %v731, %v732
        %v739 = vsel %vm735, %v734, %v731
        %v740 = vmul.f32 %v739, %v727
        %v741 = vmul.f32 %v738, %v728
        %v742 = vmul.f32 %v737, %v729
        %v743 = vmul.f32 %v736, %v730
        %748 = vrot.lane.b32.xlu0 %v740, 115
        %v749 = vpop.permute.xlu0 %748
        %750 = vrot.lane.b32.xlu0 %v741, 115
        %v751 = vpop.permute.xlu0 %750
        %752 = vrot.lane.b32.xlu0 %v742, 115
        %v753 = vpop.permute.xlu0 %752
        %754 = vrot.lane.b32.xlu0 %v743, 115
        %v755 = vpop.permute.xlu0 %754
        %760 = vrot.lane.b32.xlu0 %v740, 3
        %v761 = vpop.permute.xlu0 %760
        %762 = vrot.lane.b32.xlu0 %v741, 3
        %v763 = vpop.permute.xlu0 %762
        %764 = vrot.lane.b32.xlu0 %v742, 3
        %v765 = vpop.permute.xlu0 %764
        %766 = vrot.lane.b32.xlu0 %v743, 3
        %v767 = vpop.permute.xlu0 %766
        %v772 = vsel %vm431, %v749, %v761
        %v773 = vsel %vm431, %v751, %v763
        %v774 = vsel %vm431, %v753, %v765
        %v775 = vsel %vm431, %v755, %v767
        %v776 = vmul.f32 %v772, %v330
        %v777 = vmul.f32 %v773, %v330
        %v778 = vmul.f32 %v774, %v330
        %v779 = vmul.f32 %v775, %v330
        %v780 = vstv %s212
        %v781 = vstv %s261
        %v782 = vsel %vm319, %v780, %v781
        %v783 = vsel %vm320, %v780, %v781
        %v784 = vsel %vm321, %v780, %v781
        %v785 = vsel %vm322, %v780, %v781
        %v786 = vmul.f32 %v782, %v776
        %v787 = vmul.f32 %v783, %v777
        %v788 = vmul.f32 %v784, %v778
        %v789 = vmul.f32 %v785, %v779
        %v790 = vadd.f32 %v656, %v786
        %v791 = vadd.f32 %v657, %v787
        %v792 = vadd.f32 %v658, %v788
        %v793 = vadd.f32 %v659, %v789
        %794 = vrot.lane.b32.xlu0 %v740, 114
        %v795 = vpop.permute.xlu0 %794
        %796 = vrot.lane.b32.xlu0 %v741, 114
        %v797 = vpop.permute.xlu0 %796
        %798 = vrot.lane.b32.xlu0 %v742, 114
        %v799 = vpop.permute.xlu0 %798
        %800 = vrot.lane.b32.xlu0 %v743, 114
        %v801 = vpop.permute.xlu0 %800
        %806 = vrot.lane.b32.xlu0 %v740, 2
        %v807 = vpop.permute.xlu0 %806
        %808 = vrot.lane.b32.xlu0 %v741, 2
        %v809 = vpop.permute.xlu0 %808
        %810 = vrot.lane.b32.xlu0 %v742, 2
        %v811 = vpop.permute.xlu0 %810
        %812 = vrot.lane.b32.xlu0 %v743, 2
        %v813 = vpop.permute.xlu0 %812
        %v818 = vsel %vm478, %v795, %v807
        %v819 = vsel %vm478, %v797, %v809
        %v820 = vsel %vm478, %v799, %v811
        %v821 = vsel %vm478, %v801, %v813
        %v822 = vmul.f32 %v818, %v336
        %v823 = vmul.f32 %v819, %v336
        %v824 = vmul.f32 %v820, %v336
        %v825 = vmul.f32 %v821, %v336
        %v826 = vstv %s213
        %v827 = vstv %s262
        %v828 = vsel %vm319, %v826, %v827
        %v829 = vsel %vm320, %v826, %v827
        %v830 = vsel %vm321, %v826, %v827
        %v831 = vsel %vm322, %v826, %v827
        %v832 = vmul.f32 %v828, %v822
        %v833 = vmul.f32 %v829, %v823
        %v834 = vmul.f32 %v830, %v824
        %v835 = vmul.f32 %v831, %v825
        %v836 = vadd.f32 %v703, %v832
        %v837 = vadd.f32 %v704, %v833
        %v838 = vadd.f32 %v705, %v834
        %v839 = vadd.f32 %v706, %v835
        %840 = vrot.lane.b32.xlu0 %v740, 113
        %v841 = vpop.permute.xlu0 %840
        %842 = vrot.lane.b32.xlu0 %v741, 113
        %v843 = vpop.permute.xlu0 %842
        %844 = vrot.lane.b32.xlu0 %v742, 113
        %v845 = vpop.permute.xlu0 %844
        %846 = vrot.lane.b32.xlu0 %v743, 113
        %v847 = vpop.permute.xlu0 %846
        %852 = vrot.lane.b32.xlu0 %v740, 1
        %v853 = vpop.permute.xlu0 %852
        %854 = vrot.lane.b32.xlu0 %v741, 1
        %v855 = vpop.permute.xlu0 %854
        %856 = vrot.lane.b32.xlu0 %v742, 1
        %v857 = vpop.permute.xlu0 %856
        %858 = vrot.lane.b32.xlu0 %v743, 1
        %v859 = vpop.permute.xlu0 %858
        %v864 = vsel %vm525, %v841, %v853
        %v865 = vsel %vm525, %v843, %v855
        %v866 = vsel %vm525, %v845, %v857
        %v867 = vsel %vm525, %v847, %v859
        %v868 = vmul.f32 %v864, %v342
        %v869 = vmul.f32 %v865, %v342
        %v870 = vmul.f32 %v866, %v342
        %v871 = vmul.f32 %v867, %v342
        %v872 = vstv %s214
        %v873 = vstv %s263
        %v874 = vsel %vm319, %v872, %v873
        %v875 = vsel %vm320, %v872, %v873
        %v876 = vsel %vm321, %v872, %v873
        %v877 = vsel %vm322, %v872, %v873
        %v878 = vmul.f32 %v874, %v868
        %v879 = vmul.f32 %v875, %v869
        %v880 = vmul.f32 %v876, %v870
        %v881 = vmul.f32 %v877, %v871
        %v882 = vadd.f32 %v790, %v878
        %v883 = vadd.f32 %v791, %v879
        %v884 = vadd.f32 %v792, %v880
        %v885 = vadd.f32 %v793, %v881
        %v886 = vmul.f32 %v740, %v347
        %v887 = vmul.f32 %v741, %v347
        %v888 = vmul.f32 %v742, %v347
        %v889 = vmul.f32 %v743, %v347
        %v890 = vstv %s215
        %v891 = vstv %s264
        %v892 = vsel %vm319, %v890, %v891
        %v893 = vsel %vm320, %v890, %v891
        %v894 = vsel %vm321, %v890, %v891
        %v895 = vsel %vm322, %v890, %v891
        %v896 = vmul.f32 %v892, %v886
        %v897 = vmul.f32 %v893, %v887
        %v898 = vmul.f32 %v894, %v888
        %v899 = vmul.f32 %v895, %v889
        %v900 = vadd.f32 %v836, %v896
        %v901 = vadd.f32 %v837, %v897
        %v902 = vadd.f32 %v838, %v898
        %v903 = vadd.f32 %v839, %v899
        %904 = vrot.lane.b32.xlu0 %v740, 127
        %v905 = vpop.permute.xlu0 %904
        %906 = vrot.lane.b32.xlu0 %v741, 127
        %v907 = vpop.permute.xlu0 %906
        %908 = vrot.lane.b32.xlu0 %v742, 127
        %v909 = vpop.permute.xlu0 %908
        %910 = vrot.lane.b32.xlu0 %v743, 127
        %v911 = vpop.permute.xlu0 %910
        %916 = vrot.lane.b32.xlu0 %v740, 15
        %v917 = vpop.permute.xlu0 %916
        %918 = vrot.lane.b32.xlu0 %v741, 15
        %v919 = vpop.permute.xlu0 %918
        %920 = vrot.lane.b32.xlu0 %v742, 15
        %v921 = vpop.permute.xlu0 %920
        %922 = vrot.lane.b32.xlu0 %v743, 15
        %v923 = vpop.permute.xlu0 %922
        %v928 = vsel %vm590, %v905, %v917
        %v929 = vsel %vm590, %v907, %v919
        %v930 = vsel %vm590, %v909, %v921
        %v931 = vsel %vm590, %v911, %v923
        %v932 = vmul.f32 %v928, %v353
        %v933 = vmul.f32 %v929, %v353
        %v934 = vmul.f32 %v930, %v353
        %v935 = vmul.f32 %v931, %v353
        %v936 = vstv %s216
        %v937 = vstv %s265
        %v938 = vsel %vm319, %v936, %v937
        %v939 = vsel %vm320, %v936, %v937
        %v940 = vsel %vm321, %v936, %v937
        %v941 = vsel %vm322, %v936, %v937
        %v942 = vmul.f32 %v938, %v932
        %v943 = vmul.f32 %v939, %v933
        %v944 = vmul.f32 %v940, %v934
        %v945 = vmul.f32 %v941, %v935
        %v946 = vadd.f32 %v882, %v942
        %v947 = vadd.f32 %v883, %v943
        %v948 = vadd.f32 %v884, %v944
        %v949 = vadd.f32 %v885, %v945
        %950 = vrot.lane.b32.xlu0 %v740, 126
        %v951 = vpop.permute.xlu0 %950
        %952 = vrot.lane.b32.xlu0 %v741, 126
        %v953 = vpop.permute.xlu0 %952
        %954 = vrot.lane.b32.xlu0 %v742, 126
        %v955 = vpop.permute.xlu0 %954
        %956 = vrot.lane.b32.xlu0 %v743, 126
        %v957 = vpop.permute.xlu0 %956
        %962 = vrot.lane.b32.xlu0 %v740, 14
        %v963 = vpop.permute.xlu0 %962
        %964 = vrot.lane.b32.xlu0 %v741, 14
        %v965 = vpop.permute.xlu0 %964
        %966 = vrot.lane.b32.xlu0 %v742, 14
        %v967 = vpop.permute.xlu0 %966
        %968 = vrot.lane.b32.xlu0 %v743, 14
        %v969 = vpop.permute.xlu0 %968
        %v974 = vsel %vm637, %v951, %v963
        %v975 = vsel %vm637, %v953, %v965
        %v976 = vsel %vm637, %v955, %v967
        %v977 = vsel %vm637, %v957, %v969
        %v978 = vmul.f32 %v974, %v359
        %v979 = vmul.f32 %v975, %v359
        %v980 = vmul.f32 %v976, %v359
        %v981 = vmul.f32 %v977, %v359
        %v982 = vstv %s217
        %v983 = vstv %s266
        %v984 = vsel %vm319, %v982, %v983
        %v985 = vsel %vm320, %v982, %v983
        %v986 = vsel %vm321, %v982, %v983
        %v987 = vsel %vm322, %v982, %v983
        %v988 = vmul.f32 %v984, %v978
        %v989 = vmul.f32 %v985, %v979
        %v990 = vmul.f32 %v986, %v980
        %v991 = vmul.f32 %v987, %v981
        %v992 = vadd.f32 %v900, %v988
        %v993 = vadd.f32 %v901, %v989
        %v994 = vadd.f32 %v902, %v990
        %v995 = vadd.f32 %v903, %v991
        %996 = vrot.lane.b32.xlu0 %v740, 125
        %v997 = vpop.permute.xlu0 %996
        %998 = vrot.lane.b32.xlu0 %v741, 125
        %v999 = vpop.permute.xlu0 %998
        %1000 = vrot.lane.b32.xlu0 %v742, 125
        %v1001 = vpop.permute.xlu0 %1000
        %1002 = vrot.lane.b32.xlu0 %v743, 125
        %v1003 = vpop.permute.xlu0 %1002
        %1008 = vrot.lane.b32.xlu0 %v740, 13
        %v1009 = vpop.permute.xlu0 %1008
        %1010 = vrot.lane.b32.xlu0 %v741, 13
        %v1011 = vpop.permute.xlu0 %1010
        %1012 = vrot.lane.b32.xlu0 %v742, 13
        %v1013 = vpop.permute.xlu0 %1012
        %1014 = vrot.lane.b32.xlu0 %v743, 13
        %v1015 = vpop.permute.xlu0 %1014
        %v1020 = vsel %vm684, %v997, %v1009
        %v1021 = vsel %vm684, %v999, %v1011
        %v1022 = vsel %vm684, %v1001, %v1013
        %v1023 = vsel %vm684, %v1003, %v1015
        %v1024 = vmul.f32 %v1020, %v365
        %v1025 = vmul.f32 %v1021, %v365
        %v1026 = vmul.f32 %v1022, %v365
        %v1027 = vmul.f32 %v1023, %v365
        %v1028 = vstv %s218
        %v1029 = vstv %s267
        %v1030 = vsel %vm319, %v1028, %v1029
        %v1031 = vsel %vm320, %v1028, %v1029
        %v1032 = vsel %vm321, %v1028, %v1029
        %v1033 = vsel %vm322, %v1028, %v1029
        %v1034 = vmul.f32 %v1030, %v1024
        %v1035 = vmul.f32 %v1031, %v1025
        %v1036 = vmul.f32 %v1032, %v1026
        %v1037 = vmul.f32 %v1033, %v1027
        %v1038 = vadd.f32 %v946, %v1034
        %v1039 = vadd.f32 %v947, %v1035
        %v1040 = vadd.f32 %v948, %v1036
        %v1041 = vadd.f32 %v949, %v1037
        %v1042 = vadd.s32 %v315, 4294967295
        %v1043 = vadd.s32 %v316, 4294967295
        %v1044 = vadd.s32 %v317, 4294967295
        %v1045 = vadd.s32 %v318, 4294967295
        %vm1046 = vcmp.ge.s32.totalorder %v1042, 0
        %vm1047 = vcmp.ge.s32.totalorder %v1043, 0
        %vm1048 = vcmp.ge.s32.totalorder %v1044, 0
        %vm1049 = vcmp.ge.s32.totalorder %v1045, 0
        %vm1050 = vcmp.lt.s32.totalorder %v1042, 16
        %vm1051 = vcmp.lt.s32.totalorder %v1043, 16
        %vm1052 = vcmp.lt.s32.totalorder %v1044, 16
        %vm1053 = vcmp.lt.s32.totalorder %v1045, 16
        %vm1054 = vmand %vm1046, %vm1050
        %vm1055 = vmand %vm1047, %vm1051
        %vm1056 = vmand %vm1048, %vm1052
        %vm1057 = vmand %vm1049, %vm1053
        %v1058 = vsel %vm1054, 1, 0
        %v1059 = vsel %vm1055, 1, 0
        %v1060 = vsel %vm1056, 1, 0
        %v1061 = vsel %vm1057, 1, 0
        %v1062 = vcvt.s32.f32 %v1058
        %v1063 = vcvt.s32.f32 %v1059
        %v1064 = vcvt.s32.f32 %v1060
        %v1065 = vcvt.s32.f32 %v1061
        %v1066 = vrot.slane %v201, 7
        %v1067 = vrot.slane %v202, 7
        %v1068 = vrot.slane %v203, 7
        %v1069 = vrot.slane %v204, 7
        %vm1070 = vcmp.lt.s32.totalorder %v304, 1
        %v1071 = vsel %vm1070, %v1068, %v1069
        %v1072 = vsel %vm1070, %v1067, %v1068
        %v1073 = vsel %vm1070, %v1066, %v1067
        %v1074 = vsel %vm1070, %v1069, %v1066
        %v1075 = vmul.f32 %v1074, %v1062
        %v1076 = vmul.f32 %v1073, %v1063
        %v1077 = vmul.f32 %v1072, %v1064
        %v1078 = vmul.f32 %v1071, %v1065
        %1083 = vrot.lane.b32.xlu0 %v1075, 115
        %v1084 = vpop.permute.xlu0 %1083
        %1085 = vrot.lane.b32.xlu0 %v1076, 115
        %v1086 = vpop.permute.xlu0 %1085
        %1087 = vrot.lane.b32.xlu0 %v1077, 115
        %v1088 = vpop.permute.xlu0 %1087
        %1089 = vrot.lane.b32.xlu0 %v1078, 115
        %v1090 = vpop.permute.xlu0 %1089
        %1095 = vrot.lane.b32.xlu0 %v1075, 3
        %v1096 = vpop.permute.xlu0 %1095
        %1097 = vrot.lane.b32.xlu0 %v1076, 3
        %v1098 = vpop.permute.xlu0 %1097
        %1099 = vrot.lane.b32.xlu0 %v1077, 3
        %v1100 = vpop.permute.xlu0 %1099
        %1101 = vrot.lane.b32.xlu0 %v1078, 3
        %v1102 = vpop.permute.xlu0 %1101
        %v1107 = vsel %vm431, %v1084, %v1096
        %v1108 = vsel %vm431, %v1086, %v1098
        %v1109 = vsel %vm431, %v1088, %v1100
        %v1110 = vsel %vm431, %v1090, %v1102
        %v1111 = vmul.f32 %v1107, %v330
        %v1112 = vmul.f32 %v1108, %v330
        %v1113 = vmul.f32 %v1109, %v330
        %v1114 = vmul.f32 %v1110, %v330
        %v1115 = vstv %s219
        %v1116 = vstv %s268
        %v1117 = vsel %vm319, %v1115, %v1116
        %v1118 = vsel %vm320, %v1115, %v1116
        %v1119 = vsel %vm321, %v1115, %v1116
        %v1120 = vsel %vm322, %v1115, %v1116
        %v1121 = vmul.f32 %v1117, %v1111
        %v1122 = vmul.f32 %v1118, %v1112
        %v1123 = vmul.f32 %v1119, %v1113
        %v1124 = vmul.f32 %v1120, %v1114
        %v1125 = vadd.f32 %v992, %v1121
        %v1126 = vadd.f32 %v993, %v1122
        %v1127 = vadd.f32 %v994, %v1123
        %v1128 = vadd.f32 %v995, %v1124
        %1129 = vrot.lane.b32.xlu0 %v1075, 114
        %v1130 = vpop.permute.xlu0 %1129
        %1131 = vrot.lane.b32.xlu0 %v1076, 114
        %v1132 = vpop.permute.xlu0 %1131
        %1133 = vrot.lane.b32.xlu0 %v1077, 114
        %v1134 = vpop.permute.xlu0 %1133
        %1135 = vrot.lane.b32.xlu0 %v1078, 114
        %v1136 = vpop.permute.xlu0 %1135
        %1141 = vrot.lane.b32.xlu0 %v1075, 2
        %v1142 = vpop.permute.xlu0 %1141
        %1143 = vrot.lane.b32.xlu0 %v1076, 2
        %v1144 = vpop.permute.xlu0 %1143
        %1145 = vrot.lane.b32.xlu0 %v1077, 2
        %v1146 = vpop.permute.xlu0 %1145
        %1147 = vrot.lane.b32.xlu0 %v1078, 2
        %v1148 = vpop.permute.xlu0 %1147
        %v1153 = vsel %vm478, %v1130, %v1142
        %v1154 = vsel %vm478, %v1132, %v1144
        %v1155 = vsel %vm478, %v1134, %v1146
        %v1156 = vsel %vm478, %v1136, %v1148
        %v1157 = vmul.f32 %v1153, %v336
        %v1158 = vmul.f32 %v1154, %v336
        %v1159 = vmul.f32 %v1155, %v336
        %v1160 = vmul.f32 %v1156, %v336
        %v1161 = vstv %s220
        %v1162 = vstv %s269
        %v1163 = vsel %vm319, %v1161, %v1162
        %v1164 = vsel %vm320, %v1161, %v1162
        %v1165 = vsel %vm321, %v1161, %v1162
        %v1166 = vsel %vm322, %v1161, %v1162
        %v1167 = vmul.f32 %v1163, %v1157
        %v1168 = vmul.f32 %v1164, %v1158
        %v1169 = vmul.f32 %v1165, %v1159
        %v1170 = vmul.f32 %v1166, %v1160
        %v1171 = vadd.f32 %v1038, %v1167
        %v1172 = vadd.f32 %v1039, %v1168
        %v1173 = vadd.f32 %v1040, %v1169
        %v1174 = vadd.f32 %v1041, %v1170
        %1175 = vrot.lane.b32.xlu0 %v1075, 113
        %v1176 = vpop.permute.xlu0 %1175
        %1177 = vrot.lane.b32.xlu0 %v1076, 113
        %v1178 = vpop.permute.xlu0 %1177
        %1179 = vrot.lane.b32.xlu0 %v1077, 113
        %v1180 = vpop.permute.xlu0 %1179
        %1181 = vrot.lane.b32.xlu0 %v1078, 113
        %v1182 = vpop.permute.xlu0 %1181
        %1187 = vrot.lane.b32.xlu0 %v1075, 1
        %v1188 = vpop.permute.xlu0 %1187
        %1189 = vrot.lane.b32.xlu0 %v1076, 1
        %v1190 = vpop.permute.xlu0 %1189
        %1191 = vrot.lane.b32.xlu0 %v1077, 1
        %v1192 = vpop.permute.xlu0 %1191
        %1193 = vrot.lane.b32.xlu0 %v1078, 1
        %v1194 = vpop.permute.xlu0 %1193
        %v1199 = vsel %vm525, %v1176, %v1188
        %v1200 = vsel %vm525, %v1178, %v1190
        %v1201 = vsel %vm525, %v1180, %v1192
        %v1202 = vsel %vm525, %v1182, %v1194
        %v1203 = vmul.f32 %v1199, %v342
        %v1204 = vmul.f32 %v1200, %v342
        %v1205 = vmul.f32 %v1201, %v342
        %v1206 = vmul.f32 %v1202, %v342
        %v1207 = vstv %s221
        %v1208 = vstv %s270
        %v1209 = vsel %vm319, %v1207, %v1208
        %v1210 = vsel %vm320, %v1207, %v1208
        %v1211 = vsel %vm321, %v1207, %v1208
        %v1212 = vsel %vm322, %v1207, %v1208
        %v1213 = vmul.f32 %v1209, %v1203
        %v1214 = vmul.f32 %v1210, %v1204
        %v1215 = vmul.f32 %v1211, %v1205
        %v1216 = vmul.f32 %v1212, %v1206
        %v1217 = vadd.f32 %v1125, %v1213
        %v1218 = vadd.f32 %v1126, %v1214
        %v1219 = vadd.f32 %v1127, %v1215
        %v1220 = vadd.f32 %v1128, %v1216
        %v1221 = vmul.f32 %v1075, %v347
        %v1222 = vmul.f32 %v1076, %v347
        %v1223 = vmul.f32 %v1077, %v347
        %v1224 = vmul.f32 %v1078, %v347
        %v1225 = vstv %s222
        %v1226 = vstv %s271
        %v1227 = vsel %vm319, %v1225, %v1226
        %v1228 = vsel %vm320, %v1225, %v1226
        %v1229 = vsel %vm321, %v1225, %v1226
        %v1230 = vsel %vm322, %v1225, %v1226
        %v1231 = vmul.f32 %v1227, %v1221
        %v1232 = vmul.f32 %v1228, %v1222
        %v1233 = vmul.f32 %v1229, %v1223
        %v1234 = vmul.f32 %v1230, %v1224
        %v1235 = vadd.f32 %v1171, %v1231
        %v1236 = vadd.f32 %v1172, %v1232
        %v1237 = vadd.f32 %v1173, %v1233
        %v1238 = vadd.f32 %v1174, %v1234
        %1239 = vrot.lane.b32.xlu0 %v1075, 127
        %v1240 = vpop.permute.xlu0 %1239
        %1241 = vrot.lane.b32.xlu0 %v1076, 127
        %v1242 = vpop.permute.xlu0 %1241
        %1243 = vrot.lane.b32.xlu0 %v1077, 127
        %v1244 = vpop.permute.xlu0 %1243
        %1245 = vrot.lane.b32.xlu0 %v1078, 127
        %v1246 = vpop.permute.xlu0 %1245
        %1251 = vrot.lane.b32.xlu0 %v1075, 15
        %v1252 = vpop.permute.xlu0 %1251
        %1253 = vrot.lane.b32.xlu0 %v1076, 15
        %v1254 = vpop.permute.xlu0 %1253
        %1255 = vrot.lane.b32.xlu0 %v1077, 15
        %v1256 = vpop.permute.xlu0 %1255
        %1257 = vrot.lane.b32.xlu0 %v1078, 15
        %v1258 = vpop.permute.xlu0 %1257
        %v1263 = vsel %vm590, %v1240, %v1252
        %v1264 = vsel %vm590, %v1242, %v1254
        %v1265 = vsel %vm590, %v1244, %v1256
        %v1266 = vsel %vm590, %v1246, %v1258
        %v1267 = vmul.f32 %v1263, %v353
        %v1268 = vmul.f32 %v1264, %v353
        %v1269 = vmul.f32 %v1265, %v353
        %v1270 = vmul.f32 %v1266, %v353
        %v1271 = vstv %s223
        %v1272 = vstv %s272
        %v1273 = vsel %vm319, %v1271, %v1272
        %v1274 = vsel %vm320, %v1271, %v1272
        %v1275 = vsel %vm321, %v1271, %v1272
        %v1276 = vsel %vm322, %v1271, %v1272
        %v1277 = vmul.f32 %v1273, %v1267
        %v1278 = vmul.f32 %v1274, %v1268
        %v1279 = vmul.f32 %v1275, %v1269
        %v1280 = vmul.f32 %v1276, %v1270
        %v1281 = vadd.f32 %v1217, %v1277
        %v1282 = vadd.f32 %v1218, %v1278
        %v1283 = vadd.f32 %v1219, %v1279
        %v1284 = vadd.f32 %v1220, %v1280
        %1285 = vrot.lane.b32.xlu0 %v1075, 126
        %v1286 = vpop.permute.xlu0 %1285
        %1287 = vrot.lane.b32.xlu0 %v1076, 126
        %v1288 = vpop.permute.xlu0 %1287
        %1289 = vrot.lane.b32.xlu0 %v1077, 126
        %v1290 = vpop.permute.xlu0 %1289
        %1291 = vrot.lane.b32.xlu0 %v1078, 126
        %v1292 = vpop.permute.xlu0 %1291
        %1297 = vrot.lane.b32.xlu0 %v1075, 14
        %v1298 = vpop.permute.xlu0 %1297
        %1299 = vrot.lane.b32.xlu0 %v1076, 14
        %v1300 = vpop.permute.xlu0 %1299
        %1301 = vrot.lane.b32.xlu0 %v1077, 14
        %v1302 = vpop.permute.xlu0 %1301
        %1303 = vrot.lane.b32.xlu0 %v1078, 14
        %v1304 = vpop.permute.xlu0 %1303
        %v1309 = vsel %vm637, %v1286, %v1298
        %v1310 = vsel %vm637, %v1288, %v1300
        %v1311 = vsel %vm637, %v1290, %v1302
        %v1312 = vsel %vm637, %v1292, %v1304
        %v1313 = vmul.f32 %v1309, %v359
        %v1314 = vmul.f32 %v1310, %v359
        %v1315 = vmul.f32 %v1311, %v359
        %v1316 = vmul.f32 %v1312, %v359
        %v1317 = vstv %s224
        %v1318 = vstv %s273
        %v1319 = vsel %vm319, %v1317, %v1318
        %v1320 = vsel %vm320, %v1317, %v1318
        %v1321 = vsel %vm321, %v1317, %v1318
        %v1322 = vsel %vm322, %v1317, %v1318
        %v1323 = vmul.f32 %v1319, %v1313
        %v1324 = vmul.f32 %v1320, %v1314
        %v1325 = vmul.f32 %v1321, %v1315
        %v1326 = vmul.f32 %v1322, %v1316
        %v1327 = vadd.f32 %v1235, %v1323
        %v1328 = vadd.f32 %v1236, %v1324
        %v1329 = vadd.f32 %v1237, %v1325
        %v1330 = vadd.f32 %v1238, %v1326
        %1331 = vrot.lane.b32.xlu0 %v1075, 125
        %v1332 = vpop.permute.xlu0 %1331
        %1333 = vrot.lane.b32.xlu0 %v1076, 125
        %v1334 = vpop.permute.xlu0 %1333
        %1335 = vrot.lane.b32.xlu0 %v1077, 125
        %v1336 = vpop.permute.xlu0 %1335
        %1337 = vrot.lane.b32.xlu0 %v1078, 125
        %v1338 = vpop.permute.xlu0 %1337
        %1343 = vrot.lane.b32.xlu0 %v1075, 13
        %v1344 = vpop.permute.xlu0 %1343
        %1345 = vrot.lane.b32.xlu0 %v1076, 13
        %v1346 = vpop.permute.xlu0 %1345
        %1347 = vrot.lane.b32.xlu0 %v1077, 13
        %v1348 = vpop.permute.xlu0 %1347
        %1349 = vrot.lane.b32.xlu0 %v1078, 13
        %v1350 = vpop.permute.xlu0 %1349
        %v1355 = vsel %vm684, %v1332, %v1344
        %v1356 = vsel %vm684, %v1334, %v1346
        %v1357 = vsel %vm684, %v1336, %v1348
        %v1358 = vsel %vm684, %v1338, %v1350
        %v1359 = vmul.f32 %v1355, %v365
        %v1360 = vmul.f32 %v1356, %v365
        %v1361 = vmul.f32 %v1357, %v365
        %v1362 = vmul.f32 %v1358, %v365
        %v1363 = vstv %s225
        %v1364 = vstv %s274
        %v1365 = vsel %vm319, %v1363, %v1364
        %v1366 = vsel %vm320, %v1363, %v1364
        %v1367 = vsel %vm321, %v1363, %v1364
        %v1368 = vsel %vm322, %v1363, %v1364
        %v1369 = vmul.f32 %v1365, %v1359
        %v1370 = vmul.f32 %v1366, %v1360
        %v1371 = vmul.f32 %v1367, %v1361
        %v1372 = vmul.f32 %v1368, %v1362
        %v1373 = vadd.f32 %v1281, %v1369
        %v1374 = vadd.f32 %v1282, %v1370
        %v1375 = vadd.f32 %v1283, %v1371
        %v1376 = vadd.f32 %v1284, %v1372
        %vm1377 = vcmp.ge.s32.totalorder %v315, 0
        %vm1378 = vcmp.ge.s32.totalorder %v316, 0
        %vm1379 = vcmp.ge.s32.totalorder %v317, 0
        %vm1380 = vcmp.ge.s32.totalorder %v318, 0
        %vm1381 = vcmp.lt.s32.totalorder %v315, 16
        %vm1382 = vcmp.lt.s32.totalorder %v316, 16
        %vm1383 = vcmp.lt.s32.totalorder %v317, 16
        %vm1384 = vcmp.lt.s32.totalorder %v318, 16
        %vm1385 = vmand %vm1377, %vm1381
        %vm1386 = vmand %vm1378, %vm1382
        %vm1387 = vmand %vm1379, %vm1383
        %vm1388 = vmand %vm1380, %vm1384
        %v1389 = vsel %vm1385, 1, 0
        %v1390 = vsel %vm1386, 1, 0
        %v1391 = vsel %vm1387, 1, 0
        %v1392 = vsel %vm1388, 1, 0
        %v1393 = vcvt.s32.f32 %v1389
        %v1394 = vcvt.s32.f32 %v1390
        %v1395 = vcvt.s32.f32 %v1391
        %v1396 = vcvt.s32.f32 %v1392
        %v1397 = vmul.f32 %v201, %v1393
        %v1398 = vmul.f32 %v202, %v1394
        %v1399 = vmul.f32 %v203, %v1395
        %v1400 = vmul.f32 %v204, %v1396
        %1405 = vrot.lane.b32.xlu0 %v1397, 115
        %v1406 = vpop.permute.xlu0 %1405
        %1407 = vrot.lane.b32.xlu0 %v1398, 115
        %v1408 = vpop.permute.xlu0 %1407
        %1409 = vrot.lane.b32.xlu0 %v1399, 115
        %v1410 = vpop.permute.xlu0 %1409
        %1411 = vrot.lane.b32.xlu0 %v1400, 115
        %v1412 = vpop.permute.xlu0 %1411
        %1417 = vrot.lane.b32.xlu0 %v1397, 3
        %v1418 = vpop.permute.xlu0 %1417
        %1419 = vrot.lane.b32.xlu0 %v1398, 3
        %v1420 = vpop.permute.xlu0 %1419
        %1421 = vrot.lane.b32.xlu0 %v1399, 3
        %v1422 = vpop.permute.xlu0 %1421
        %1423 = vrot.lane.b32.xlu0 %v1400, 3
        %v1424 = vpop.permute.xlu0 %1423
        %v1429 = vsel %vm431, %v1406, %v1418
        %v1430 = vsel %vm431, %v1408, %v1420
        %v1431 = vsel %vm431, %v1410, %v1422
        %v1432 = vsel %vm431, %v1412, %v1424
        %v1433 = vmul.f32 %v1429, %v330
        %v1434 = vmul.f32 %v1430, %v330
        %v1435 = vmul.f32 %v1431, %v330
        %v1436 = vmul.f32 %v1432, %v330
        %v1437 = vstv %s226
        %v1438 = vstv %s275
        %v1439 = vsel %vm319, %v1437, %v1438
        %v1440 = vsel %vm320, %v1437, %v1438
        %v1441 = vsel %vm321, %v1437, %v1438
        %v1442 = vsel %vm322, %v1437, %v1438
        %v1443 = vmul.f32 %v1439, %v1433
        %v1444 = vmul.f32 %v1440, %v1434
        %v1445 = vmul.f32 %v1441, %v1435
        %v1446 = vmul.f32 %v1442, %v1436
        %v1447 = vadd.f32 %v1327, %v1443
        %v1448 = vadd.f32 %v1328, %v1444
        %v1449 = vadd.f32 %v1329, %v1445
        %v1450 = vadd.f32 %v1330, %v1446
        %1451 = vrot.lane.b32.xlu0 %v1397, 114
        %v1452 = vpop.permute.xlu0 %1451
        %1453 = vrot.lane.b32.xlu0 %v1398, 114
        %v1454 = vpop.permute.xlu0 %1453
        %1455 = vrot.lane.b32.xlu0 %v1399, 114
        %v1456 = vpop.permute.xlu0 %1455
        %1457 = vrot.lane.b32.xlu0 %v1400, 114
        %v1458 = vpop.permute.xlu0 %1457
        %1463 = vrot.lane.b32.xlu0 %v1397, 2
        %v1464 = vpop.permute.xlu0 %1463
        %1465 = vrot.lane.b32.xlu0 %v1398, 2
        %v1466 = vpop.permute.xlu0 %1465
        %1467 = vrot.lane.b32.xlu0 %v1399, 2
        %v1468 = vpop.permute.xlu0 %1467
        %1469 = vrot.lane.b32.xlu0 %v1400, 2
        %v1470 = vpop.permute.xlu0 %1469
        %v1475 = vsel %vm478, %v1452, %v1464
        %v1476 = vsel %vm478, %v1454, %v1466
        %v1477 = vsel %vm478, %v1456, %v1468
        %v1478 = vsel %vm478, %v1458, %v1470
        %v1479 = vmul.f32 %v1475, %v336
        %v1480 = vmul.f32 %v1476, %v336
        %v1481 = vmul.f32 %v1477, %v336
        %v1482 = vmul.f32 %v1478, %v336
        %v1483 = vstv %s227
        %v1484 = vstv %s276
        %v1485 = vsel %vm319, %v1483, %v1484
        %v1486 = vsel %vm320, %v1483, %v1484
        %v1487 = vsel %vm321, %v1483, %v1484
        %v1488 = vsel %vm322, %v1483, %v1484
        %v1489 = vmul.f32 %v1485, %v1479
        %v1490 = vmul.f32 %v1486, %v1480
        %v1491 = vmul.f32 %v1487, %v1481
        %v1492 = vmul.f32 %v1488, %v1482
        %v1493 = vadd.f32 %v1373, %v1489
        %v1494 = vadd.f32 %v1374, %v1490
        %v1495 = vadd.f32 %v1375, %v1491
        %v1496 = vadd.f32 %v1376, %v1492
        %1497 = vrot.lane.b32.xlu0 %v1397, 113
        %v1498 = vpop.permute.xlu0 %1497
        %1499 = vrot.lane.b32.xlu0 %v1398, 113
        %v1500 = vpop.permute.xlu0 %1499
        %1501 = vrot.lane.b32.xlu0 %v1399, 113
        %v1502 = vpop.permute.xlu0 %1501
        %1503 = vrot.lane.b32.xlu0 %v1400, 113
        %v1504 = vpop.permute.xlu0 %1503
        %1509 = vrot.lane.b32.xlu0 %v1397, 1
        %v1510 = vpop.permute.xlu0 %1509
        %1511 = vrot.lane.b32.xlu0 %v1398, 1
        %v1512 = vpop.permute.xlu0 %1511
        %1513 = vrot.lane.b32.xlu0 %v1399, 1
        %v1514 = vpop.permute.xlu0 %1513
        %1515 = vrot.lane.b32.xlu0 %v1400, 1
        %v1516 = vpop.permute.xlu0 %1515
        %v1521 = vsel %vm525, %v1498, %v1510
        %v1522 = vsel %vm525, %v1500, %v1512
        %v1523 = vsel %vm525, %v1502, %v1514
        %v1524 = vsel %vm525, %v1504, %v1516
        %v1525 = vmul.f32 %v1521, %v342
        %v1526 = vmul.f32 %v1522, %v342
        %v1527 = vmul.f32 %v1523, %v342
        %v1528 = vmul.f32 %v1524, %v342
        %v1529 = vstv %s228
        %v1530 = vstv %s277
        %v1531 = vsel %vm319, %v1529, %v1530
        %v1532 = vsel %vm320, %v1529, %v1530
        %v1533 = vsel %vm321, %v1529, %v1530
        %v1534 = vsel %vm322, %v1529, %v1530
        %v1535 = vmul.f32 %v1531, %v1525
        %v1536 = vmul.f32 %v1532, %v1526
        %v1537 = vmul.f32 %v1533, %v1527
        %v1538 = vmul.f32 %v1534, %v1528
        %v1539 = vadd.f32 %v1447, %v1535
        %v1540 = vadd.f32 %v1448, %v1536
        %v1541 = vadd.f32 %v1449, %v1537
        %v1542 = vadd.f32 %v1450, %v1538
        %v1543 = vmul.f32 %v1397, %v347
        %v1544 = vmul.f32 %v1398, %v347
        %v1545 = vmul.f32 %v1399, %v347
        %v1546 = vmul.f32 %v1400, %v347
        %v1547 = vstv %s229
        %v1548 = vstv %s278
        %v1549 = vsel %vm319, %v1547, %v1548
        %v1550 = vsel %vm320, %v1547, %v1548
        %v1551 = vsel %vm321, %v1547, %v1548
        %v1552 = vsel %vm322, %v1547, %v1548
        %v1553 = vmul.f32 %v1549, %v1543
        %v1554 = vmul.f32 %v1550, %v1544
        %v1555 = vmul.f32 %v1551, %v1545
        %v1556 = vmul.f32 %v1552, %v1546
        %v1557 = vadd.f32 %v1493, %v1553
        %v1558 = vadd.f32 %v1494, %v1554
        %v1559 = vadd.f32 %v1495, %v1555
        %v1560 = vadd.f32 %v1496, %v1556
        %1561 = vrot.lane.b32.xlu0 %v1397, 127
        %v1562 = vpop.permute.xlu0 %1561
        %1563 = vrot.lane.b32.xlu0 %v1398, 127
        %v1564 = vpop.permute.xlu0 %1563
        %1565 = vrot.lane.b32.xlu0 %v1399, 127
        %v1566 = vpop.permute.xlu0 %1565
        %1567 = vrot.lane.b32.xlu0 %v1400, 127
        %v1568 = vpop.permute.xlu0 %1567
        %1573 = vrot.lane.b32.xlu0 %v1397, 15
        %v1574 = vpop.permute.xlu0 %1573
        %1575 = vrot.lane.b32.xlu0 %v1398, 15
        %v1576 = vpop.permute.xlu0 %1575
        %1577 = vrot.lane.b32.xlu0 %v1399, 15
        %v1578 = vpop.permute.xlu0 %1577
        %1579 = vrot.lane.b32.xlu0 %v1400, 15
        %v1580 = vpop.permute.xlu0 %1579
        %v1585 = vsel %vm590, %v1562, %v1574
        %v1586 = vsel %vm590, %v1564, %v1576
        %v1587 = vsel %vm590, %v1566, %v1578
        %v1588 = vsel %vm590, %v1568, %v1580
        %v1589 = vmul.f32 %v1585, %v353
        %v1590 = vmul.f32 %v1586, %v353
        %v1591 = vmul.f32 %v1587, %v353
        %v1592 = vmul.f32 %v1588, %v353
        %v1593 = vstv %s230
        %v1594 = vstv %s279
        %v1595 = vsel %vm319, %v1593, %v1594
        %v1596 = vsel %vm320, %v1593, %v1594
        %v1597 = vsel %vm321, %v1593, %v1594
        %v1598 = vsel %vm322, %v1593, %v1594
        %v1599 = vmul.f32 %v1595, %v1589
        %v1600 = vmul.f32 %v1596, %v1590
        %v1601 = vmul.f32 %v1597, %v1591
        %v1602 = vmul.f32 %v1598, %v1592
        %v1603 = vadd.f32 %v1539, %v1599
        %v1604 = vadd.f32 %v1540, %v1600
        %v1605 = vadd.f32 %v1541, %v1601
        %v1606 = vadd.f32 %v1542, %v1602
        %1607 = vrot.lane.b32.xlu0 %v1397, 126
        %v1608 = vpop.permute.xlu0 %1607
        %1609 = vrot.lane.b32.xlu0 %v1398, 126
        %v1610 = vpop.permute.xlu0 %1609
        %1611 = vrot.lane.b32.xlu0 %v1399, 126
        %v1612 = vpop.permute.xlu0 %1611
        %1613 = vrot.lane.b32.xlu0 %v1400, 126
        %v1614 = vpop.permute.xlu0 %1613
        %1619 = vrot.lane.b32.xlu0 %v1397, 14
        %v1620 = vpop.permute.xlu0 %1619
        %1621 = vrot.lane.b32.xlu0 %v1398, 14
        %v1622 = vpop.permute.xlu0 %1621
        %1623 = vrot.lane.b32.xlu0 %v1399, 14
        %v1624 = vpop.permute.xlu0 %1623
        %1625 = vrot.lane.b32.xlu0 %v1400, 14
        %v1626 = vpop.permute.xlu0 %1625
        %v1631 = vsel %vm637, %v1608, %v1620
        %v1632 = vsel %vm637, %v1610, %v1622
        %v1633 = vsel %vm637, %v1612, %v1624
        %v1634 = vsel %vm637, %v1614, %v1626
        %v1635 = vmul.f32 %v1631, %v359
        %v1636 = vmul.f32 %v1632, %v359
        %v1637 = vmul.f32 %v1633, %v359
        %v1638 = vmul.f32 %v1634, %v359
        %v1639 = vstv %s231
        %v1640 = vstv %s280
        %v1641 = vsel %vm319, %v1639, %v1640
        %v1642 = vsel %vm320, %v1639, %v1640
        %v1643 = vsel %vm321, %v1639, %v1640
        %v1644 = vsel %vm322, %v1639, %v1640
        %v1645 = vmul.f32 %v1641, %v1635
        %v1646 = vmul.f32 %v1642, %v1636
        %v1647 = vmul.f32 %v1643, %v1637
        %v1648 = vmul.f32 %v1644, %v1638
        %v1649 = vadd.f32 %v1557, %v1645
        %v1650 = vadd.f32 %v1558, %v1646
        %v1651 = vadd.f32 %v1559, %v1647
        %v1652 = vadd.f32 %v1560, %v1648
        %1653 = vrot.lane.b32.xlu0 %v1397, 125
        %v1654 = vpop.permute.xlu0 %1653
        %1655 = vrot.lane.b32.xlu0 %v1398, 125
        %v1656 = vpop.permute.xlu0 %1655
        %1657 = vrot.lane.b32.xlu0 %v1399, 125
        %v1658 = vpop.permute.xlu0 %1657
        %1659 = vrot.lane.b32.xlu0 %v1400, 125
        %v1660 = vpop.permute.xlu0 %1659
        %1665 = vrot.lane.b32.xlu0 %v1397, 13
        %v1666 = vpop.permute.xlu0 %1665
        %1667 = vrot.lane.b32.xlu0 %v1398, 13
        %v1668 = vpop.permute.xlu0 %1667
        %1669 = vrot.lane.b32.xlu0 %v1399, 13
        %v1670 = vpop.permute.xlu0 %1669
        %1671 = vrot.lane.b32.xlu0 %v1400, 13
        %v1672 = vpop.permute.xlu0 %1671
        %v1677 = vsel %vm684, %v1654, %v1666
        %v1678 = vsel %vm684, %v1656, %v1668
        %v1679 = vsel %vm684, %v1658, %v1670
        %v1680 = vsel %vm684, %v1660, %v1672
        %v1681 = vmul.f32 %v1677, %v365
        %v1682 = vmul.f32 %v1678, %v365
        %v1683 = vmul.f32 %v1679, %v365
        %v1684 = vmul.f32 %v1680, %v365
        %v1685 = vstv %s232
        %v1686 = vstv %s281
        %v1687 = vsel %vm319, %v1685, %v1686
        %v1688 = vsel %vm320, %v1685, %v1686
        %v1689 = vsel %vm321, %v1685, %v1686
        %v1690 = vsel %vm322, %v1685, %v1686
        %v1691 = vmul.f32 %v1687, %v1681
        %v1692 = vmul.f32 %v1688, %v1682
        %v1693 = vmul.f32 %v1689, %v1683
        %v1694 = vmul.f32 %v1690, %v1684
        %v1695 = vadd.f32 %v1603, %v1691
        %v1696 = vadd.f32 %v1604, %v1692
        %v1697 = vadd.f32 %v1605, %v1693
        %v1698 = vadd.f32 %v1606, %v1694
        %v1699 = vadd.s32 %v315, 1
        %v1700 = vadd.s32 %v316, 1
        %v1701 = vadd.s32 %v317, 1
        %v1702 = vadd.s32 %v318, 1
        %vm1703 = vcmp.ge.s32.totalorder %v1699, 0
        %vm1704 = vcmp.ge.s32.totalorder %v1700, 0
        %vm1705 = vcmp.ge.s32.totalorder %v1701, 0
        %vm1706 = vcmp.ge.s32.totalorder %v1702, 0
        %vm1707 = vcmp.lt.s32.totalorder %v1699, 16
        %vm1708 = vcmp.lt.s32.totalorder %v1700, 16
        %vm1709 = vcmp.lt.s32.totalorder %v1701, 16
        %vm1710 = vcmp.lt.s32.totalorder %v1702, 16
        %vm1711 = vmand %vm1703, %vm1707
        %vm1712 = vmand %vm1704, %vm1708
        %vm1713 = vmand %vm1705, %vm1709
        %vm1714 = vmand %vm1706, %vm1710
        %v1715 = vsel %vm1711, 1, 0
        %v1716 = vsel %vm1712, 1, 0
        %v1717 = vsel %vm1713, 1, 0
        %v1718 = vsel %vm1714, 1, 0
        %v1719 = vcvt.s32.f32 %v1715
        %v1720 = vcvt.s32.f32 %v1716
        %v1721 = vcvt.s32.f32 %v1717
        %v1722 = vcvt.s32.f32 %v1718
        %v1723 = vrot.slane %v201, 1
        %v1724 = vrot.slane %v202, 1
        %v1725 = vrot.slane %v203, 1
        %v1726 = vrot.slane %v204, 1
        %vm1727 = vcmp.lt.s32.totalorder %v304, 7
        %v1728 = vsel %vm1727, %v1725, %v1726
        %v1729 = vsel %vm1727, %v1724, %v1725
        %v1730 = vsel %vm1727, %v1723, %v1724
        %v1731 = vsel %vm1727, %v1726, %v1723
        %v1732 = vmul.f32 %v1730, %v1719
        %v1733 = vmul.f32 %v1729, %v1720
        %v1734 = vmul.f32 %v1728, %v1721
        %v1735 = vmul.f32 %v1731, %v1722
        %1740 = vrot.lane.b32.xlu0 %v1732, 115
        %v1741 = vpop.permute.xlu0 %1740
        %1742 = vrot.lane.b32.xlu0 %v1733, 115
        %v1743 = vpop.permute.xlu0 %1742
        %1744 = vrot.lane.b32.xlu0 %v1734, 115
        %v1745 = vpop.permute.xlu0 %1744
        %1746 = vrot.lane.b32.xlu0 %v1735, 115
        %v1747 = vpop.permute.xlu0 %1746
        %1752 = vrot.lane.b32.xlu0 %v1732, 3
        %v1753 = vpop.permute.xlu0 %1752
        %1754 = vrot.lane.b32.xlu0 %v1733, 3
        %v1755 = vpop.permute.xlu0 %1754
        %1756 = vrot.lane.b32.xlu0 %v1734, 3
        %v1757 = vpop.permute.xlu0 %1756
        %1758 = vrot.lane.b32.xlu0 %v1735, 3
        %v1759 = vpop.permute.xlu0 %1758
        %v1764 = vsel %vm431, %v1741, %v1753
        %v1765 = vsel %vm431, %v1743, %v1755
        %v1766 = vsel %vm431, %v1745, %v1757
        %v1767 = vsel %vm431, %v1747, %v1759
        %v1768 = vmul.f32 %v1764, %v330
        %v1769 = vmul.f32 %v1765, %v330
        %v1770 = vmul.f32 %v1766, %v330
        %v1771 = vmul.f32 %v1767, %v330
        %v1772 = vstv %s233
        %v1773 = vstv %s282
        %v1774 = vsel %vm319, %v1772, %v1773
        %v1775 = vsel %vm320, %v1772, %v1773
        %v1776 = vsel %vm321, %v1772, %v1773
        %v1777 = vsel %vm322, %v1772, %v1773
        %v1778 = vmul.f32 %v1774, %v1768
        %v1779 = vmul.f32 %v1775, %v1769
        %v1780 = vmul.f32 %v1776, %v1770
        %v1781 = vmul.f32 %v1777, %v1771
        %v1782 = vadd.f32 %v1649, %v1778
        %v1783 = vadd.f32 %v1650, %v1779
        %v1784 = vadd.f32 %v1651, %v1780
        %v1785 = vadd.f32 %v1652, %v1781
        %1786 = vrot.lane.b32.xlu0 %v1732, 114
        %v1787 = vpop.permute.xlu0 %1786
        %1788 = vrot.lane.b32.xlu0 %v1733, 114
        %v1789 = vpop.permute.xlu0 %1788
        %1790 = vrot.lane.b32.xlu0 %v1734, 114
        %v1791 = vpop.permute.xlu0 %1790
        %1792 = vrot.lane.b32.xlu0 %v1735, 114
        %v1793 = vpop.permute.xlu0 %1792
        %1798 = vrot.lane.b32.xlu0 %v1732, 2
        %v1799 = vpop.permute.xlu0 %1798
        %1800 = vrot.lane.b32.xlu0 %v1733, 2
        %v1801 = vpop.permute.xlu0 %1800
        %1802 = vrot.lane.b32.xlu0 %v1734, 2
        %v1803 = vpop.permute.xlu0 %1802
        %1804 = vrot.lane.b32.xlu0 %v1735, 2
        %v1805 = vpop.permute.xlu0 %1804
        %v1810 = vsel %vm478, %v1787, %v1799
        %v1811 = vsel %vm478, %v1789, %v1801
        %v1812 = vsel %vm478, %v1791, %v1803
        %v1813 = vsel %vm478, %v1793, %v1805
        %v1814 = vmul.f32 %v1810, %v336
        %v1815 = vmul.f32 %v1811, %v336
        %v1816 = vmul.f32 %v1812, %v336
        %v1817 = vmul.f32 %v1813, %v336
        %v1818 = vstv %s234
        %v1819 = vstv %s283
        %v1820 = vsel %vm319, %v1818, %v1819
        %v1821 = vsel %vm320, %v1818, %v1819
        %v1822 = vsel %vm321, %v1818, %v1819
        %v1823 = vsel %vm322, %v1818, %v1819
        %v1824 = vmul.f32 %v1820, %v1814
        %v1825 = vmul.f32 %v1821, %v1815
        %v1826 = vmul.f32 %v1822, %v1816
        %v1827 = vmul.f32 %v1823, %v1817
        %v1828 = vadd.f32 %v1695, %v1824
        %v1829 = vadd.f32 %v1696, %v1825
        %v1830 = vadd.f32 %v1697, %v1826
        %v1831 = vadd.f32 %v1698, %v1827
        %1832 = vrot.lane.b32.xlu0 %v1732, 113
        %v1833 = vpop.permute.xlu0 %1832
        %1834 = vrot.lane.b32.xlu0 %v1733, 113
        %v1835 = vpop.permute.xlu0 %1834
        %1836 = vrot.lane.b32.xlu0 %v1734, 113
        %v1837 = vpop.permute.xlu0 %1836
        %1838 = vrot.lane.b32.xlu0 %v1735, 113
        %v1839 = vpop.permute.xlu0 %1838
        %1844 = vrot.lane.b32.xlu0 %v1732, 1
        %v1845 = vpop.permute.xlu0 %1844
        %1846 = vrot.lane.b32.xlu0 %v1733, 1
        %v1847 = vpop.permute.xlu0 %1846
        %1848 = vrot.lane.b32.xlu0 %v1734, 1
        %v1849 = vpop.permute.xlu0 %1848
        %1850 = vrot.lane.b32.xlu0 %v1735, 1
        %v1851 = vpop.permute.xlu0 %1850
        %v1856 = vsel %vm525, %v1833, %v1845
        %v1857 = vsel %vm525, %v1835, %v1847
        %v1858 = vsel %vm525, %v1837, %v1849
        %v1859 = vsel %vm525, %v1839, %v1851
        %v1860 = vmul.f32 %v1856, %v342
        %v1861 = vmul.f32 %v1857, %v342
        %v1862 = vmul.f32 %v1858, %v342
        %v1863 = vmul.f32 %v1859, %v342
        %v1864 = vstv %s235
        %v1865 = vstv %s284
        %v1866 = vsel %vm319, %v1864, %v1865
        %v1867 = vsel %vm320, %v1864, %v1865
        %v1868 = vsel %vm321, %v1864, %v1865
        %v1869 = vsel %vm322, %v1864, %v1865
        %v1870 = vmul.f32 %v1866, %v1860
        %v1871 = vmul.f32 %v1867, %v1861
        %v1872 = vmul.f32 %v1868, %v1862
        %v1873 = vmul.f32 %v1869, %v1863
        %v1874 = vadd.f32 %v1782, %v1870
        %v1875 = vadd.f32 %v1783, %v1871
        %v1876 = vadd.f32 %v1784, %v1872
        %v1877 = vadd.f32 %v1785, %v1873
        %v1878 = vmul.f32 %v1732, %v347
        %v1879 = vmul.f32 %v1733, %v347
        %v1880 = vmul.f32 %v1734, %v347
        %v1881 = vmul.f32 %v1735, %v347
        %v1882 = vstv %s236
        %v1883 = vstv %s285
        %v1884 = vsel %vm319, %v1882, %v1883
        %v1885 = vsel %vm320, %v1882, %v1883
        %v1886 = vsel %vm321, %v1882, %v1883
        %v1887 = vsel %vm322, %v1882, %v1883
        %v1888 = vmul.f32 %v1884, %v1878
        %v1889 = vmul.f32 %v1885, %v1879
        %v1890 = vmul.f32 %v1886, %v1880
        %v1891 = vmul.f32 %v1887, %v1881
        %v1892 = vadd.f32 %v1828, %v1888
        %v1893 = vadd.f32 %v1829, %v1889
        %v1894 = vadd.f32 %v1830, %v1890
        %v1895 = vadd.f32 %v1831, %v1891
        %1896 = vrot.lane.b32.xlu0 %v1732, 127
        %v1897 = vpop.permute.xlu0 %1896
        %1898 = vrot.lane.b32.xlu0 %v1733, 127
        %v1899 = vpop.permute.xlu0 %1898
        %1900 = vrot.lane.b32.xlu0 %v1734, 127
        %v1901 = vpop.permute.xlu0 %1900
        %1902 = vrot.lane.b32.xlu0 %v1735, 127
        %v1903 = vpop.permute.xlu0 %1902
        %1908 = vrot.lane.b32.xlu0 %v1732, 15
        %v1909 = vpop.permute.xlu0 %1908
        %1910 = vrot.lane.b32.xlu0 %v1733, 15
        %v1911 = vpop.permute.xlu0 %1910
        %1912 = vrot.lane.b32.xlu0 %v1734, 15
        %v1913 = vpop.permute.xlu0 %1912
        %1914 = vrot.lane.b32.xlu0 %v1735, 15
        %v1915 = vpop.permute.xlu0 %1914
        %v1920 = vsel %vm590, %v1897, %v1909
        %v1921 = vsel %vm590, %v1899, %v1911
        %v1922 = vsel %vm590, %v1901, %v1913
        %v1923 = vsel %vm590, %v1903, %v1915
        %v1924 = vmul.f32 %v1920, %v353
        %v1925 = vmul.f32 %v1921, %v353
        %v1926 = vmul.f32 %v1922, %v353
        %v1927 = vmul.f32 %v1923, %v353
        %v1928 = vstv %s237
        %v1929 = vstv %s286
        %v1930 = vsel %vm319, %v1928, %v1929
        %v1931 = vsel %vm320, %v1928, %v1929
        %v1932 = vsel %vm321, %v1928, %v1929
        %v1933 = vsel %vm322, %v1928, %v1929
        %v1934 = vmul.f32 %v1930, %v1924
        %v1935 = vmul.f32 %v1931, %v1925
        %v1936 = vmul.f32 %v1932, %v1926
        %v1937 = vmul.f32 %v1933, %v1927
        %v1938 = vadd.f32 %v1874, %v1934
        %v1939 = vadd.f32 %v1875, %v1935
        %v1940 = vadd.f32 %v1876, %v1936
        %v1941 = vadd.f32 %v1877, %v1937
        %1942 = vrot.lane.b32.xlu0 %v1732, 126
        %v1943 = vpop.permute.xlu0 %1942
        %1944 = vrot.lane.b32.xlu0 %v1733, 126
        %v1945 = vpop.permute.xlu0 %1944
        %1946 = vrot.lane.b32.xlu0 %v1734, 126
        %v1947 = vpop.permute.xlu0 %1946
        %1948 = vrot.lane.b32.xlu0 %v1735, 126
        %v1949 = vpop.permute.xlu0 %1948
        %1954 = vrot.lane.b32.xlu0 %v1732, 14
        %v1955 = vpop.permute.xlu0 %1954
        %1956 = vrot.lane.b32.xlu0 %v1733, 14
        %v1957 = vpop.permute.xlu0 %1956
        %1958 = vrot.lane.b32.xlu0 %v1734, 14
        %v1959 = vpop.permute.xlu0 %1958
        %1960 = vrot.lane.b32.xlu0 %v1735, 14
        %v1961 = vpop.permute.xlu0 %1960
        %v1966 = vsel %vm637, %v1943, %v1955
        %v1967 = vsel %vm637, %v1945, %v1957
        %v1968 = vsel %vm637, %v1947, %v1959
        %v1969 = vsel %vm637, %v1949, %v1961
        %v1970 = vmul.f32 %v1966, %v359
        %v1971 = vmul.f32 %v1967, %v359
        %v1972 = vmul.f32 %v1968, %v359
        %v1973 = vmul.f32 %v1969, %v359
        %v1974 = vstv %s238
        %v1975 = vstv %s287
        %v1976 = vsel %vm319, %v1974, %v1975
        %v1977 = vsel %vm320, %v1974, %v1975
        %v1978 = vsel %vm321, %v1974, %v1975
        %v1979 = vsel %vm322, %v1974, %v1975
        %v1980 = vmul.f32 %v1976, %v1970
        %v1981 = vmul.f32 %v1977, %v1971
        %v1982 = vmul.f32 %v1978, %v1972
        %v1983 = vmul.f32 %v1979, %v1973
        %v1984 = vadd.f32 %v1892, %v1980
        %v1985 = vadd.f32 %v1893, %v1981
        %v1986 = vadd.f32 %v1894, %v1982
        %v1987 = vadd.f32 %v1895, %v1983
        %1988 = vrot.lane.b32.xlu0 %v1732, 125
        %v1989 = vpop.permute.xlu0 %1988
        %1990 = vrot.lane.b32.xlu0 %v1733, 125
        %v1991 = vpop.permute.xlu0 %1990
        %1992 = vrot.lane.b32.xlu0 %v1734, 125
        %v1993 = vpop.permute.xlu0 %1992
        %1994 = vrot.lane.b32.xlu0 %v1735, 125
        %v1995 = vpop.permute.xlu0 %1994
        %2000 = vrot.lane.b32.xlu0 %v1732, 13
        %v2001 = vpop.permute.xlu0 %2000
        %2002 = vrot.lane.b32.xlu0 %v1733, 13
        %v2003 = vpop.permute.xlu0 %2002
        %2004 = vrot.lane.b32.xlu0 %v1734, 13
        %v2005 = vpop.permute.xlu0 %2004
        %2006 = vrot.lane.b32.xlu0 %v1735, 13
        %v2007 = vpop.permute.xlu0 %2006
        %v2012 = vsel %vm684, %v1989, %v2001
        %v2013 = vsel %vm684, %v1991, %v2003
        %v2014 = vsel %vm684, %v1993, %v2005
        %v2015 = vsel %vm684, %v1995, %v2007
        %v2016 = vmul.f32 %v2012, %v365
        %v2017 = vmul.f32 %v2013, %v365
        %v2018 = vmul.f32 %v2014, %v365
        %v2019 = vmul.f32 %v2015, %v365
        %v2020 = vstv %s239
        %v2021 = vstv %s288
        %v2022 = vsel %vm319, %v2020, %v2021
        %v2023 = vsel %vm320, %v2020, %v2021
        %v2024 = vsel %vm321, %v2020, %v2021
        %v2025 = vsel %vm322, %v2020, %v2021
        %v2026 = vmul.f32 %v2022, %v2016
        %v2027 = vmul.f32 %v2023, %v2017
        %v2028 = vmul.f32 %v2024, %v2018
        %v2029 = vmul.f32 %v2025, %v2019
        %v2030 = vadd.f32 %v1938, %v2026
        %v2031 = vadd.f32 %v1939, %v2027
        %v2032 = vadd.f32 %v1940, %v2028
        %v2033 = vadd.f32 %v1941, %v2029
        %v2034 = vadd.s32 %v315, 2
        %v2035 = vadd.s32 %v316, 2
        %v2036 = vadd.s32 %v317, 2
        %v2037 = vadd.s32 %v318, 2
        %vm2038 = vcmp.ge.s32.totalorder %v2034, 0
        %vm2039 = vcmp.ge.s32.totalorder %v2035, 0
        %vm2040 = vcmp.ge.s32.totalorder %v2036, 0
        %vm2041 = vcmp.ge.s32.totalorder %v2037, 0
        %vm2042 = vcmp.lt.s32.totalorder %v2034, 16
        %vm2043 = vcmp.lt.s32.totalorder %v2035, 16
        %vm2044 = vcmp.lt.s32.totalorder %v2036, 16
        %vm2045 = vcmp.lt.s32.totalorder %v2037, 16
        %vm2046 = vmand %vm2038, %vm2042
        %vm2047 = vmand %vm2039, %vm2043
        %vm2048 = vmand %vm2040, %vm2044
        %vm2049 = vmand %vm2041, %vm2045
        %v2050 = vsel %vm2046, 1, 0
        %v2051 = vsel %vm2047, 1, 0
        %v2052 = vsel %vm2048, 1, 0
        %v2053 = vsel %vm2049, 1, 0
        %v2054 = vcvt.s32.f32 %v2050
        %v2055 = vcvt.s32.f32 %v2051
        %v2056 = vcvt.s32.f32 %v2052
        %v2057 = vcvt.s32.f32 %v2053
        %v2058 = vrot.slane %v201, 2
        %v2059 = vrot.slane %v202, 2
        %v2060 = vrot.slane %v203, 2
        %v2061 = vrot.slane %v204, 2
        %vm2062 = vcmp.lt.s32.totalorder %v304, 6
        %v2063 = vsel %vm2062, %v2060, %v2061
        %v2064 = vsel %vm2062, %v2059, %v2060
        %v2065 = vsel %vm2062, %v2058, %v2059
        %v2066 = vsel %vm2062, %v2061, %v2058
        %v2067 = vmul.f32 %v2065, %v2054
        %v2068 = vmul.f32 %v2064, %v2055
        %v2069 = vmul.f32 %v2063, %v2056
        %v2070 = vmul.f32 %v2066, %v2057
        %2075 = vrot.lane.b32.xlu0 %v2067, 115
        %v2076 = vpop.permute.xlu0 %2075
        %2077 = vrot.lane.b32.xlu0 %v2068, 115
        %v2078 = vpop.permute.xlu0 %2077
        %2079 = vrot.lane.b32.xlu0 %v2069, 115
        %v2080 = vpop.permute.xlu0 %2079
        %2081 = vrot.lane.b32.xlu0 %v2070, 115
        %v2082 = vpop.permute.xlu0 %2081
        %2087 = vrot.lane.b32.xlu0 %v2067, 3
        %v2088 = vpop.permute.xlu0 %2087
        %2089 = vrot.lane.b32.xlu0 %v2068, 3
        %v2090 = vpop.permute.xlu0 %2089
        %2091 = vrot.lane.b32.xlu0 %v2069, 3
        %v2092 = vpop.permute.xlu0 %2091
        %2093 = vrot.lane.b32.xlu0 %v2070, 3
        %v2094 = vpop.permute.xlu0 %2093
        %v2099 = vsel %vm431, %v2076, %v2088
        %v2100 = vsel %vm431, %v2078, %v2090
        %v2101 = vsel %vm431, %v2080, %v2092
        %v2102 = vsel %vm431, %v2082, %v2094
        %v2103 = vmul.f32 %v2099, %v330
        %v2104 = vmul.f32 %v2100, %v330
        %v2105 = vmul.f32 %v2101, %v330
        %v2106 = vmul.f32 %v2102, %v330
        %v2107 = vstv %s240
        %v2108 = vstv %s289
        %v2109 = vsel %vm319, %v2107, %v2108
        %v2110 = vsel %vm320, %v2107, %v2108
        %v2111 = vsel %vm321, %v2107, %v2108
        %v2112 = vsel %vm322, %v2107, %v2108
        %v2113 = vmul.f32 %v2109, %v2103
        %v2114 = vmul.f32 %v2110, %v2104
        %v2115 = vmul.f32 %v2111, %v2105
        %v2116 = vmul.f32 %v2112, %v2106
        %v2117 = vadd.f32 %v1984, %v2113
        %v2118 = vadd.f32 %v1985, %v2114
        %v2119 = vadd.f32 %v1986, %v2115
        %v2120 = vadd.f32 %v1987, %v2116
        %2121 = vrot.lane.b32.xlu0 %v2067, 114
        %v2122 = vpop.permute.xlu0 %2121
        %2123 = vrot.lane.b32.xlu0 %v2068, 114
        %v2124 = vpop.permute.xlu0 %2123
        %2125 = vrot.lane.b32.xlu0 %v2069, 114
        %v2126 = vpop.permute.xlu0 %2125
        %2127 = vrot.lane.b32.xlu0 %v2070, 114
        %v2128 = vpop.permute.xlu0 %2127
        %2133 = vrot.lane.b32.xlu0 %v2067, 2
        %v2134 = vpop.permute.xlu0 %2133
        %2135 = vrot.lane.b32.xlu0 %v2068, 2
        %v2136 = vpop.permute.xlu0 %2135
        %2137 = vrot.lane.b32.xlu0 %v2069, 2
        %v2138 = vpop.permute.xlu0 %2137
        %2139 = vrot.lane.b32.xlu0 %v2070, 2
        %v2140 = vpop.permute.xlu0 %2139
        %v2145 = vsel %vm478, %v2122, %v2134
        %v2146 = vsel %vm478, %v2124, %v2136
        %v2147 = vsel %vm478, %v2126, %v2138
        %v2148 = vsel %vm478, %v2128, %v2140
        %v2149 = vmul.f32 %v2145, %v336
        %v2150 = vmul.f32 %v2146, %v336
        %v2151 = vmul.f32 %v2147, %v336
        %v2152 = vmul.f32 %v2148, %v336
        %v2153 = vstv %s241
        %v2154 = vstv %s290
        %v2155 = vsel %vm319, %v2153, %v2154
        %v2156 = vsel %vm320, %v2153, %v2154
        %v2157 = vsel %vm321, %v2153, %v2154
        %v2158 = vsel %vm322, %v2153, %v2154
        %v2159 = vmul.f32 %v2155, %v2149
        %v2160 = vmul.f32 %v2156, %v2150
        %v2161 = vmul.f32 %v2157, %v2151
        %v2162 = vmul.f32 %v2158, %v2152
        %v2163 = vadd.f32 %v2030, %v2159
        %v2164 = vadd.f32 %v2031, %v2160
        %v2165 = vadd.f32 %v2032, %v2161
        %v2166 = vadd.f32 %v2033, %v2162
        %2167 = vrot.lane.b32.xlu0 %v2067, 113
        %v2168 = vpop.permute.xlu0 %2167
        %2169 = vrot.lane.b32.xlu0 %v2068, 113
        %v2170 = vpop.permute.xlu0 %2169
        %2171 = vrot.lane.b32.xlu0 %v2069, 113
        %v2172 = vpop.permute.xlu0 %2171
        %2173 = vrot.lane.b32.xlu0 %v2070, 113
        %v2174 = vpop.permute.xlu0 %2173
        %2179 = vrot.lane.b32.xlu0 %v2067, 1
        %v2180 = vpop.permute.xlu0 %2179
        %2181 = vrot.lane.b32.xlu0 %v2068, 1
        %v2182 = vpop.permute.xlu0 %2181
        %2183 = vrot.lane.b32.xlu0 %v2069, 1
        %v2184 = vpop.permute.xlu0 %2183
        %2185 = vrot.lane.b32.xlu0 %v2070, 1
        %v2186 = vpop.permute.xlu0 %2185
        %v2191 = vsel %vm525, %v2168, %v2180
        %v2192 = vsel %vm525, %v2170, %v2182
        %v2193 = vsel %vm525, %v2172, %v2184
        %v2194 = vsel %vm525, %v2174, %v2186
        %v2195 = vmul.f32 %v2191, %v342
        %v2196 = vmul.f32 %v2192, %v342
        %v2197 = vmul.f32 %v2193, %v342
        %v2198 = vmul.f32 %v2194, %v342
        %v2199 = vstv %s242
        %v2200 = vstv %s291
        %v2201 = vsel %vm319, %v2199, %v2200
        %v2202 = vsel %vm320, %v2199, %v2200
        %v2203 = vsel %vm321, %v2199, %v2200
        %v2204 = vsel %vm322, %v2199, %v2200
        %v2205 = vmul.f32 %v2201, %v2195
        %v2206 = vmul.f32 %v2202, %v2196
        %v2207 = vmul.f32 %v2203, %v2197
        %v2208 = vmul.f32 %v2204, %v2198
        %v2209 = vadd.f32 %v2117, %v2205
        %v2210 = vadd.f32 %v2118, %v2206
        %v2211 = vadd.f32 %v2119, %v2207
        %v2212 = vadd.f32 %v2120, %v2208
        %v2213 = vmul.f32 %v2067, %v347
        %v2214 = vmul.f32 %v2068, %v347
        %v2215 = vmul.f32 %v2069, %v347
        %v2216 = vmul.f32 %v2070, %v347
        %v2217 = vstv %s243
        %v2218 = vstv %s292
        %v2219 = vsel %vm319, %v2217, %v2218
        %v2220 = vsel %vm320, %v2217, %v2218
        %v2221 = vsel %vm321, %v2217, %v2218
        %v2222 = vsel %vm322, %v2217, %v2218
        %v2223 = vmul.f32 %v2219, %v2213
        %v2224 = vmul.f32 %v2220, %v2214
        %v2225 = vmul.f32 %v2221, %v2215
        %v2226 = vmul.f32 %v2222, %v2216
        %v2227 = vadd.f32 %v2163, %v2223
        %v2228 = vadd.f32 %v2164, %v2224
        %v2229 = vadd.f32 %v2165, %v2225
        %v2230 = vadd.f32 %v2166, %v2226
        %2231 = vrot.lane.b32.xlu0 %v2067, 127
        %v2232 = vpop.permute.xlu0 %2231
        %2233 = vrot.lane.b32.xlu0 %v2068, 127
        %v2234 = vpop.permute.xlu0 %2233
        %2235 = vrot.lane.b32.xlu0 %v2069, 127
        %v2236 = vpop.permute.xlu0 %2235
        %2237 = vrot.lane.b32.xlu0 %v2070, 127
        %v2238 = vpop.permute.xlu0 %2237
        %2243 = vrot.lane.b32.xlu0 %v2067, 15
        %v2244 = vpop.permute.xlu0 %2243
        %2245 = vrot.lane.b32.xlu0 %v2068, 15
        %v2246 = vpop.permute.xlu0 %2245
        %2247 = vrot.lane.b32.xlu0 %v2069, 15
        %v2248 = vpop.permute.xlu0 %2247
        %2249 = vrot.lane.b32.xlu0 %v2070, 15
        %v2250 = vpop.permute.xlu0 %2249
        %v2255 = vsel %vm590, %v2232, %v2244
        %v2256 = vsel %vm590, %v2234, %v2246
        %v2257 = vsel %vm590, %v2236, %v2248
        %v2258 = vsel %vm590, %v2238, %v2250
        %v2259 = vmul.f32 %v2255, %v353
        %v2260 = vmul.f32 %v2256, %v353
        %v2261 = vmul.f32 %v2257, %v353
        %v2262 = vmul.f32 %v2258, %v353
        %v2263 = vstv %s244
        %v2264 = vstv %s293
        %v2265 = vsel %vm319, %v2263, %v2264
        %v2266 = vsel %vm320, %v2263, %v2264
        %v2267 = vsel %vm321, %v2263, %v2264
        %v2268 = vsel %vm322, %v2263, %v2264
        %v2269 = vmul.f32 %v2265, %v2259
        %v2270 = vmul.f32 %v2266, %v2260
        %v2271 = vmul.f32 %v2267, %v2261
        %v2272 = vmul.f32 %v2268, %v2262
        %v2273 = vadd.f32 %v2209, %v2269
        %v2274 = vadd.f32 %v2210, %v2270
        %v2275 = vadd.f32 %v2211, %v2271
        %v2276 = vadd.f32 %v2212, %v2272
        %2277 = vrot.lane.b32.xlu0 %v2067, 126
        %v2278 = vpop.permute.xlu0 %2277
        %2279 = vrot.lane.b32.xlu0 %v2068, 126
        %v2280 = vpop.permute.xlu0 %2279
        %2281 = vrot.lane.b32.xlu0 %v2069, 126
        %v2282 = vpop.permute.xlu0 %2281
        %2283 = vrot.lane.b32.xlu0 %v2070, 126
        %v2284 = vpop.permute.xlu0 %2283
        %2289 = vrot.lane.b32.xlu0 %v2067, 14
        %v2290 = vpop.permute.xlu0 %2289
        %2291 = vrot.lane.b32.xlu0 %v2068, 14
        %v2292 = vpop.permute.xlu0 %2291
        %2293 = vrot.lane.b32.xlu0 %v2069, 14
        %v2294 = vpop.permute.xlu0 %2293
        %2295 = vrot.lane.b32.xlu0 %v2070, 14
        %v2296 = vpop.permute.xlu0 %2295
        %v2301 = vsel %vm637, %v2278, %v2290
        %v2302 = vsel %vm637, %v2280, %v2292
        %v2303 = vsel %vm637, %v2282, %v2294
        %v2304 = vsel %vm637, %v2284, %v2296
        %v2305 = vmul.f32 %v2301, %v359
        %v2306 = vmul.f32 %v2302, %v359
        %v2307 = vmul.f32 %v2303, %v359
        %v2308 = vmul.f32 %v2304, %v359
        %v2309 = vstv %s245
        %v2310 = vstv %s294
        %v2311 = vsel %vm319, %v2309, %v2310
        %v2312 = vsel %vm320, %v2309, %v2310
        %v2313 = vsel %vm321, %v2309, %v2310
        %v2314 = vsel %vm322, %v2309, %v2310
        %v2315 = vmul.f32 %v2311, %v2305
        %v2316 = vmul.f32 %v2312, %v2306
        %v2317 = vmul.f32 %v2313, %v2307
        %v2318 = vmul.f32 %v2314, %v2308
        %v2319 = vadd.f32 %v2227, %v2315
        %v2320 = vadd.f32 %v2228, %v2316
        %v2321 = vadd.f32 %v2229, %v2317
        %v2322 = vadd.f32 %v2230, %v2318
        %2323 = vrot.lane.b32.xlu0 %v2067, 125
        %v2324 = vpop.permute.xlu0 %2323
        %2325 = vrot.lane.b32.xlu0 %v2068, 125
        %v2326 = vpop.permute.xlu0 %2325
        %2327 = vrot.lane.b32.xlu0 %v2069, 125
        %v2328 = vpop.permute.xlu0 %2327
        %2329 = vrot.lane.b32.xlu0 %v2070, 125
        %v2330 = vpop.permute.xlu0 %2329
        %2335 = vrot.lane.b32.xlu0 %v2067, 13
        %v2336 = vpop.permute.xlu0 %2335
        %2337 = vrot.lane.b32.xlu0 %v2068, 13
        %v2338 = vpop.permute.xlu0 %2337
        %2339 = vrot.lane.b32.xlu0 %v2069, 13
        %v2340 = vpop.permute.xlu0 %2339
        %2341 = vrot.lane.b32.xlu0 %v2070, 13
        %v2342 = vpop.permute.xlu0 %2341
        %v2347 = vsel %vm684, %v2324, %v2336
        %v2348 = vsel %vm684, %v2326, %v2338
        %v2349 = vsel %vm684, %v2328, %v2340
        %v2350 = vsel %vm684, %v2330, %v2342
        %v2351 = vmul.f32 %v2347, %v365
        %v2352 = vmul.f32 %v2348, %v365
        %v2353 = vmul.f32 %v2349, %v365
        %v2354 = vmul.f32 %v2350, %v365
        %v2355 = vstv %s246
        %v2356 = vstv %s295
        %v2357 = vsel %vm319, %v2355, %v2356
        %v2358 = vsel %vm320, %v2355, %v2356
        %v2359 = vsel %vm321, %v2355, %v2356
        %v2360 = vsel %vm322, %v2355, %v2356
        %v2361 = vmul.f32 %v2357, %v2351
        %v2362 = vmul.f32 %v2358, %v2352
        %v2363 = vmul.f32 %v2359, %v2353
        %v2364 = vmul.f32 %v2360, %v2354
        %v2365 = vadd.f32 %v2273, %v2361
        %v2366 = vadd.f32 %v2274, %v2362
        %v2367 = vadd.f32 %v2275, %v2363
        %v2368 = vadd.f32 %v2276, %v2364
        %v2369 = vadd.s32 %v315, 3
        %v2370 = vadd.s32 %v316, 3
        %v2371 = vadd.s32 %v317, 3
        %v2372 = vadd.s32 %v318, 3
        %vm2373 = vcmp.ge.s32.totalorder %v2369, 0
        %vm2374 = vcmp.ge.s32.totalorder %v2370, 0
        %vm2375 = vcmp.ge.s32.totalorder %v2371, 0
        %vm2376 = vcmp.ge.s32.totalorder %v2372, 0
        %vm2377 = vcmp.lt.s32.totalorder %v2369, 16
        %vm2378 = vcmp.lt.s32.totalorder %v2370, 16
        %vm2379 = vcmp.lt.s32.totalorder %v2371, 16
        %vm2380 = vcmp.lt.s32.totalorder %v2372, 16
        %vm2381 = vmand %vm2373, %vm2377
        %vm2382 = vmand %vm2374, %vm2378
        %vm2383 = vmand %vm2375, %vm2379
        %vm2384 = vmand %vm2376, %vm2380
        %v2385 = vsel %vm2381, 1, 0
        %v2386 = vsel %vm2382, 1, 0
        %v2387 = vsel %vm2383, 1, 0
        %v2388 = vsel %vm2384, 1, 0
        %v2389 = vcvt.s32.f32 %v2385
        %v2390 = vcvt.s32.f32 %v2386
        %v2391 = vcvt.s32.f32 %v2387
        %v2392 = vcvt.s32.f32 %v2388
        %v2393 = vrot.slane %v201, 3
        %v2394 = vrot.slane %v202, 3
        %v2395 = vrot.slane %v203, 3
        %v2396 = vrot.slane %v204, 3
        %vm2397 = vcmp.lt.s32.totalorder %v304, 5
        %v2398 = vsel %vm2397, %v2395, %v2396
        %v2399 = vsel %vm2397, %v2394, %v2395
        %v2400 = vsel %vm2397, %v2393, %v2394
        %v2401 = vsel %vm2397, %v2396, %v2393
        %v2402 = vmul.f32 %v2400, %v2389
        %v2403 = vmul.f32 %v2399, %v2390
        %v2404 = vmul.f32 %v2398, %v2391
        %v2405 = vmul.f32 %v2401, %v2392
        %2410 = vrot.lane.b32.xlu0 %v2402, 115
        %v2411 = vpop.permute.xlu0 %2410
        %2412 = vrot.lane.b32.xlu0 %v2403, 115
        %v2413 = vpop.permute.xlu0 %2412
        %2414 = vrot.lane.b32.xlu0 %v2404, 115
        %v2415 = vpop.permute.xlu0 %2414
        %2416 = vrot.lane.b32.xlu0 %v2405, 115
        %v2417 = vpop.permute.xlu0 %2416
        %2422 = vrot.lane.b32.xlu0 %v2402, 3
        %v2423 = vpop.permute.xlu0 %2422
        %2424 = vrot.lane.b32.xlu0 %v2403, 3
        %v2425 = vpop.permute.xlu0 %2424
        %2426 = vrot.lane.b32.xlu0 %v2404, 3
        %v2427 = vpop.permute.xlu0 %2426
        %2428 = vrot.lane.b32.xlu0 %v2405, 3
        %v2429 = vpop.permute.xlu0 %2428
        %v2434 = vsel %vm431, %v2411, %v2423
        %v2435 = vsel %vm431, %v2413, %v2425
        %v2436 = vsel %vm431, %v2415, %v2427
        %v2437 = vsel %vm431, %v2417, %v2429
        %v2438 = vmul.f32 %v2434, %v330
        %v2439 = vmul.f32 %v2435, %v330
        %v2440 = vmul.f32 %v2436, %v330
        %v2441 = vmul.f32 %v2437, %v330
        %v2442 = vstv %s247
        %v2443 = vstv %s296
        %v2444 = vsel %vm319, %v2442, %v2443
        %v2445 = vsel %vm320, %v2442, %v2443
        %v2446 = vsel %vm321, %v2442, %v2443
        %v2447 = vsel %vm322, %v2442, %v2443
        %v2448 = vmul.f32 %v2444, %v2438
        %v2449 = vmul.f32 %v2445, %v2439
        %v2450 = vmul.f32 %v2446, %v2440
        %v2451 = vmul.f32 %v2447, %v2441
        %v2452 = vadd.f32 %v2319, %v2448
        %v2453 = vadd.f32 %v2320, %v2449
        %v2454 = vadd.f32 %v2321, %v2450
        %v2455 = vadd.f32 %v2322, %v2451
        %2456 = vrot.lane.b32.xlu0 %v2402, 114
        %v2457 = vpop.permute.xlu0 %2456
        %2458 = vrot.lane.b32.xlu0 %v2403, 114
        %v2459 = vpop.permute.xlu0 %2458
        %2460 = vrot.lane.b32.xlu0 %v2404, 114
        %v2461 = vpop.permute.xlu0 %2460
        %2462 = vrot.lane.b32.xlu0 %v2405, 114
        %v2463 = vpop.permute.xlu0 %2462
        %2468 = vrot.lane.b32.xlu0 %v2402, 2
        %v2469 = vpop.permute.xlu0 %2468
        %2470 = vrot.lane.b32.xlu0 %v2403, 2
        %v2471 = vpop.permute.xlu0 %2470
        %2472 = vrot.lane.b32.xlu0 %v2404, 2
        %v2473 = vpop.permute.xlu0 %2472
        %2474 = vrot.lane.b32.xlu0 %v2405, 2
        %v2475 = vpop.permute.xlu0 %2474
        %v2480 = vsel %vm478, %v2457, %v2469
        %v2481 = vsel %vm478, %v2459, %v2471
        %v2482 = vsel %vm478, %v2461, %v2473
        %v2483 = vsel %vm478, %v2463, %v2475
        %v2484 = vmul.f32 %v2480, %v336
        %v2485 = vmul.f32 %v2481, %v336
        %v2486 = vmul.f32 %v2482, %v336
        %v2487 = vmul.f32 %v2483, %v336
        %v2488 = vstv %s248
        %v2489 = vstv %s297
        %v2490 = vsel %vm319, %v2488, %v2489
        %v2491 = vsel %vm320, %v2488, %v2489
        %v2492 = vsel %vm321, %v2488, %v2489
        %v2493 = vsel %vm322, %v2488, %v2489
        %v2494 = vmul.f32 %v2490, %v2484
        %v2495 = vmul.f32 %v2491, %v2485
        %v2496 = vmul.f32 %v2492, %v2486
        %v2497 = vmul.f32 %v2493, %v2487
        %v2498 = vadd.f32 %v2365, %v2494
        %v2499 = vadd.f32 %v2366, %v2495
        %v2500 = vadd.f32 %v2367, %v2496
        %v2501 = vadd.f32 %v2368, %v2497
        %2502 = vrot.lane.b32.xlu0 %v2402, 113
        %v2503 = vpop.permute.xlu0 %2502
        %2504 = vrot.lane.b32.xlu0 %v2403, 113
        %v2505 = vpop.permute.xlu0 %2504
        %2506 = vrot.lane.b32.xlu0 %v2404, 113
        %v2507 = vpop.permute.xlu0 %2506
        %2508 = vrot.lane.b32.xlu0 %v2405, 113
        %v2509 = vpop.permute.xlu0 %2508
        %2514 = vrot.lane.b32.xlu0 %v2402, 1
        %v2515 = vpop.permute.xlu0 %2514
        %2516 = vrot.lane.b32.xlu0 %v2403, 1
        %v2517 = vpop.permute.xlu0 %2516
        %2518 = vrot.lane.b32.xlu0 %v2404, 1
        %v2519 = vpop.permute.xlu0 %2518
        %2520 = vrot.lane.b32.xlu0 %v2405, 1
        %v2521 = vpop.permute.xlu0 %2520
        %v2526 = vsel %vm525, %v2503, %v2515
        %v2527 = vsel %vm525, %v2505, %v2517
        %v2528 = vsel %vm525, %v2507, %v2519
        %v2529 = vsel %vm525, %v2509, %v2521
        %v2530 = vmul.f32 %v2526, %v342
        %v2531 = vmul.f32 %v2527, %v342
        %v2532 = vmul.f32 %v2528, %v342
        %v2533 = vmul.f32 %v2529, %v342
        %v2534 = vstv %s249
        %v2535 = vstv %s298
        %v2536 = vsel %vm319, %v2534, %v2535
        %v2537 = vsel %vm320, %v2534, %v2535
        %v2538 = vsel %vm321, %v2534, %v2535
        %v2539 = vsel %vm322, %v2534, %v2535
        %v2540 = vmul.f32 %v2536, %v2530
        %v2541 = vmul.f32 %v2537, %v2531
        %v2542 = vmul.f32 %v2538, %v2532
        %v2543 = vmul.f32 %v2539, %v2533
        %v2544 = vadd.f32 %v2452, %v2540
        %v2545 = vadd.f32 %v2453, %v2541
        %v2546 = vadd.f32 %v2454, %v2542
        %v2547 = vadd.f32 %v2455, %v2543
        %v2548 = vmul.f32 %v2402, %v347
        %v2549 = vmul.f32 %v2403, %v347
        %v2550 = vmul.f32 %v2404, %v347
        %v2551 = vmul.f32 %v2405, %v347
        %v2552 = vstv %s250
        %v2553 = vstv %s299
        %v2554 = vsel %vm319, %v2552, %v2553
        %v2555 = vsel %vm320, %v2552, %v2553
        %v2556 = vsel %vm321, %v2552, %v2553
        %v2557 = vsel %vm322, %v2552, %v2553
        %v2558 = vmul.f32 %v2554, %v2548
        %v2559 = vmul.f32 %v2555, %v2549
        %v2560 = vmul.f32 %v2556, %v2550
        %v2561 = vmul.f32 %v2557, %v2551
        %v2562 = vadd.f32 %v2498, %v2558
        %v2563 = vadd.f32 %v2499, %v2559
        %v2564 = vadd.f32 %v2500, %v2560
        %v2565 = vadd.f32 %v2501, %v2561
        %2566 = vrot.lane.b32.xlu0 %v2402, 127
        %v2567 = vpop.permute.xlu0 %2566
        %2568 = vrot.lane.b32.xlu0 %v2403, 127
        %v2569 = vpop.permute.xlu0 %2568
        %2570 = vrot.lane.b32.xlu0 %v2404, 127
        %v2571 = vpop.permute.xlu0 %2570
        %2572 = vrot.lane.b32.xlu0 %v2405, 127
        %v2573 = vpop.permute.xlu0 %2572
        %2578 = vrot.lane.b32.xlu0 %v2402, 15
        %v2579 = vpop.permute.xlu0 %2578
        %2580 = vrot.lane.b32.xlu0 %v2403, 15
        %v2581 = vpop.permute.xlu0 %2580
        %2582 = vrot.lane.b32.xlu0 %v2404, 15
        %v2583 = vpop.permute.xlu0 %2582
        %2584 = vrot.lane.b32.xlu0 %v2405, 15
        %v2585 = vpop.permute.xlu0 %2584
        %v2590 = vsel %vm590, %v2567, %v2579
        %v2591 = vsel %vm590, %v2569, %v2581
        %v2592 = vsel %vm590, %v2571, %v2583
        %v2593 = vsel %vm590, %v2573, %v2585
        %v2594 = vmul.f32 %v2590, %v353
        %v2595 = vmul.f32 %v2591, %v353
        %v2596 = vmul.f32 %v2592, %v353
        %v2597 = vmul.f32 %v2593, %v353
        %v2598 = vstv %s251
        %v2599 = vstv %s300
        %v2600 = vsel %vm319, %v2598, %v2599
        %v2601 = vsel %vm320, %v2598, %v2599
        %v2602 = vsel %vm321, %v2598, %v2599
        %v2603 = vsel %vm322, %v2598, %v2599
        %v2604 = vmul.f32 %v2600, %v2594
        %v2605 = vmul.f32 %v2601, %v2595
        %v2606 = vmul.f32 %v2602, %v2596
        %v2607 = vmul.f32 %v2603, %v2597
        %v2608 = vadd.f32 %v2544, %v2604
        %v2609 = vadd.f32 %v2545, %v2605
        %v2610 = vadd.f32 %v2546, %v2606
        %v2611 = vadd.f32 %v2547, %v2607
        %2612 = vrot.lane.b32.xlu0 %v2402, 126
        %v2613 = vpop.permute.xlu0 %2612
        %2614 = vrot.lane.b32.xlu0 %v2403, 126
        %v2615 = vpop.permute.xlu0 %2614
        %2616 = vrot.lane.b32.xlu0 %v2404, 126
        %v2617 = vpop.permute.xlu0 %2616
        %2618 = vrot.lane.b32.xlu0 %v2405, 126
        %v2619 = vpop.permute.xlu0 %2618
        %2624 = vrot.lane.b32.xlu0 %v2402, 14
        %v2625 = vpop.permute.xlu0 %2624
        %2626 = vrot.lane.b32.xlu0 %v2403, 14
        %v2627 = vpop.permute.xlu0 %2626
        %2628 = vrot.lane.b32.xlu0 %v2404, 14
        %v2629 = vpop.permute.xlu0 %2628
        %2630 = vrot.lane.b32.xlu0 %v2405, 14
        %v2631 = vpop.permute.xlu0 %2630
        %v2636 = vsel %vm637, %v2613, %v2625
        %v2637 = vsel %vm637, %v2615, %v2627
        %v2638 = vsel %vm637, %v2617, %v2629
        %v2639 = vsel %vm637, %v2619, %v2631
        %v2640 = vmul.f32 %v2636, %v359
        %v2641 = vmul.f32 %v2637, %v359
        %v2642 = vmul.f32 %v2638, %v359
        %v2643 = vmul.f32 %v2639, %v359
        %v2644 = vstv %s252
        %v2645 = vstv %s301
        %v2646 = vsel %vm319, %v2644, %v2645
        %v2647 = vsel %vm320, %v2644, %v2645
        %v2648 = vsel %vm321, %v2644, %v2645
        %v2649 = vsel %vm322, %v2644, %v2645
        %v2650 = vmul.f32 %v2646, %v2640
        %v2651 = vmul.f32 %v2647, %v2641
        %v2652 = vmul.f32 %v2648, %v2642
        %v2653 = vmul.f32 %v2649, %v2643
        %v2654 = vadd.f32 %v2562, %v2650
        %v2655 = vadd.f32 %v2563, %v2651
        %v2656 = vadd.f32 %v2564, %v2652
        %v2657 = vadd.f32 %v2565, %v2653
        %2658 = vrot.lane.b32.xlu0 %v2402, 125
        %v2659 = vpop.permute.xlu0 %2658
        %2660 = vrot.lane.b32.xlu0 %v2403, 125
        %v2661 = vpop.permute.xlu0 %2660
        %2662 = vrot.lane.b32.xlu0 %v2404, 125
        %v2663 = vpop.permute.xlu0 %2662
        %2664 = vrot.lane.b32.xlu0 %v2405, 125
        %v2665 = vpop.permute.xlu0 %2664
        %2670 = vrot.lane.b32.xlu0 %v2402, 13
        %v2671 = vpop.permute.xlu0 %2670
        %2672 = vrot.lane.b32.xlu0 %v2403, 13
        %v2673 = vpop.permute.xlu0 %2672
        %2674 = vrot.lane.b32.xlu0 %v2404, 13
        %v2675 = vpop.permute.xlu0 %2674
        %2676 = vrot.lane.b32.xlu0 %v2405, 13
        %v2677 = vpop.permute.xlu0 %2676
        %v2682 = vsel %vm684, %v2659, %v2671
        %v2683 = vsel %vm684, %v2661, %v2673
        %v2684 = vsel %vm684, %v2663, %v2675
        %v2685 = vsel %vm684, %v2665, %v2677
        %v2686 = vmul.f32 %v2682, %v365
        %v2687 = vmul.f32 %v2683, %v365
        %v2688 = vmul.f32 %v2684, %v365
        %v2689 = vmul.f32 %v2685, %v365
        %v2690 = vstv %s253
        %v2691 = vstv %s302
        %v2692 = vsel %vm319, %v2690, %v2691
        %v2693 = vsel %vm320, %v2690, %v2691
        %v2694 = vsel %vm321, %v2690, %v2691
        %v2695 = vsel %vm322, %v2690, %v2691
        %v2696 = vmul.f32 %v2692, %v2686
        %v2697 = vmul.f32 %v2693, %v2687
        %v2698 = vmul.f32 %v2694, %v2688
        %v2699 = vmul.f32 %v2695, %v2689
        %v2700 = vadd.f32 %v2608, %v2696
        %v2701 = vadd.f32 %v2609, %v2697
        %v2702 = vadd.f32 %v2610, %v2698
        %v2703 = vadd.f32 %v2611, %v2699
        %v2704 = vadd.f32 %v2700, %v2654
        %v2705 = vadd.f32 %v2701, %v2655
        %v2706 = vadd.f32 %v2702, %v2656
        %v2707 = vadd.f32 %v2703, %v2657
        %v2708 = vadd.f32 %v2704, %v2706
        %v2709 = vadd.f32 %v2705, %v2707
        %v2710 = vxor.u32 %v2708, 2147483648
        %v2711 = vxor.u32 %v2709, 2147483648
        %v2712 = vmul.f32 %v2710, 1.442695
        %v2713 = vpow.pop %v2712
        %v2714 = vmul.f32 %v2711, 1.442695
        %v2715 = vpow.pop %v2714
        %v2716 = vadd.f32 %v2713, 1.0
        %v2717 = vadd.f32 %v2715, 1.0
        %v2718 = vrcp.pop %v2716
        %v2719 = vmul.f32 1.0, %v2718
        %v2720 = vrcp.pop %v2717
        %v2721 = vmul.f32 1.0, %v2720
        %v2722 = vld [vmem:[%s152] sm:$0xff]
        %v2723 = vld [vmem:[%s152 + $0x8] sm:$0xff]
        %v2724 = vld [vmem:[%s152 + $0x10] sm:$0xff]
        %v2725 = vld [vmem:[%s152 + $0x18] sm:$0xff]
        %v2726 = vld [vmem:[%s152 + $0x20] sm:$0xff]
        %v2727 = vld [vmem:[%s152 + $0x28] sm:$0xff]
        %v2728 = vld [vmem:[%s152 + $0x30] sm:$0xff]
        %v2729 = vld [vmem:[%s152 + $0x38] sm:$0xff]
        %v2730 = vmul.f32 %v2722, %v2719
        %v2731 = vmul.f32 %v2723, %v2721
        %v2732 = vmul.f32 %v2724, %v2719
        %v2733 = vmul.f32 %v2725, %v2721
        %v2734 = vmul.f32 %v2726, %v2719
        %v2735 = vmul.f32 %v2727, %v2721
        %v2736 = vmul.f32 %v2728, %v2719
        %v2737 = vmul.f32 %v2729, %v2721
        %2738 = vst.msk [vmem:[%s173] sm:$0xff] %vm174, %v2730
        %2739 = vst.msk [vmem:[%s173 + $0x8] sm:$0xff] %vm174, %v2731
        %2740 = vst.msk [vmem:[%s173 + $0x10] sm:$0xff] %vm174, %v2732
        %2741 = vst.msk [vmem:[%s173 + $0x18] sm:$0xff] %vm174, %v2733
        %2742 = vst.msk [vmem:[%s173 + $0x20] sm:$0xff] %vm174, %v2734
        %2743 = vst.msk [vmem:[%s173 + $0x28] sm:$0xff] %vm174, %v2735
        %2744 = vst.msk [vmem:[%s173 + $0x30] sm:$0xff] %vm174, %v2736
        %2745 = vst.msk [vmem:[%s173 + $0x38] sm:$0xff] %vm174, %v2737
        %s2746 = sand.u32 %s75, 1
        %s2747 = scalar_lea.sflag [#allocation6], %s2746
        %s2748 = sand.u32 %s75, 1
        %s2749 = smul.addr %s2748, 64
        %s2750 = scalar_lea.vmem [#allocation9], %s2749
        // Predicated region
        $region44: #{tpu_custom_call.1} parent=27 // pred_check
          %p2751 = pneg %p85
        $region45: #{tpu_custom_call.1} parent=27 // pred_check_branch
          %2753 = sbr.rel (%p2751) target = $region47
        $region46: #{tpu_custom_call.1} parent=27 // pred_region
          %s2755 = ssub.s32 1024, 1024
          %2756 = vsyncadd %s2747, %s2755
          %s2757 = smul.addr %s20, 8
          %s2758 = smul.addr %s2757, 128
          %s2759 = scalar_lea.hbm %s2, %s2758
          %s2760 = sshll.u32 %s2750, 4
          %s2761 = int_to_ptr.vmem [resolvable:$true] %s2760
          %2766 = dma.vmem_to_hbm [thread:$0]  %s2761, 1024, %s2759, %s2747, 128, 128, 8
        $region47: #{tpu_custom_call.1} parent=27 // pred_fallthru
          _
      $region28: #{tpu_custom_call.1} parent=5 // pred_fallthru
        _
      %p2767 = scmp.le.s32.totalorder 2, %s15
      // Predicated region
      $region48: #{tpu_custom_call.1} parent=5 // pred_check
        %p2768 = pneg %p2767
      $region49: #{tpu_custom_call.1} parent=5 // pred_check_branch
        %2770 = sbr.rel (%p2768) target = $region51
      $region50: #{tpu_custom_call.1} parent=5 // pred_region
        %s2771 = ssub.s32 %s15, 2
        // Predicated region
        $region52: #{tpu_custom_call.1} parent=50 // pred_check
          %p2772 = pneg %p91
        $region53: #{tpu_custom_call.1} parent=50 // pred_check_branch
          %2774 = sbr.rel (%p2772) target = $region55
        $region54: #{tpu_custom_call.1} parent=50 // pred_region
          %s2775 = sand.u32 %s76, 1
          %s2776 = scalar_lea.sflag [#allocation6], %s2775
          %s2777 = sand.u32 %s76, 1
          %s2778 = smul.addr %s2777, 64
          %s2779 = scalar_lea.vmem [#allocation9], %s2778
          %2780 = dma.done %s2776, 1024
        $region55: #{tpu_custom_call.1} parent=50 // pred_fallthru
          _
      $region51: #{tpu_custom_call.1} parent=5 // pred_fallthru
        _
    $region6: #{tpu_custom_call.1} parent=1 // loop_footer
      %s19 = sadd.s32 1, %s15
    $region7: #{tpu_custom_call.1} parent=1 // loop_footer_branch
      %14 = sbr.rel target = $region3
    $region8: #{tpu_custom_call.1} parent=1 // loop_exit
      _
    %2781 = vsyncpa [#allocation5], 1
    %s2782 = scalar_lea.sflag [#allocation5], 1
    %2783 = vsyncpa %s2782, 1
    %2784 = vsyncpa [#allocation6], 1
    %s2785 = scalar_lea.sflag [#allocation6], 1
    %2786 = vsyncpa %s2785, 1
    %2787 = vsyncpa [#allocation7], 1
    %s2788 = scalar_lea.sflag [#allocation7], 1
    %2789 = vsyncpa %s2788, 1

</llo_original>
